<compile_context>
chip_gen: v7x
topology: tpu7x:2x2x1
jax: 0.10.0
libtpu: 0.0.40
codegen_flags: <defaults>
</compile_context>

<pallas_src>
import functools

import jax
import jax.numpy as jnp
import numpy as np
from jax.experimental import pallas as pl
from jax.experimental.pallas import tpu as pltpu

NEG_SLOPE = 0.01  # LeakyReLU negative slope (PyTorch default)
KSIZE = 3         # 3x3x3 convs, stride 1, padding 1


def _leaky_relu(x):
    return jnp.where(x >= 0, x, NEG_SLOPE * x)


def _residual_block_kernel(alpha_ref, x_ref, wf_ref, bf_ref, w2_ref, b2_ref,
                           mask_ref, out_ref, col_ref, h1_ref, *,
                           offsets, center, q_cols):
    """One batch element per grid step (channels on sublanes, flattened
    zero-padded spatial volume on lanes).

    alpha_ref: (1,)                     SMEM  rezero scalar
    x_ref    : (1, Cin, L)              VMEM  zero-padded flattened input (+tail zeros)
    wf_ref   : (2*Cout, 27*Cin)         VMEM  fused [side ; main1] weights
    bf_ref   : (2*Cout, 1)              VMEM  fused [side ; main1] biases
    w2_ref   : (Cout, 27*Cout)          VMEM  main2 weights
    b2_ref   : (Cout, 1)                VMEM  main2 bias
    mask_ref : (1, Q)                   VMEM  1.0 at valid output columns else 0.0
    out_ref  : (1, Cout, Q)             VMEM  output in column space (lane-dense)
    col_ref  : (27*max(Cin,Cout), Q)    VMEM  scratch: im2col^T
    h1_ref   : (Cout, L)                VMEM  scratch: zero-padded hidden activation
    """
    cin = x_ref.shape[1]
    cout = out_ref.shape[1]
    alpha = alpha_ref[0]

    # ---- im2col^T of the input: 27 shifted lane-slices, K = 27*Cin ----------
    for t, off in enumerate(offsets):
        col_ref[t * cin:(t + 1) * cin, :] = x_ref[0, :, off:off + q_cols]

    # ---- fused side conv + first main conv: ONE MXU matmul ------------------
    res1 = jnp.dot(wf_ref[...], col_ref[0:27 * cin, :],
                   preferred_element_type=jnp.float32) + bf_ref[...]
    side = res1[:cout, :]                                 # (Cout, Q)
    # Mask zeroes the out-of-range (halo-overlapping) columns so they become
    # proper zero padding for the second conv.
    h1 = _leaky_relu(res1[cout:, :]) * mask_ref[...]      # (Cout, Q)

    # ---- re-pad hidden activation: zero only head/tail halo columns ---------
    tail = h1_ref.shape[1] - (center + q_cols)
    h1_ref[:, 0:center] = jnp.zeros((cout, center), jnp.float32)
    h1_ref[:, center:center + q_cols] = h1
    h1_ref[:, center + q_cols:] = jnp.zeros((cout, tail), jnp.float32)

    # ---- im2col^T of the hidden activation, second main conv ----------------
    for t, off in enumerate(offsets):
        col_ref[t * cout:(t + 1) * cout, :] = h1_ref[:, off:off + q_cols]
    main2 = jnp.dot(w2_ref[...], col_ref[0:27 * cout, :],
                    preferred_element_type=jnp.float32) + b2_ref[...]

    # ---- rezero residual merge + final activation (lane-dense store) --------
    out_ref[0] = _leaky_relu(alpha * main2 + side)


def _prep_w(w):
    """PyTorch OIDHW (Cout, Cin, 3, 3, 3) -> (Cout, 27*Cin), tap-major (kz,ky,kx)."""
    cout, cin = w.shape[0], w.shape[1]
    return jnp.transpose(w, (0, 2, 3, 4, 1)).reshape(cout, KSIZE ** 3 * cin).astype(jnp.float32)


def tpc_residual_block(x_ncdhw, alpha, w_side, b_side, w_m1, b_m1, w_m2, b_m2):
    """Pallas implementation of TPCResidualBlock.forward.

    x_ncdhw: (N, C, D, H, W) float32 (PyTorch convention).  Returns (N, C, D, H, W).
    """
    N, Cin, D, H, W = x_ncdhw.shape
    Cout = w_side.shape[0]
    Dp, Hp, Wp = D + 2, H + 2, W + 2

    Q = D * Hp * Wp                 # output columns (corner-indexed, padded strides)
    center = Hp * Wp + Wp + 1       # flattened offset of padded position (1,1,1)
    L = Q + 2 * center              # flattened length incl. halo + tail zeros

    # NCDHW -> zero-pad spatial by 1 -> flatten spatial onto lanes (channels on sublanes).
    x_pad = jnp.pad(x_ncdhw.astype(jnp.float32),
                    ((0, 0), (0, 0), (1, 1), (1, 1), (1, 1)))
    x_flat = x_pad.reshape(N, Cin, Dp * Hp * Wp)
    x_flat = jnp.pad(x_flat, ((0, 0), (0, 0), (0, L - Dp * Hp * Wp)))

    # Fused [side ; main1] weights share the input im2col; main2 stands alone.
    w_fused = jnp.concatenate([_prep_w(w_side), _prep_w(w_m1)], axis=0)   # (2*Cout, 27*Cin)
    b_fused = jnp.concatenate([b_side, b_m1]).reshape(2 * Cout, 1).astype(jnp.float32)
    w2 = _prep_w(w_m2)                                                    # (Cout, 27*Cout)
    b2 = b_m2.reshape(Cout, 1).astype(jnp.float32)

    # Valid-column mask: column q decodes to (d, h, w) with padded strides;
    # columns whose h/w land in the halo are garbage and must not feed conv2.
    qs = jnp.arange(Q)
    mask = (((qs // Wp) % Hp < H) & (qs % Wp < W)).astype(jnp.float32).reshape(1, Q)

    offsets = tuple(dz * Hp * Wp + dy * Wp + dx
                    for dz in range(KSIZE) for dy in range(KSIZE) for dx in range(KSIZE))

    kernel = functools.partial(_residual_block_kernel,
                               offsets=offsets, center=center, q_cols=Q)

    out_q = pl.pallas_call(
        kernel,
        out_shape=jax.ShapeDtypeStruct((N, Cout, Q), jnp.float32),
        grid=(N,),
        in_specs=[
            pl.BlockSpec(memory_space=pltpu.MemorySpace.SMEM),                 # alpha
            pl.BlockSpec((1, Cin, L), lambda n: (n, 0, 0)),                    # x_flat
            pl.BlockSpec((2 * Cout, KSIZE ** 3 * Cin), lambda n: (0, 0)),      # w_fused
            pl.BlockSpec((2 * Cout, 1), lambda n: (0, 0)),                     # b_fused
            pl.BlockSpec((Cout, KSIZE ** 3 * Cout), lambda n: (0, 0)),         # w2
            pl.BlockSpec((Cout, 1), lambda n: (0, 0)),                         # b2
            pl.BlockSpec((1, Q), lambda n: (0, 0)),                            # mask
        ],
        out_specs=pl.BlockSpec((1, Cout, Q), lambda n: (n, 0, 0)),
        scratch_shapes=[
            pltpu.VMEM((KSIZE ** 3 * max(Cin, Cout), Q), jnp.float32),  # im2col^T
            pltpu.VMEM((Cout, L), jnp.float32),                         # padded hidden act
        ],
        compiler_params=pltpu.CompilerParams(
            dimension_semantics=("parallel",)),
    )(alpha.reshape(1).astype(jnp.float32), x_flat, w_fused, b_fused, w2, b2, mask)

    # Column space -> NCDHW: column q encodes (d, h, w) with padded (Hp, Wp) strides.
    return out_q.reshape(N, Cout, D, Hp, Wp)[:, :, :, :H, :W]


def _reference(x, alpha, w_side, b_side, w_m1, b_m1, w_m2, b_m2):
    """Pure-JAX NCDHW reference mirroring the PyTorch forward (full f32 precision)."""
    hi = jax.lax.Precision.HIGHEST

    def conv3d(inp, w, b):
        y = jax.lax.conv_general_dilated(
            inp, w, window_strides=(1, 1, 1),
            padding=((1, 1), (1, 1), (1, 1)),
            dimension_numbers=("NCDHW", "OIDHW", "NCDHW"),
            precision=hi)
        return y + b[None, :, None, None, None]

    x_side = conv3d(x, w_side, b_side)
    h1 = _leaky_relu(conv3d(x, w_m1, b_m1))
    x_main = conv3d(h1, w_m2, b_m2)
    return _leaky_relu(alpha[0] * x_main + x_side)


if __name__ == "__main__":
    key = jax.random.PRNGKey(0)
    ks = jax.random.split(key, 7)

    N, C, D, H, W = 2, 4, 8, 8, 8   # small shapes consistent with (N, C, D, H, W)

    # Deterministic synthetic parameters (PyTorch Conv3d weight layout: OIDHW).
    w_side = 0.2 * jax.random.normal(ks[0], (C, C, 3, 3, 3), jnp.float32)
    b_side = 0.1 * jax.random.normal(ks[1], (C,), jnp.float32)
    w_m1 = 0.2 * jax.random.normal(ks[2], (C, C, 3, 3, 3), jnp.float32)
    b_m1 = 0.1 * jax.random.normal(ks[3], (C,), jnp.float32)
    w_m2 = 0.2 * jax.random.normal(ks[4], (C, C, 3, 3, 3), jnp.float32)
    b_m2 = 0.1 * jax.random.normal(ks[5], (C,), jnp.float32)
    # Module inits rezero_alpha to 0; use a nonzero value so the main path is exercised.
    alpha = jnp.array([0.7], jnp.float32)

    x = jax.random.normal(ks[6], (N, C, D, H, W), jnp.float32)

    out = jax.jit(tpc_residual_block)(x, alpha, w_side, b_side, w_m1, b_m1, w_m2, b_m2)
    out = jax.block_until_ready(out)

    ref = _reference(x, alpha, w_side, b_side, w_m1, b_m1, w_m2, b_m2)
    # Tolerance accounts for default-precision (bf16-pass) MXU matmuls in the
    # kernel vs the Precision.HIGHEST f32 reference; real bugs are O(0.1-1).
    np.testing.assert_allclose(np.asarray(out), np.asarray(ref), atol=5e-2, rtol=5e-2)

    print("KERNEL_OK")
</pallas_src>

<mosaic_0001>
module attributes {stable_mosaic.version = 11 : i64} {
  func.func @_residual_block_kernel(%arg0: i32, %arg1: memref<1xf32, #tpu.memory_space<smem>>, %arg2: memref<1x4x1022xf32, #tpu.memory_space<vmem>>, %arg3: memref<8x108xf32, #tpu.memory_space<vmem>>, %arg4: memref<8x1xf32, #tpu.memory_space<vmem>>, %arg5: memref<4x108xf32, #tpu.memory_space<vmem>>, %arg6: memref<4x1xf32, #tpu.memory_space<vmem>>, %arg7: memref<1x800xf32, #tpu.memory_space<vmem>>, %arg8: memref<1x4x800xf32, #tpu.memory_space<vmem>>, %arg9: memref<108x800xf32, #tpu.memory_space<vmem>>, %arg10: memref<4x1022xf32, #tpu.memory_space<vmem>>) attributes {dimension_semantics = [#tpu.dimension_semantics<parallel>], iteration_bounds = array<i64: 2>, scalar_prefetch = 0 : i64, scratch_operands = 2 : i64, tpu.core_type = #tpu.core_type<tc>, window_params = [{transform_indices = @transform_0, window_bounds = array<i64: 1>}, {transform_indices = @transform_1, window_bounds = array<i64: 1, 4, 1022>}, {pipeline_mode = #tpu.pipeline_mode<synchronous>, transform_indices = @transform_2, window_bounds = array<i64: 8, 108>}, {pipeline_mode = #tpu.pipeline_mode<synchronous>, transform_indices = @transform_3, window_bounds = array<i64: 8, 1>}, {pipeline_mode = #tpu.pipeline_mode<synchronous>, transform_indices = @transform_4, window_bounds = array<i64: 4, 108>}, {pipeline_mode = #tpu.pipeline_mode<synchronous>, transform_indices = @transform_5, window_bounds = array<i64: 4, 1>}, {pipeline_mode = #tpu.pipeline_mode<synchronous>, transform_indices = @transform_6, window_bounds = array<i64: 1, 800>}, {transform_indices = @transform_7, window_bounds = array<i64: 1, 4, 800>}]} {
    %c0 = arith.constant 0 : index
    %0 = memref.load %arg1[%c0] : memref<1xf32, #tpu.memory_space<smem>>
    %c0_0 = arith.constant 0 : index
    %c0_1 = arith.constant 0 : index
    %c0_2 = arith.constant 0 : index
    %1 = vector.load %arg2[%c0_0, %c0_1, %c0_2] : memref<1x4x1022xf32, #tpu.memory_space<vmem>>, vector<1x4x800xf32>
    %2 = vector.shape_cast %1 : vector<1x4x800xf32> to vector<4x800xf32>
    %c0_3 = arith.constant 0 : index
    %c0_4 = arith.constant 0 : index
    %3 = vector.load %arg9[%c0_3, %c0_4] : memref<108x800xf32, #tpu.memory_space<vmem>>, vector<4x800xf32>
    tpu.vector_store %arg9[%c0_3, %c0_4], %2 {strides = array<i32>} : memref<108x800xf32, #tpu.memory_space<vmem>>, vector<4x800xf32>,
    %c0_5 = arith.constant 0 : index
    %c0_6 = arith.constant 0 : index
    %c1 = arith.constant 1 : index
    %4 = vector.load %arg2[%c0_5, %c0_6, %c1] : memref<1x4x1022xf32, #tpu.memory_space<vmem>>, vector<1x4x800xf32>
    %5 = vector.shape_cast %4 : vector<1x4x800xf32> to vector<4x800xf32>
    %c4 = arith.constant 4 : index
    %c0_7 = arith.constant 0 : index
    %6 = vector.load %arg9[%c4, %c0_7] : memref<108x800xf32, #tpu.memory_space<vmem>>, vector<4x800xf32>
    tpu.vector_store %arg9[%c4, %c0_7], %5 {strides = array<i32>} : memref<108x800xf32, #tpu.memory_space<vmem>>, vector<4x800xf32>,
    %c0_8 = arith.constant 0 : index
    %c0_9 = arith.constant 0 : index
    %c2 = arith.constant 2 : index
    %7 = vector.load %arg2[%c0_8, %c0_9, %c2] : memref<1x4x1022xf32, #tpu.memory_space<vmem>>, vector<1x4x800xf32>
    %8 = vector.shape_cast %7 : vector<1x4x800xf32> to vector<4x800xf32>
    %c8 = arith.constant 8 : index
    %c0_10 = arith.constant 0 : index
    %9 = vector.load %arg9[%c8, %c0_10] : memref<108x800xf32, #tpu.memory_space<vmem>>, vector<4x800xf32>
    tpu.vector_store %arg9[%c8, %c0_10], %8 {strides = array<i32>} : memref<108x800xf32, #tpu.memory_space<vmem>>, vector<4x800xf32>,
    %c0_11 = arith.constant 0 : index
    %c0_12 = arith.constant 0 : index
    %c10 = arith.constant 10 : index
    %10 = vector.load %arg2[%c0_11, %c0_12, %c10] : memref<1x4x1022xf32, #tpu.memory_space<vmem>>, vector<1x4x800xf32>
    %11 = vector.shape_cast %10 : vector<1x4x800xf32> to vector<4x800xf32>
    %c12 = arith.constant 12 : index
    %c0_13 = arith.constant 0 : index
    %12 = vector.load %arg9[%c12, %c0_13] : memref<108x800xf32, #tpu.memory_space<vmem>>, vector<4x800xf32>
    tpu.vector_store %arg9[%c12, %c0_13], %11 {strides = array<i32>} : memref<108x800xf32, #tpu.memory_space<vmem>>, vector<4x800xf32>,
    %c0_14 = arith.constant 0 : index
    %c0_15 = arith.constant 0 : index
    %c11 = arith.constant 11 : index
    %13 = vector.load %arg2[%c0_14, %c0_15, %c11] : memref<1x4x1022xf32, #tpu.memory_space<vmem>>, vector<1x4x800xf32>
    %14 = vector.shape_cast %13 : vector<1x4x800xf32> to vector<4x800xf32>
    %c16 = arith.constant 16 : index
    %c0_16 = arith.constant 0 : index
    %15 = vector.load %arg9[%c16, %c0_16] : memref<108x800xf32, #tpu.memory_space<vmem>>, vector<4x800xf32>
    tpu.vector_store %arg9[%c16, %c0_16], %14 {strides = array<i32>} : memref<108x800xf32, #tpu.memory_space<vmem>>, vector<4x800xf32>,
    %c0_17 = arith.constant 0 : index
    %c0_18 = arith.constant 0 : index
    %c12_19 = arith.constant 12 : index
    %16 = vector.load %arg2[%c0_17, %c0_18, %c12_19] : memref<1x4x1022xf32, #tpu.memory_space<vmem>>, vector<1x4x800xf32>
    %17 = vector.shape_cast %16 : vector<1x4x800xf32> to vector<4x800xf32>
    %c20 = arith.constant 20 : index
    %c0_20 = arith.constant 0 : index
    %18 = vector.load %arg9[%c20, %c0_20] : memref<108x800xf32, #tpu.memory_space<vmem>>, vector<4x800xf32>
    tpu.vector_store %arg9[%c20, %c0_20], %17 {strides = array<i32>} : memref<108x800xf32, #tpu.memory_space<vmem>>, vector<4x800xf32>,
    %c0_21 = arith.constant 0 : index
    %c0_22 = arith.constant 0 : index
    %c20_23 = arith.constant 20 : index
    %19 = vector.load %arg2[%c0_21, %c0_22, %c20_23] : memref<1x4x1022xf32, #tpu.memory_space<vmem>>, vector<1x4x800xf32>
    %20 = vector.shape_cast %19 : vector<1x4x800xf32> to vector<4x800xf32>
    %c24 = arith.constant 24 : index
    %c0_24 = arith.constant 0 : index
    %21 = vector.load %arg9[%c24, %c0_24] : memref<108x800xf32, #tpu.memory_space<vmem>>, vector<4x800xf32>
    tpu.vector_store %arg9[%c24, %c0_24], %20 {strides = array<i32>} : memref<108x800xf32, #tpu.memory_space<vmem>>, vector<4x800xf32>,
    %c0_25 = arith.constant 0 : index
    %c0_26 = arith.constant 0 : index
    %c21 = arith.constant 21 : index
    %22 = vector.load %arg2[%c0_25, %c0_26, %c21] : memref<1x4x1022xf32, #tpu.memory_space<vmem>>, vector<1x4x800xf32>
    %23 = vector.shape_cast %22 : vector<1x4x800xf32> to vector<4x800xf32>
    %c28 = arith.constant 28 : index
    %c0_27 = arith.constant 0 : index
    %24 = vector.load %arg9[%c28, %c0_27] : memref<108x800xf32, #tpu.memory_space<vmem>>, vector<4x800xf32>
    tpu.vector_store %arg9[%c28, %c0_27], %23 {strides = array<i32>} : memref<108x800xf32, #tpu.memory_space<vmem>>, vector<4x800xf32>,
    %c0_28 = arith.constant 0 : index
    %c0_29 = arith.constant 0 : index
    %c22 = arith.constant 22 : index
    %25 = vector.load %arg2[%c0_28, %c0_29, %c22] : memref<1x4x1022xf32, #tpu.memory_space<vmem>>, vector<1x4x800xf32>
    %26 = vector.shape_cast %25 : vector<1x4x800xf32> to vector<4x800xf32>
    %c32 = arith.constant 32 : index
    %c0_30 = arith.constant 0 : index
    %27 = vector.load %arg9[%c32, %c0_30] : memref<108x800xf32, #tpu.memory_space<vmem>>, vector<4x800xf32>
    tpu.vector_store %arg9[%c32, %c0_30], %26 {strides = array<i32>} : memref<108x800xf32, #tpu.memory_space<vmem>>, vector<4x800xf32>,
    %c0_31 = arith.constant 0 : index
    %c0_32 = arith.constant 0 : index
    %c100 = arith.constant 100 : index
    %28 = vector.load %arg2[%c0_31, %c0_32, %c100] : memref<1x4x1022xf32, #tpu.memory_space<vmem>>, vector<1x4x800xf32>
    %29 = vector.shape_cast %28 : vector<1x4x800xf32> to vector<4x800xf32>
    %c36 = arith.constant 36 : index
    %c0_33 = arith.constant 0 : index
    %30 = vector.load %arg9[%c36, %c0_33] : memref<108x800xf32, #tpu.memory_space<vmem>>, vector<4x800xf32>
    tpu.vector_store %arg9[%c36, %c0_33], %29 {strides = array<i32>} : memref<108x800xf32, #tpu.memory_space<vmem>>, vector<4x800xf32>,
    %c0_34 = arith.constant 0 : index
    %c0_35 = arith.constant 0 : index
    %c101 = arith.constant 101 : index
    %31 = vector.load %arg2[%c0_34, %c0_35, %c101] : memref<1x4x1022xf32, #tpu.memory_space<vmem>>, vector<1x4x800xf32>
    %32 = vector.shape_cast %31 : vector<1x4x800xf32> to vector<4x800xf32>
    %c40 = arith.constant 40 : index
    %c0_36 = arith.constant 0 : index
    %33 = vector.load %arg9[%c40, %c0_36] : memref<108x800xf32, #tpu.memory_space<vmem>>, vector<4x800xf32>
    tpu.vector_store %arg9[%c40, %c0_36], %32 {strides = array<i32>} : memref<108x800xf32, #tpu.memory_space<vmem>>, vector<4x800xf32>,
    %c0_37 = arith.constant 0 : index
    %c0_38 = arith.constant 0 : index
    %c102 = arith.constant 102 : index
    %34 = vector.load %arg2[%c0_37, %c0_38, %c102] : memref<1x4x1022xf32, #tpu.memory_space<vmem>>, vector<1x4x800xf32>
    %35 = vector.shape_cast %34 : vector<1x4x800xf32> to vector<4x800xf32>
    %c44 = arith.constant 44 : index
    %c0_39 = arith.constant 0 : index
    %36 = vector.load %arg9[%c44, %c0_39] : memref<108x800xf32, #tpu.memory_space<vmem>>, vector<4x800xf32>
    tpu.vector_store %arg9[%c44, %c0_39], %35 {strides = array<i32>} : memref<108x800xf32, #tpu.memory_space<vmem>>, vector<4x800xf32>,
    %c0_40 = arith.constant 0 : index
    %c0_41 = arith.constant 0 : index
    %c110 = arith.constant 110 : index
    %37 = vector.load %arg2[%c0_40, %c0_41, %c110] : memref<1x4x1022xf32, #tpu.memory_space<vmem>>, vector<1x4x800xf32>
    %38 = vector.shape_cast %37 : vector<1x4x800xf32> to vector<4x800xf32>
    %c48 = arith.constant 48 : index
    %c0_42 = arith.constant 0 : index
    %39 = vector.load %arg9[%c48, %c0_42] : memref<108x800xf32, #tpu.memory_space<vmem>>, vector<4x800xf32>
    tpu.vector_store %arg9[%c48, %c0_42], %38 {strides = array<i32>} : memref<108x800xf32, #tpu.memory_space<vmem>>, vector<4x800xf32>,
    %c0_43 = arith.constant 0 : index
    %c0_44 = arith.constant 0 : index
    %c111 = arith.constant 111 : index
    %40 = vector.load %arg2[%c0_43, %c0_44, %c111] : memref<1x4x1022xf32, #tpu.memory_space<vmem>>, vector<1x4x800xf32>
    %41 = vector.shape_cast %40 : vector<1x4x800xf32> to vector<4x800xf32>
    %c52 = arith.constant 52 : index
    %c0_45 = arith.constant 0 : index
    %42 = vector.load %arg9[%c52, %c0_45] : memref<108x800xf32, #tpu.memory_space<vmem>>, vector<4x800xf32>
    tpu.vector_store %arg9[%c52, %c0_45], %41 {strides = array<i32>} : memref<108x800xf32, #tpu.memory_space<vmem>>, vector<4x800xf32>,
    %c0_46 = arith.constant 0 : index
    %c0_47 = arith.constant 0 : index
    %c112 = arith.constant 112 : index
    %43 = vector.load %arg2[%c0_46, %c0_47, %c112] : memref<1x4x1022xf32, #tpu.memory_space<vmem>>, vector<1x4x800xf32>
    %44 = vector.shape_cast %43 : vector<1x4x800xf32> to vector<4x800xf32>
    %c56 = arith.constant 56 : index
    %c0_48 = arith.constant 0 : index
    %45 = vector.load %arg9[%c56, %c0_48] : memref<108x800xf32, #tpu.memory_space<vmem>>, vector<4x800xf32>
    tpu.vector_store %arg9[%c56, %c0_48], %44 {strides = array<i32>} : memref<108x800xf32, #tpu.memory_space<vmem>>, vector<4x800xf32>,
    %c0_49 = arith.constant 0 : index
    %c0_50 = arith.constant 0 : index
    %c120 = arith.constant 120 : index
    %46 = vector.load %arg2[%c0_49, %c0_50, %c120] : memref<1x4x1022xf32, #tpu.memory_space<vmem>>, vector<1x4x800xf32>
    %47 = vector.shape_cast %46 : vector<1x4x800xf32> to vector<4x800xf32>
    %c60 = arith.constant 60 : index
    %c0_51 = arith.constant 0 : index
    %48 = vector.load %arg9[%c60, %c0_51] : memref<108x800xf32, #tpu.memory_space<vmem>>, vector<4x800xf32>
    tpu.vector_store %arg9[%c60, %c0_51], %47 {strides = array<i32>} : memref<108x800xf32, #tpu.memory_space<vmem>>, vector<4x800xf32>,
    %c0_52 = arith.constant 0 : index
    %c0_53 = arith.constant 0 : index
    %c121 = arith.constant 121 : index
    %49 = vector.load %arg2[%c0_52, %c0_53, %c121] : memref<1x4x1022xf32, #tpu.memory_space<vmem>>, vector<1x4x800xf32>
    %50 = vector.shape_cast %49 : vector<1x4x800xf32> to vector<4x800xf32>
    %c64 = arith.constant 64 : index
    %c0_54 = arith.constant 0 : index
    %51 = vector.load %arg9[%c64, %c0_54] : memref<108x800xf32, #tpu.memory_space<vmem>>, vector<4x800xf32>
    tpu.vector_store %arg9[%c64, %c0_54], %50 {strides = array<i32>} : memref<108x800xf32, #tpu.memory_space<vmem>>, vector<4x800xf32>,
    %c0_55 = arith.constant 0 : index
    %c0_56 = arith.constant 0 : index
    %c122 = arith.constant 122 : index
    %52 = vector.load %arg2[%c0_55, %c0_56, %c122] : memref<1x4x1022xf32, #tpu.memory_space<vmem>>, vector<1x4x800xf32>
    %53 = vector.shape_cast %52 : vector<1x4x800xf32> to vector<4x800xf32>
    %c68 = arith.constant 68 : index
    %c0_57 = arith.constant 0 : index
    %54 = vector.load %arg9[%c68, %c0_57] : memref<108x800xf32, #tpu.memory_space<vmem>>, vector<4x800xf32>
    tpu.vector_store %arg9[%c68, %c0_57], %53 {strides = array<i32>} : memref<108x800xf32, #tpu.memory_space<vmem>>, vector<4x800xf32>,
    %c0_58 = arith.constant 0 : index
    %c0_59 = arith.constant 0 : index
    %c200 = arith.constant 200 : index
    %55 = vector.load %arg2[%c0_58, %c0_59, %c200] : memref<1x4x1022xf32, #tpu.memory_space<vmem>>, vector<1x4x800xf32>
    %56 = vector.shape_cast %55 : vector<1x4x800xf32> to vector<4x800xf32>
    %c72 = arith.constant 72 : index
    %c0_60 = arith.constant 0 : index
    %57 = vector.load %arg9[%c72, %c0_60] : memref<108x800xf32, #tpu.memory_space<vmem>>, vector<4x800xf32>
    tpu.vector_store %arg9[%c72, %c0_60], %56 {strides = array<i32>} : memref<108x800xf32, #tpu.memory_space<vmem>>, vector<4x800xf32>,
    %c0_61 = arith.constant 0 : index
    %c0_62 = arith.constant 0 : index
    %c201 = arith.constant 201 : index
    %58 = vector.load %arg2[%c0_61, %c0_62, %c201] : memref<1x4x1022xf32, #tpu.memory_space<vmem>>, vector<1x4x800xf32>
    %59 = vector.shape_cast %58 : vector<1x4x800xf32> to vector<4x800xf32>
    %c76 = arith.constant 76 : index
    %c0_63 = arith.constant 0 : index
    %60 = vector.load %arg9[%c76, %c0_63] : memref<108x800xf32, #tpu.memory_space<vmem>>, vector<4x800xf32>
    tpu.vector_store %arg9[%c76, %c0_63], %59 {strides = array<i32>} : memref<108x800xf32, #tpu.memory_space<vmem>>, vector<4x800xf32>,
    %c0_64 = arith.constant 0 : index
    %c0_65 = arith.constant 0 : index
    %c202 = arith.constant 202 : index
    %61 = vector.load %arg2[%c0_64, %c0_65, %c202] : memref<1x4x1022xf32, #tpu.memory_space<vmem>>, vector<1x4x800xf32>
    %62 = vector.shape_cast %61 : vector<1x4x800xf32> to vector<4x800xf32>
    %c80 = arith.constant 80 : index
    %c0_66 = arith.constant 0 : index
    %63 = vector.load %arg9[%c80, %c0_66] : memref<108x800xf32, #tpu.memory_space<vmem>>, vector<4x800xf32>
    tpu.vector_store %arg9[%c80, %c0_66], %62 {strides = array<i32>} : memref<108x800xf32, #tpu.memory_space<vmem>>, vector<4x800xf32>,
    %c0_67 = arith.constant 0 : index
    %c0_68 = arith.constant 0 : index
    %c210 = arith.constant 210 : index
    %64 = vector.load %arg2[%c0_67, %c0_68, %c210] : memref<1x4x1022xf32, #tpu.memory_space<vmem>>, vector<1x4x800xf32>
    %65 = vector.shape_cast %64 : vector<1x4x800xf32> to vector<4x800xf32>
    %c84 = arith.constant 84 : index
    %c0_69 = arith.constant 0 : index
    %66 = vector.load %arg9[%c84, %c0_69] : memref<108x800xf32, #tpu.memory_space<vmem>>, vector<4x800xf32>
    tpu.vector_store %arg9[%c84, %c0_69], %65 {strides = array<i32>} : memref<108x800xf32, #tpu.memory_space<vmem>>, vector<4x800xf32>,
    %c0_70 = arith.constant 0 : index
    %c0_71 = arith.constant 0 : index
    %c211 = arith.constant 211 : index
    %67 = vector.load %arg2[%c0_70, %c0_71, %c211] : memref<1x4x1022xf32, #tpu.memory_space<vmem>>, vector<1x4x800xf32>
    %68 = vector.shape_cast %67 : vector<1x4x800xf32> to vector<4x800xf32>
    %c88 = arith.constant 88 : index
    %c0_72 = arith.constant 0 : index
    %69 = vector.load %arg9[%c88, %c0_72] : memref<108x800xf32, #tpu.memory_space<vmem>>, vector<4x800xf32>
    tpu.vector_store %arg9[%c88, %c0_72], %68 {strides = array<i32>} : memref<108x800xf32, #tpu.memory_space<vmem>>, vector<4x800xf32>,
    %c0_73 = arith.constant 0 : index
    %c0_74 = arith.constant 0 : index
    %c212 = arith.constant 212 : index
    %70 = vector.load %arg2[%c0_73, %c0_74, %c212] : memref<1x4x1022xf32, #tpu.memory_space<vmem>>, vector<1x4x800xf32>
    %71 = vector.shape_cast %70 : vector<1x4x800xf32> to vector<4x800xf32>
    %c92 = arith.constant 92 : index
    %c0_75 = arith.constant 0 : index
    %72 = vector.load %arg9[%c92, %c0_75] : memref<108x800xf32, #tpu.memory_space<vmem>>, vector<4x800xf32>
    tpu.vector_store %arg9[%c92, %c0_75], %71 {strides = array<i32>} : memref<108x800xf32, #tpu.memory_space<vmem>>, vector<4x800xf32>,
    %c0_76 = arith.constant 0 : index
    %c0_77 = arith.constant 0 : index
    %c220 = arith.constant 220 : index
    %73 = vector.load %arg2[%c0_76, %c0_77, %c220] : memref<1x4x1022xf32, #tpu.memory_space<vmem>>, vector<1x4x800xf32>
    %74 = vector.shape_cast %73 : vector<1x4x800xf32> to vector<4x800xf32>
    %c96 = arith.constant 96 : index
    %c0_78 = arith.constant 0 : index
    %75 = vector.load %arg9[%c96, %c0_78] : memref<108x800xf32, #tpu.memory_space<vmem>>, vector<4x800xf32>
    tpu.vector_store %arg9[%c96, %c0_78], %74 {strides = array<i32>} : memref<108x800xf32, #tpu.memory_space<vmem>>, vector<4x800xf32>,
    %c0_79 = arith.constant 0 : index
    %c0_80 = arith.constant 0 : index
    %c221 = arith.constant 221 : index
    %76 = vector.load %arg2[%c0_79, %c0_80, %c221] : memref<1x4x1022xf32, #tpu.memory_space<vmem>>, vector<1x4x800xf32>
    %77 = vector.shape_cast %76 : vector<1x4x800xf32> to vector<4x800xf32>
    %c100_81 = arith.constant 100 : index
    %c0_82 = arith.constant 0 : index
    %78 = vector.load %arg9[%c100_81, %c0_82] : memref<108x800xf32, #tpu.memory_space<vmem>>, vector<4x800xf32>
    tpu.vector_store %arg9[%c100_81, %c0_82], %77 {strides = array<i32>} : memref<108x800xf32, #tpu.memory_space<vmem>>, vector<4x800xf32>,
    %c0_83 = arith.constant 0 : index
    %c0_84 = arith.constant 0 : index
    %c222 = arith.constant 222 : index
    %79 = vector.load %arg2[%c0_83, %c0_84, %c222] : memref<1x4x1022xf32, #tpu.memory_space<vmem>>, vector<1x4x800xf32>
    %80 = vector.shape_cast %79 : vector<1x4x800xf32> to vector<4x800xf32>
    %c104 = arith.constant 104 : index
    %c0_85 = arith.constant 0 : index
    %81 = vector.load %arg9[%c104, %c0_85] : memref<108x800xf32, #tpu.memory_space<vmem>>, vector<4x800xf32>
    tpu.vector_store %arg9[%c104, %c0_85], %80 {strides = array<i32>} : memref<108x800xf32, #tpu.memory_space<vmem>>, vector<4x800xf32>,
    %c0_86 = arith.constant 0 : index
    %c0_87 = arith.constant 0 : index
    %82 = vector.load %arg3[%c0_86, %c0_87] : memref<8x108xf32, #tpu.memory_space<vmem>>, vector<8x108xf32>
    %c0_88 = arith.constant 0 : index
    %c0_89 = arith.constant 0 : index
    %83 = vector.load %arg9[%c0_88, %c0_89] : memref<108x800xf32, #tpu.memory_space<vmem>>, vector<108x800xf32>
    %cst = arith.constant dense<0.000000e+00> : vector<8x800xf32>
    %84 = tpu.matmul %82, %83, %cst {dimension_numbers = #tpu.dot_dimension_numbers<[1], [0], [0], [1], [0, 0, 1, 1], [], []>} : vector<8x108xf32>, vector<108x800xf32>, vector<8x800xf32> -> vector<8x800xf32>
    %c0_90 = arith.constant 0 : index
    %c0_91 = arith.constant 0 : index
    %85 = vector.load %arg4[%c0_90, %c0_91] : memref<8x1xf32, #tpu.memory_space<vmem>>, vector<8x1xf32>
    %86 = vector.broadcast %85 : vector<8x1xf32> to vector<8x800xf32>
    %87 = arith.addf %84, %86 : vector<8x800xf32>
    %88 = vector.extract_strided_slice %87 {offsets = [0, 0], sizes = [4, 800], strides = [1, 1]} : vector<8x800xf32> to vector<4x800xf32>
    %89 = vector.extract_strided_slice %87 {offsets = [4, 0], sizes = [4, 800], strides = [1, 1]} : vector<8x800xf32> to vector<4x800xf32>
    %cst_92 = arith.constant 0.000000e+00 : f32
    %90 = vector.broadcast %cst_92 : f32 to vector<4x800xf32>
    %91 = arith.cmpf oge, %89, %90 : vector<4x800xf32>
    %cst_93 = arith.constant 0.00999999977 : f32
    %92 = vector.broadcast %cst_93 : f32 to vector<4x800xf32>
    %93 = arith.mulf %92, %89 : vector<4x800xf32>
    %94 = arith.select %91, %89, %93 : vector<4x800xi1>, vector<4x800xf32>
    %c0_94 = arith.constant 0 : index
    %c0_95 = arith.constant 0 : index
    %95 = vector.load %arg7[%c0_94, %c0_95] : memref<1x800xf32, #tpu.memory_space<vmem>>, vector<1x800xf32>
    %96 = vector.broadcast %95 : vector<1x800xf32> to vector<4x800xf32>
    %97 = arith.mulf %94, %96 : vector<4x800xf32>
    %cst_96 = arith.constant 0.000000e+00 : f32
    %98 = vector.broadcast %cst_96 : f32 to vector<4x111xf32>
    %c0_97 = arith.constant 0 : index
    %c0_98 = arith.constant 0 : index
    %99 = vector.load %arg10[%c0_97, %c0_98] : memref<4x1022xf32, #tpu.memory_space<vmem>>, vector<4x111xf32>
    tpu.vector_store %arg10[%c0_97, %c0_98], %98 {strides = array<i32>} : memref<4x1022xf32, #tpu.memory_space<vmem>>, vector<4x111xf32>,
    %c0_99 = arith.constant 0 : index
    %c111_100 = arith.constant 111 : index
    %100 = vector.load %arg10[%c0_99, %c111_100] : memref<4x1022xf32, #tpu.memory_space<vmem>>, vector<4x800xf32>
    tpu.vector_store %arg10[%c0_99, %c111_100], %97 {strides = array<i32>} : memref<4x1022xf32, #tpu.memory_space<vmem>>, vector<4x800xf32>,
    %cst_101 = arith.constant 0.000000e+00 : f32
    %101 = vector.broadcast %cst_101 : f32 to vector<4x111xf32>
    %c0_102 = arith.constant 0 : index
    %c911 = arith.constant 911 : index
    %102 = vector.load %arg10[%c0_102, %c911] : memref<4x1022xf32, #tpu.memory_space<vmem>>, vector<4x111xf32>
    tpu.vector_store %arg10[%c0_102, %c911], %101 {strides = array<i32>} : memref<4x1022xf32, #tpu.memory_space<vmem>>, vector<4x111xf32>,
    %c0_103 = arith.constant 0 : index
    %c0_104 = arith.constant 0 : index
    %103 = vector.load %arg10[%c0_103, %c0_104] : memref<4x1022xf32, #tpu.memory_space<vmem>>, vector<4x800xf32>
    %c0_105 = arith.constant 0 : index
    %c0_106 = arith.constant 0 : index
    %104 = vector.load %arg9[%c0_105, %c0_106] : memref<108x800xf32, #tpu.memory_space<vmem>>, vector<4x800xf32>
    tpu.vector_store %arg9[%c0_105, %c0_106], %103 {strides = array<i32>} : memref<108x800xf32, #tpu.memory_space<vmem>>, vector<4x800xf32>,
    %c0_107 = arith.constant 0 : index
    %c1_108 = arith.constant 1 : index
    %105 = vector.load %arg10[%c0_107, %c1_108] : memref<4x1022xf32, #tpu.memory_space<vmem>>, vector<4x800xf32>
    %c4_109 = arith.constant 4 : index
    %c0_110 = arith.constant 0 : index
    %106 = vector.load %arg9[%c4_109, %c0_110] : memref<108x800xf32, #tpu.memory_space<vmem>>, vector<4x800xf32>
    tpu.vector_store %arg9[%c4_109, %c0_110], %105 {strides = array<i32>} : memref<108x800xf32, #tpu.memory_space<vmem>>, vector<4x800xf32>,
    %c0_111 = arith.constant 0 : index
    %c2_112 = arith.constant 2 : index
    %107 = vector.load %arg10[%c0_111, %c2_112] : memref<4x1022xf32, #tpu.memory_space<vmem>>, vector<4x800xf32>
    %c8_113 = arith.constant 8 : index
    %c0_114 = arith.constant 0 : index
    %108 = vector.load %arg9[%c8_113, %c0_114] : memref<108x800xf32, #tpu.memory_space<vmem>>, vector<4x800xf32>
    tpu.vector_store %arg9[%c8_113, %c0_114], %107 {strides = array<i32>} : memref<108x800xf32, #tpu.memory_space<vmem>>, vector<4x800xf32>,
    %c0_115 = arith.constant 0 : index
    %c10_116 = arith.constant 10 : index
    %109 = vector.load %arg10[%c0_115, %c10_116] : memref<4x1022xf32, #tpu.memory_space<vmem>>, vector<4x800xf32>
    %c12_117 = arith.constant 12 : index
    %c0_118 = arith.constant 0 : index
    %110 = vector.load %arg9[%c12_117, %c0_118] : memref<108x800xf32, #tpu.memory_space<vmem>>, vector<4x800xf32>
    tpu.vector_store %arg9[%c12_117, %c0_118], %109 {strides = array<i32>} : memref<108x800xf32, #tpu.memory_space<vmem>>, vector<4x800xf32>,
    %c0_119 = arith.constant 0 : index
    %c11_120 = arith.constant 11 : index
    %111 = vector.load %arg10[%c0_119, %c11_120] : memref<4x1022xf32, #tpu.memory_space<vmem>>, vector<4x800xf32>
    %c16_121 = arith.constant 16 : index
    %c0_122 = arith.constant 0 : index
    %112 = vector.load %arg9[%c16_121, %c0_122] : memref<108x800xf32, #tpu.memory_space<vmem>>, vector<4x800xf32>
    tpu.vector_store %arg9[%c16_121, %c0_122], %111 {strides = array<i32>} : memref<108x800xf32, #tpu.memory_space<vmem>>, vector<4x800xf32>,
    %c0_123 = arith.constant 0 : index
    %c12_124 = arith.constant 12 : index
    %113 = vector.load %arg10[%c0_123, %c12_124] : memref<4x1022xf32, #tpu.memory_space<vmem>>, vector<4x800xf32>
    %c20_125 = arith.constant 20 : index
    %c0_126 = arith.constant 0 : index
    %114 = vector.load %arg9[%c20_125, %c0_126] : memref<108x800xf32, #tpu.memory_space<vmem>>, vector<4x800xf32>
    tpu.vector_store %arg9[%c20_125, %c0_126], %113 {strides = array<i32>} : memref<108x800xf32, #tpu.memory_space<vmem>>, vector<4x800xf32>,
    %c0_127 = arith.constant 0 : index
    %c20_128 = arith.constant 20 : index
    %115 = vector.load %arg10[%c0_127, %c20_128] : memref<4x1022xf32, #tpu.memory_space<vmem>>, vector<4x800xf32>
    %c24_129 = arith.constant 24 : index
    %c0_130 = arith.constant 0 : index
    %116 = vector.load %arg9[%c24_129, %c0_130] : memref<108x800xf32, #tpu.memory_space<vmem>>, vector<4x800xf32>
    tpu.vector_store %arg9[%c24_129, %c0_130], %115 {strides = array<i32>} : memref<108x800xf32, #tpu.memory_space<vmem>>, vector<4x800xf32>,
    %c0_131 = arith.constant 0 : index
    %c21_132 = arith.constant 21 : index
    %117 = vector.load %arg10[%c0_131, %c21_132] : memref<4x1022xf32, #tpu.memory_space<vmem>>, vector<4x800xf32>
    %c28_133 = arith.constant 28 : index
    %c0_134 = arith.constant 0 : index
    %118 = vector.load %arg9[%c28_133, %c0_134] : memref<108x800xf32, #tpu.memory_space<vmem>>, vector<4x800xf32>
    tpu.vector_store %arg9[%c28_133, %c0_134], %117 {strides = array<i32>} : memref<108x800xf32, #tpu.memory_space<vmem>>, vector<4x800xf32>,
    %c0_135 = arith.constant 0 : index
    %c22_136 = arith.constant 22 : index
    %119 = vector.load %arg10[%c0_135, %c22_136] : memref<4x1022xf32, #tpu.memory_space<vmem>>, vector<4x800xf32>
    %c32_137 = arith.constant 32 : index
    %c0_138 = arith.constant 0 : index
    %120 = vector.load %arg9[%c32_137, %c0_138] : memref<108x800xf32, #tpu.memory_space<vmem>>, vector<4x800xf32>
    tpu.vector_store %arg9[%c32_137, %c0_138], %119 {strides = array<i32>} : memref<108x800xf32, #tpu.memory_space<vmem>>, vector<4x800xf32>,
    %c0_139 = arith.constant 0 : index
    %c100_140 = arith.constant 100 : index
    %121 = vector.load %arg10[%c0_139, %c100_140] : memref<4x1022xf32, #tpu.memory_space<vmem>>, vector<4x800xf32>
    %c36_141 = arith.constant 36 : index
    %c0_142 = arith.constant 0 : index
    %122 = vector.load %arg9[%c36_141, %c0_142] : memref<108x800xf32, #tpu.memory_space<vmem>>, vector<4x800xf32>
    tpu.vector_store %arg9[%c36_141, %c0_142], %121 {strides = array<i32>} : memref<108x800xf32, #tpu.memory_space<vmem>>, vector<4x800xf32>,
    %c0_143 = arith.constant 0 : index
    %c101_144 = arith.constant 101 : index
    %123 = vector.load %arg10[%c0_143, %c101_144] : memref<4x1022xf32, #tpu.memory_space<vmem>>, vector<4x800xf32>
    %c40_145 = arith.constant 40 : index
    %c0_146 = arith.constant 0 : index
    %124 = vector.load %arg9[%c40_145, %c0_146] : memref<108x800xf32, #tpu.memory_space<vmem>>, vector<4x800xf32>
    tpu.vector_store %arg9[%c40_145, %c0_146], %123 {strides = array<i32>} : memref<108x800xf32, #tpu.memory_space<vmem>>, vector<4x800xf32>,
    %c0_147 = arith.constant 0 : index
    %c102_148 = arith.constant 102 : index
    %125 = vector.load %arg10[%c0_147, %c102_148] : memref<4x1022xf32, #tpu.memory_space<vmem>>, vector<4x800xf32>
    %c44_149 = arith.constant 44 : index
    %c0_150 = arith.constant 0 : index
    %126 = vector.load %arg9[%c44_149, %c0_150] : memref<108x800xf32, #tpu.memory_space<vmem>>, vector<4x800xf32>
    tpu.vector_store %arg9[%c44_149, %c0_150], %125 {strides = array<i32>} : memref<108x800xf32, #tpu.memory_space<vmem>>, vector<4x800xf32>,
    %c0_151 = arith.constant 0 : index
    %c110_152 = arith.constant 110 : index
    %127 = vector.load %arg10[%c0_151, %c110_152] : memref<4x1022xf32, #tpu.memory_space<vmem>>, vector<4x800xf32>
    %c48_153 = arith.constant 48 : index
    %c0_154 = arith.constant 0 : index
    %128 = vector.load %arg9[%c48_153, %c0_154] : memref<108x800xf32, #tpu.memory_space<vmem>>, vector<4x800xf32>
    tpu.vector_store %arg9[%c48_153, %c0_154], %127 {strides = array<i32>} : memref<108x800xf32, #tpu.memory_space<vmem>>, vector<4x800xf32>,
    %c0_155 = arith.constant 0 : index
    %c111_156 = arith.constant 111 : index
    %129 = vector.load %arg10[%c0_155, %c111_156] : memref<4x1022xf32, #tpu.memory_space<vmem>>, vector<4x800xf32>
    %c52_157 = arith.constant 52 : index
    %c0_158 = arith.constant 0 : index
    %130 = vector.load %arg9[%c52_157, %c0_158] : memref<108x800xf32, #tpu.memory_space<vmem>>, vector<4x800xf32>
    tpu.vector_store %arg9[%c52_157, %c0_158], %129 {strides = array<i32>} : memref<108x800xf32, #tpu.memory_space<vmem>>, vector<4x800xf32>,
    %c0_159 = arith.constant 0 : index
    %c112_160 = arith.constant 112 : index
    %131 = vector.load %arg10[%c0_159, %c112_160] : memref<4x1022xf32, #tpu.memory_space<vmem>>, vector<4x800xf32>
    %c56_161 = arith.constant 56 : index
    %c0_162 = arith.constant 0 : index
    %132 = vector.load %arg9[%c56_161, %c0_162] : memref<108x800xf32, #tpu.memory_space<vmem>>, vector<4x800xf32>
    tpu.vector_store %arg9[%c56_161, %c0_162], %131 {strides = array<i32>} : memref<108x800xf32, #tpu.memory_space<vmem>>, vector<4x800xf32>,
    %c0_163 = arith.constant 0 : index
    %c120_164 = arith.constant 120 : index
    %133 = vector.load %arg10[%c0_163, %c120_164] : memref<4x1022xf32, #tpu.memory_space<vmem>>, vector<4x800xf32>
    %c60_165 = arith.constant 60 : index
    %c0_166 = arith.constant 0 : index
    %134 = vector.load %arg9[%c60_165, %c0_166] : memref<108x800xf32, #tpu.memory_space<vmem>>, vector<4x800xf32>
    tpu.vector_store %arg9[%c60_165, %c0_166], %133 {strides = array<i32>} : memref<108x800xf32, #tpu.memory_space<vmem>>, vector<4x800xf32>,
    %c0_167 = arith.constant 0 : index
    %c121_168 = arith.constant 121 : index
    %135 = vector.load %arg10[%c0_167, %c121_168] : memref<4x1022xf32, #tpu.memory_space<vmem>>, vector<4x800xf32>
    %c64_169 = arith.constant 64 : index
    %c0_170 = arith.constant 0 : index
    %136 = vector.load %arg9[%c64_169, %c0_170] : memref<108x800xf32, #tpu.memory_space<vmem>>, vector<4x800xf32>
    tpu.vector_store %arg9[%c64_169, %c0_170], %135 {strides = array<i32>} : memref<108x800xf32, #tpu.memory_space<vmem>>, vector<4x800xf32>,
    %c0_171 = arith.constant 0 : index
    %c122_172 = arith.constant 122 : index
    %137 = vector.load %arg10[%c0_171, %c122_172] : memref<4x1022xf32, #tpu.memory_space<vmem>>, vector<4x800xf32>
    %c68_173 = arith.constant 68 : index
    %c0_174 = arith.constant 0 : index
    %138 = vector.load %arg9[%c68_173, %c0_174] : memref<108x800xf32, #tpu.memory_space<vmem>>, vector<4x800xf32>
    tpu.vector_store %arg9[%c68_173, %c0_174], %137 {strides = array<i32>} : memref<108x800xf32, #tpu.memory_space<vmem>>, vector<4x800xf32>,
    %c0_175 = arith.constant 0 : index
    %c200_176 = arith.constant 200 : index
    %139 = vector.load %arg10[%c0_175, %c200_176] : memref<4x1022xf32, #tpu.memory_space<vmem>>, vector<4x800xf32>
    %c72_177 = arith.constant 72 : index
    %c0_178 = arith.constant 0 : index
    %140 = vector.load %arg9[%c72_177, %c0_178] : memref<108x800xf32, #tpu.memory_space<vmem>>, vector<4x800xf32>
    tpu.vector_store %arg9[%c72_177, %c0_178], %139 {strides = array<i32>} : memref<108x800xf32, #tpu.memory_space<vmem>>, vector<4x800xf32>,
    %c0_179 = arith.constant 0 : index
    %c201_180 = arith.constant 201 : index
    %141 = vector.load %arg10[%c0_179, %c201_180] : memref<4x1022xf32, #tpu.memory_space<vmem>>, vector<4x800xf32>
    %c76_181 = arith.constant 76 : index
    %c0_182 = arith.constant 0 : index
    %142 = vector.load %arg9[%c76_181, %c0_182] : memref<108x800xf32, #tpu.memory_space<vmem>>, vector<4x800xf32>
    tpu.vector_store %arg9[%c76_181, %c0_182], %141 {strides = array<i32>} : memref<108x800xf32, #tpu.memory_space<vmem>>, vector<4x800xf32>,
    %c0_183 = arith.constant 0 : index
    %c202_184 = arith.constant 202 : index
    %143 = vector.load %arg10[%c0_183, %c202_184] : memref<4x1022xf32, #tpu.memory_space<vmem>>, vector<4x800xf32>
    %c80_185 = arith.constant 80 : index
    %c0_186 = arith.constant 0 : index
    %144 = vector.load %arg9[%c80_185, %c0_186] : memref<108x800xf32, #tpu.memory_space<vmem>>, vector<4x800xf32>
    tpu.vector_store %arg9[%c80_185, %c0_186], %143 {strides = array<i32>} : memref<108x800xf32, #tpu.memory_space<vmem>>, vector<4x800xf32>,
    %c0_187 = arith.constant 0 : index
    %c210_188 = arith.constant 210 : index
    %145 = vector.load %arg10[%c0_187, %c210_188] : memref<4x1022xf32, #tpu.memory_space<vmem>>, vector<4x800xf32>
    %c84_189 = arith.constant 84 : index
    %c0_190 = arith.constant 0 : index
    %146 = vector.load %arg9[%c84_189, %c0_190] : memref<108x800xf32, #tpu.memory_space<vmem>>, vector<4x800xf32>
    tpu.vector_store %arg9[%c84_189, %c0_190], %145 {strides = array<i32>} : memref<108x800xf32, #tpu.memory_space<vmem>>, vector<4x800xf32>,
    %c0_191 = arith.constant 0 : index
    %c211_192 = arith.constant 211 : index
    %147 = vector.load %arg10[%c0_191, %c211_192] : memref<4x1022xf32, #tpu.memory_space<vmem>>, vector<4x800xf32>
    %c88_193 = arith.constant 88 : index
    %c0_194 = arith.constant 0 : index
    %148 = vector.load %arg9[%c88_193, %c0_194] : memref<108x800xf32, #tpu.memory_space<vmem>>, vector<4x800xf32>
    tpu.vector_store %arg9[%c88_193, %c0_194], %147 {strides = array<i32>} : memref<108x800xf32, #tpu.memory_space<vmem>>, vector<4x800xf32>,
    %c0_195 = arith.constant 0 : index
    %c212_196 = arith.constant 212 : index
    %149 = vector.load %arg10[%c0_195, %c212_196] : memref<4x1022xf32, #tpu.memory_space<vmem>>, vector<4x800xf32>
    %c92_197 = arith.constant 92 : index
    %c0_198 = arith.constant 0 : index
    %150 = vector.load %arg9[%c92_197, %c0_198] : memref<108x800xf32, #tpu.memory_space<vmem>>, vector<4x800xf32>
    tpu.vector_store %arg9[%c92_197, %c0_198], %149 {strides = array<i32>} : memref<108x800xf32, #tpu.memory_space<vmem>>, vector<4x800xf32>,
    %c0_199 = arith.constant 0 : index
    %c220_200 = arith.constant 220 : index
    %151 = vector.load %arg10[%c0_199, %c220_200] : memref<4x1022xf32, #tpu.memory_space<vmem>>, vector<4x800xf32>
    %c96_201 = arith.constant 96 : index
    %c0_202 = arith.constant 0 : index
    %152 = vector.load %arg9[%c96_201, %c0_202] : memref<108x800xf32, #tpu.memory_space<vmem>>, vector<4x800xf32>
    tpu.vector_store %arg9[%c96_201, %c0_202], %151 {strides = array<i32>} : memref<108x800xf32, #tpu.memory_space<vmem>>, vector<4x800xf32>,
    %c0_203 = arith.constant 0 : index
    %c221_204 = arith.constant 221 : index
    %153 = vector.load %arg10[%c0_203, %c221_204] : memref<4x1022xf32, #tpu.memory_space<vmem>>, vector<4x800xf32>
    %c100_205 = arith.constant 100 : index
    %c0_206 = arith.constant 0 : index
    %154 = vector.load %arg9[%c100_205, %c0_206] : memref<108x800xf32, #tpu.memory_space<vmem>>, vector<4x800xf32>
    tpu.vector_store %arg9[%c100_205, %c0_206], %153 {strides = array<i32>} : memref<108x800xf32, #tpu.memory_space<vmem>>, vector<4x800xf32>,
    %c0_207 = arith.constant 0 : index
    %c222_208 = arith.constant 222 : index
    %155 = vector.load %arg10[%c0_207, %c222_208] : memref<4x1022xf32, #tpu.memory_space<vmem>>, vector<4x800xf32>
    %c104_209 = arith.constant 104 : index
    %c0_210 = arith.constant 0 : index
    %156 = vector.load %arg9[%c104_209, %c0_210] : memref<108x800xf32, #tpu.memory_space<vmem>>, vector<4x800xf32>
    tpu.vector_store %arg9[%c104_209, %c0_210], %155 {strides = array<i32>} : memref<108x800xf32, #tpu.memory_space<vmem>>, vector<4x800xf32>,
    %c0_211 = arith.constant 0 : index
    %c0_212 = arith.constant 0 : index
    %157 = vector.load %arg5[%c0_211, %c0_212] : memref<4x108xf32, #tpu.memory_space<vmem>>, vector<4x108xf32>
    %c0_213 = arith.constant 0 : index
    %c0_214 = arith.constant 0 : index
    %158 = vector.load %arg9[%c0_213, %c0_214] : memref<108x800xf32, #tpu.memory_space<vmem>>, vector<108x800xf32>
    %cst_215 = arith.constant dense<0.000000e+00> : vector<4x800xf32>
    %159 = tpu.matmul %157, %158, %cst_215 {dimension_numbers = #tpu.dot_dimension_numbers<[1], [0], [0], [1], [0, 0, 1, 1], [], []>} : vector<4x108xf32>, vector<108x800xf32>, vector<4x800xf32> -> vector<4x800xf32>
    %c0_216 = arith.constant 0 : index
    %c0_217 = arith.constant 0 : index
    %160 = vector.load %arg6[%c0_216, %c0_217] : memref<4x1xf32, #tpu.memory_space<vmem>>, vector<4x1xf32>
    %161 = vector.broadcast %160 : vector<4x1xf32> to vector<4x800xf32>
    %162 = arith.addf %159, %161 : vector<4x800xf32>
    %163 = vector.broadcast %0 : f32 to vector<4x800xf32>
    %164 = arith.mulf %163, %162 : vector<4x800xf32>
    %165 = arith.addf %164, %88 : vector<4x800xf32>
    %cst_218 = arith.constant 0.000000e+00 : f32
    %166 = vector.broadcast %cst_218 : f32 to vector<4x800xf32>
    %167 = arith.cmpf oge, %165, %166 : vector<4x800xf32>
    %cst_219 = arith.constant 0.00999999977 : f32
    %168 = vector.broadcast %cst_219 : f32 to vector<4x800xf32>
    %169 = arith.mulf %168, %165 : vector<4x800xf32>
    %170 = arith.select %167, %165, %169 : vector<4x800xi1>, vector<4x800xf32>
    %c0_220 = arith.constant 0 : index
    %c0_221 = arith.constant 0 : index
    %c0_222 = arith.constant 0 : index
    %171 = vector.load %arg8[%c0_220, %c0_221, %c0_222] : memref<1x4x800xf32, #tpu.memory_space<vmem>>, vector<1x4x800xf32>
    %172 = vector.shape_cast %171 : vector<1x4x800xf32> to vector<4x800xf32>
    %173 = vector.shape_cast %170 : vector<4x800xf32> to vector<1x4x800xf32>
    tpu.vector_store %arg8[%c0_220, %c0_221, %c0_222], %173 {strides = array<i32>} : memref<1x4x800xf32, #tpu.memory_space<vmem>>, vector<1x4x800xf32>,
    return
  }
  func.func @transform_0(%arg0: i32) -> i32 {
    %c0_i32 = arith.constant 0 : i32
    %c0_i32_0 = arith.constant 0 : i32
    return %c0_i32 : i32
  }
  func.func @transform_1(%arg0: i32) -> (i32, i32, i32) {
    %c0_i32 = arith.constant 0 : i32
    %c0_i32_0 = arith.constant 0 : i32
    %c0_i32_1 = arith.constant 0 : i32
    return %arg0, %c0_i32, %c0_i32_0 : i32, i32, i32
  }
  func.func @transform_2(%arg0: i32) -> (i32, i32) {
    %c0_i32 = arith.constant 0 : i32
    %c0_i32_0 = arith.constant 0 : i32
    %c0_i32_1 = arith.constant 0 : i32
    return %c0_i32, %c0_i32_0 : i32, i32
  }
  func.func @transform_3(%arg0: i32) -> (i32, i32) {
    %c0_i32 = arith.constant 0 : i32
    %c0_i32_0 = arith.constant 0 : i32
    %c0_i32_1 = arith.constant 0 : i32
    return %c0_i32, %c0_i32_0 : i32, i32
  }
  func.func @transform_4(%arg0: i32) -> (i32, i32) {
    %c0_i32 = arith.constant 0 : i32
    %c0_i32_0 = arith.constant 0 : i32
    %c0_i32_1 = arith.constant 0 : i32
    return %c0_i32, %c0_i32_0 : i32, i32
  }
  func.func @transform_5(%arg0: i32) -> (i32, i32) {
    %c0_i32 = arith.constant 0 : i32
    %c0_i32_0 = arith.constant 0 : i32
    %c0_i32_1 = arith.constant 0 : i32
    return %c0_i32, %c0_i32_0 : i32, i32
  }
  func.func @transform_6(%arg0: i32) -> (i32, i32) {
    %c0_i32 = arith.constant 0 : i32
    %c0_i32_0 = arith.constant 0 : i32
    %c0_i32_1 = arith.constant 0 : i32
    return %c0_i32, %c0_i32_0 : i32, i32
  }
  func.func @transform_7(%arg0: i32) -> (i32, i32, i32) {
    %c0_i32 = arith.constant 0 : i32
    %c0_i32_0 = arith.constant 0 : i32
    %c0_i32_1 = arith.constant 0 : i32
    return %arg0, %c0_i32, %c0_i32_0 : i32, i32, i32
  }
}

</mosaic_0001>

<llo_original>
// kernel: tpc_residual_block.1
$region0: #{tpc_residual_block.1}
  #allocation0 [shape = 'u32[]', space=smem, size = 0x4, offset = 0x4, fixed_abs, tag = 'smem constant byte address 0x4 - core index']
  #allocation1 [shape = 'u32[144,128]{1,0:T(1,128)}', space=vmem, size = 0x12000, scoped, tag = 'internal scratch']
  #allocation2 [shape = 'f32[108,800]{1,0:T(8,128)}', space=vmem, size = 0x62000, scoped, tag = 'scratch operand']
  #allocation3 [shape = 'f32[4,1022]{1,0:T(4,128)}', space=vmem, size = 0x4000, scoped, tag = 'scratch operand']
  #allocation4 [shape = 'f32[1]{0:T(128)S(6)}', space=smem, size = 0x200, scoped, tag = 'scoped memory for tpc_residual_block.1']
  %s0 = inlined_call_operand.<no memory space> [shape: f32[1], index: 0, kind: input, shape index: {}]
  %s1 = inlined_call_operand.vmem [shape: f32[2,4,1022], index: 1, kind: input, shape index: {}]
  %s2 = inlined_call_operand.vmem [shape: f32[8,108], index: 2, kind: input, shape index: {}]
  %s3 = inlined_call_operand.vmem [shape: f32[8,1], index: 3, kind: input, shape index: {}]
  %s4 = inlined_call_operand.vmem [shape: f32[4,108], index: 4, kind: input, shape index: {}]
  %s5 = inlined_call_operand.vmem [shape: f32[4,1], index: 5, kind: input, shape index: {}]
  %s6 = inlined_call_operand.vmem [shape: f32[1,800], index: 6, kind: input, shape index: {}]
  %s7 = inlined_call_operand.vmem [shape: f32[2,4,800], index: 7, kind: output, shape index: {}]
  %s8 = sld [smem:[#allocation0]]
  $region61: #{tpc_residual_block.1} parent=0
    _
  %s10 = ssub.s32 1, %s8
  %s11 = scalar_select 0, %s10, %s8
  %12 = sst [smem:[#allocation4]] %s0
  loop: start=0, step=1, limit=4
  $region2: #{tpc_residual_block.1} parent=0 // loop_pre_header
    _
  $region3: #{tpc_residual_block.1} parent=0 // loop_header
    %s14 = sphi 0, %s18
    %p15 = scmp.ge.s32.totalorder %s14, 4
    %s22 = sphi 0, %s22
    %s24 = sphi 0, %s22
    %s25 = sphi 0, %s24
    %s39 = sphi 0, %s25
    %s45 = sphi 0, %s47
    %s48 = sphi 0, %s45
    %s49 = sphi 0, %s48
    %s65 = sphi 0, %s49
    %s69 = sphi 0, %s69
    %s71 = sphi 0, %s69
    %s72 = sphi 0, %s71
    %s86 = sphi 0, %s72
    %s90 = sphi 0, %s90
    %s92 = sphi 0, %s90
    %s93 = sphi 0, %s92
    %s107 = sphi 0, %s93
    %s111 = sphi 0, %s111
    %s113 = sphi 0, %s111
    %s114 = sphi 0, %s113
    %s128 = sphi 0, %s114
    %s132 = sphi 0, %s132
    %s134 = sphi 0, %s132
    %s135 = sphi 0, %s134
    %s149 = sphi 0, %s135
    %s153 = sphi 0, %s153
    %s155 = sphi 0, %s153
    %s156 = sphi 0, %s155
    %s170 = sphi 0, %s156
    %s176 = sphi 0, %s178
    %s179 = sphi 0, %s176
    %s180 = sphi 0, %s179
    %s196 = sphi 0, %s180
  $region4: #{tpc_residual_block.1} parent=0 // loop_header_branch
    %17 = sbr.rel (%p15) target = $region8
  $region5: #{tpc_residual_block.1} parent=0 // loop_body
    %s19 = ssub.s32 %s14, 1
    %s20 = ssub.s32 %s14, 2
    %s21 = sadd.s32 %s14, 1
    %s23 = sadd.s32 %s22, 1
    %p26 = scmp.eq.s32.totalorder %s14, 1
    %p27 = scmp.ne.s32.totalorder %s22, %s24
    %p28 = scmp.eq.s32.totalorder %s14, 0
    %p29 = por %p27, %p28
    %p30 = scmp.ne.s32.totalorder %s22, %s24
    %p31 = scmp.eq.s32.totalorder %s19, 1
    %p32 = por %p30, %p31
    %p33 = scmp.ne.s32.totalorder %s24, %s25
    %p34 = scmp.eq.s32.totalorder %s19, 0
    %p35 = por %p33, %p34
    %p36 = scmp.ne.s32.totalorder %s24, %s25
    %p37 = scmp.eq.s32.totalorder %s20, 1
    %p38 = por %p36, %p37
    %p40 = scmp.ne.s32.totalorder %s25, %s39
    %p41 = scmp.eq.s32.totalorder %s20, 0
    %p42 = por %p40, %p41
    %s43 = ssub.s32 %s14, %s21
    %p44 = scmp.eq.s32.totalorder %s43, 0
    %s46 = sadd.s32 %s45, 1
    %s47 = scalar_select %p44, %s45, %s46
    %p50 = pneg %p44
    %p51 = scmp.eq.s32.totalorder %s14, 1
    %p52 = por %p50, %p51
    %p53 = scmp.ne.s32.totalorder %s45, %s48
    %p54 = scmp.eq.s32.totalorder %s14, 0
    %p55 = por %p53, %p54
    %p56 = scmp.ne.s32.totalorder %s45, %s48
    %p57 = scmp.eq.s32.totalorder %s19, 1
    %p58 = por %p56, %p57
    %p59 = scmp.ne.s32.totalorder %s48, %s49
    %p60 = scmp.eq.s32.totalorder %s19, 0
    %p61 = por %p59, %p60
    %p62 = scmp.ne.s32.totalorder %s48, %s49
    %p63 = scmp.eq.s32.totalorder %s20, 1
    %p64 = por %p62, %p63
    %p66 = scmp.ne.s32.totalorder %s49, %s65
    %p67 = scmp.eq.s32.totalorder %s20, 0
    %p68 = por %p66, %p67
    %s70 = sadd.s32 %s69, 1
    %p73 = scmp.eq.s32.totalorder %s14, 1
    %p74 = scmp.ne.s32.totalorder %s69, %s71
    %p75 = scmp.eq.s32.totalorder %s14, 0
    %p76 = por %p74, %p75
    %p77 = scmp.ne.s32.totalorder %s69, %s71
    %p78 = scmp.eq.s32.totalorder %s19, 1
    %p79 = por %p77, %p78
    %p80 = scmp.ne.s32.totalorder %s71, %s72
    %p81 = scmp.eq.s32.totalorder %s19, 0
    %p82 = por %p80, %p81
    %p83 = scmp.ne.s32.totalorder %s71, %s72
    %p84 = scmp.eq.s32.totalorder %s20, 1
    %p85 = por %p83, %p84
    %p87 = scmp.ne.s32.totalorder %s72, %s86
    %p88 = scmp.eq.s32.totalorder %s20, 0
    %p89 = por %p87, %p88
    %s91 = sadd.s32 %s90, 1
    %p94 = scmp.eq.s32.totalorder %s14, 1
    %p95 = scmp.ne.s32.totalorder %s90, %s92
    %p96 = scmp.eq.s32.totalorder %s14, 0
    %p97 = por %p95, %p96
    %p98 = scmp.ne.s32.totalorder %s90, %s92
    %p99 = scmp.eq.s32.totalorder %s19, 1
    %p100 = por %p98, %p99
    %p101 = scmp.ne.s32.totalorder %s92, %s93
    %p102 = scmp.eq.s32.totalorder %s19, 0
    %p103 = por %p101, %p102
    %p104 = scmp.ne.s32.totalorder %s92, %s93
    %p105 = scmp.eq.s32.totalorder %s20, 1
    %p106 = por %p104, %p105
    %p108 = scmp.ne.s32.totalorder %s93, %s107
    %p109 = scmp.eq.s32.totalorder %s20, 0
    %p110 = por %p108, %p109
    %s112 = sadd.s32 %s111, 1
    %p115 = scmp.eq.s32.totalorder %s14, 1
    %p116 = scmp.ne.s32.totalorder %s111, %s113
    %p117 = scmp.eq.s32.totalorder %s14, 0
    %p118 = por %p116, %p117
    %p119 = scmp.ne.s32.totalorder %s111, %s113
    %p120 = scmp.eq.s32.totalorder %s19, 1
    %p121 = por %p119, %p120
    %p122 = scmp.ne.s32.totalorder %s113, %s114
    %p123 = scmp.eq.s32.totalorder %s19, 0
    %p124 = por %p122, %p123
    %p125 = scmp.ne.s32.totalorder %s113, %s114
    %p126 = scmp.eq.s32.totalorder %s20, 1
    %p127 = por %p125, %p126
    %p129 = scmp.ne.s32.totalorder %s114, %s128
    %p130 = scmp.eq.s32.totalorder %s20, 0
    %p131 = por %p129, %p130
    %s133 = sadd.s32 %s132, 1
    %p136 = scmp.eq.s32.totalorder %s14, 1
    %p137 = scmp.ne.s32.totalorder %s132, %s134
    %p138 = scmp.eq.s32.totalorder %s14, 0
    %p139 = por %p137, %p138
    %p140 = scmp.ne.s32.totalorder %s132, %s134
    %p141 = scmp.eq.s32.totalorder %s19, 1
    %p142 = por %p140, %p141
    %p143 = scmp.ne.s32.totalorder %s134, %s135
    %p144 = scmp.eq.s32.totalorder %s19, 0
    %p145 = por %p143, %p144
    %p146 = scmp.ne.s32.totalorder %s134, %s135
    %p147 = scmp.eq.s32.totalorder %s20, 1
    %p148 = por %p146, %p147
    %p150 = scmp.ne.s32.totalorder %s135, %s149
    %p151 = scmp.eq.s32.totalorder %s20, 0
    %p152 = por %p150, %p151
    %s154 = sadd.s32 %s153, 1
    %p157 = scmp.eq.s32.totalorder %s14, 1
    %p158 = scmp.ne.s32.totalorder %s153, %s155
    %p159 = scmp.eq.s32.totalorder %s14, 0
    %p160 = por %p158, %p159
    %p161 = scmp.ne.s32.totalorder %s153, %s155
    %p162 = scmp.eq.s32.totalorder %s19, 1
    %p163 = por %p161, %p162
    %p164 = scmp.ne.s32.totalorder %s155, %s156
    %p165 = scmp.eq.s32.totalorder %s19, 0
    %p166 = por %p164, %p165
    %p167 = scmp.ne.s32.totalorder %s155, %s156
    %p168 = scmp.eq.s32.totalorder %s20, 1
    %p169 = por %p167, %p168
    %p171 = scmp.ne.s32.totalorder %s156, %s170
    %p172 = scmp.eq.s32.totalorder %s20, 0
    %p173 = por %p171, %p172
    %s174 = ssub.s32 %s14, %s21
    %p175 = scmp.eq.s32.totalorder %s174, 0
    %s177 = sadd.s32 %s176, 1
    %s178 = scalar_select %p175, %s176, %s177
    %p181 = pneg %p175
    %p182 = scmp.eq.s32.totalorder %s14, 1
    %p183 = por %p181, %p182
    %p184 = scmp.ne.s32.totalorder %s176, %s179
    %p185 = scmp.eq.s32.totalorder %s14, 0
    %p186 = por %p184, %p185
    %p187 = scmp.ne.s32.totalorder %s176, %s179
    %p188 = scmp.eq.s32.totalorder %s19, 1
    %p189 = por %p187, %p188
    %p190 = scmp.ne.s32.totalorder %s179, %s180
    %p191 = scmp.eq.s32.totalorder %s19, 0
    %p192 = por %p190, %p191
    %p193 = scmp.ne.s32.totalorder %s179, %s180
    %p194 = scmp.eq.s32.totalorder %s20, 1
    %p195 = por %p193, %p194
    %p197 = scmp.ne.s32.totalorder %s180, %s196
    %p198 = scmp.eq.s32.totalorder %s20, 0
    %p199 = por %p197, %p198
    %p200 = scmp.le.s32.totalorder 1, %s14
    %p201 = scmp.lt.s32.totalorder %s14, 3
    %p202 = pnand %p200, %p201
    %p203 = pneg %p202
    // Predicated region
    $region9: #{tpc_residual_block.1} parent=5 // pred_check
      _
    $region10: #{tpc_residual_block.1} parent=5 // pred_check_branch
      %205 = sbr.rel (%p202) target = $region12
    $region11: #{tpc_residual_block.1} parent=5 // pred_region
      %s206 = ssub.s32 %s14, 1
      // Predicated region
      $region13: #{tpc_residual_block.1} parent=11 // pred_check
        %p207 = pneg %p35
      $region14: #{tpc_residual_block.1} parent=11 // pred_check_branch
        %209 = sbr.rel (%p207) target = $region16
      $region15: #{tpc_residual_block.1} parent=11 // pred_region
        _
      $region16: #{tpc_residual_block.1} parent=11 // pred_fallthru
        _
      // Predicated region
      $region17: #{tpc_residual_block.1} parent=11 // pred_check
        %p210 = pneg %p82
      $region18: #{tpc_residual_block.1} parent=11 // pred_check_branch
        %212 = sbr.rel (%p210) target = $region20
      $region19: #{tpc_residual_block.1} parent=11 // pred_region
        _
      $region20: #{tpc_residual_block.1} parent=11 // pred_fallthru
        _
      // Predicated region
      $region21: #{tpc_residual_block.1} parent=11 // pred_check
        %p213 = pneg %p103
      $region22: #{tpc_residual_block.1} parent=11 // pred_check_branch
        %215 = sbr.rel (%p213) target = $region24
      $region23: #{tpc_residual_block.1} parent=11 // pred_region
        _
      $region24: #{tpc_residual_block.1} parent=11 // pred_fallthru
        _
      // Predicated region
      $region25: #{tpc_residual_block.1} parent=11 // pred_check
        %p216 = pneg %p124
      $region26: #{tpc_residual_block.1} parent=11 // pred_check_branch
        %218 = sbr.rel (%p216) target = $region28
      $region27: #{tpc_residual_block.1} parent=11 // pred_region
        _
      $region28: #{tpc_residual_block.1} parent=11 // pred_fallthru
        _
      // Predicated region
      $region29: #{tpc_residual_block.1} parent=11 // pred_check
        %p219 = pneg %p145
      $region30: #{tpc_residual_block.1} parent=11 // pred_check_branch
        %221 = sbr.rel (%p219) target = $region32
      $region31: #{tpc_residual_block.1} parent=11 // pred_region
        _
      $region32: #{tpc_residual_block.1} parent=11 // pred_fallthru
        _
      // Predicated region
      $region33: #{tpc_residual_block.1} parent=11 // pred_check
        %p222 = pneg %p166
      $region34: #{tpc_residual_block.1} parent=11 // pred_check_branch
        %224 = sbr.rel (%p222) target = $region36
      $region35: #{tpc_residual_block.1} parent=11 // pred_region
        _
      $region36: #{tpc_residual_block.1} parent=11 // pred_fallthru
        _
    $region12: #{tpc_residual_block.1} parent=5 // pred_fallthru
      _
    %p225 = scmp.lt.s32.totalorder %s14, 2
    // Predicated region
    $region37: #{tpc_residual_block.1} parent=5 // pred_check
      %p226 = pneg %p225
    $region38: #{tpc_residual_block.1} parent=5 // pred_check_branch
      %228 = sbr.rel (%p226) target = $region40
    $region39: #{tpc_residual_block.1} parent=5 // pred_region
      // Predicated region
      $region41: #{tpc_residual_block.1} parent=39 // pred_check
        %p229 = pneg %p55
      $region42: #{tpc_residual_block.1} parent=39 // pred_check_branch
        %231 = sbr.rel (%p229) target = $region44
      $region43: #{tpc_residual_block.1} parent=39 // pred_region
        %p232 = scmp.lt.s32.totalorder %s14, 1
        %s233 = scalar_select %p232, %s14, 1
        %s234 = smul.addr %s233, 8
        %s235 = smul.addr %s234, 4
        %s236 = scalar_lea.vmem %s1, %s235
      $region44: #{tpc_residual_block.1} parent=39 // pred_fallthru
        _
    $region40: #{tpc_residual_block.1} parent=5 // pred_fallthru
      _
    %p237 = scmp.le.s32.totalorder 1, %s14
    %p238 = scmp.lt.s32.totalorder %s14, 3
    %p239 = pnand %p237, %p238
    %p240 = pneg %p239
    // Predicated region
    $region45: #{tpc_residual_block.1} parent=5 // pred_check
      _
    $region46: #{tpc_residual_block.1} parent=5 // pred_check_branch
      %242 = sbr.rel (%p239) target = $region48
    $region47: #{tpc_residual_block.1} parent=5 // pred_region
      %s243 = ssub.s32 %s14, 1
      %p244 = pneg %p35
      %p245 = pneg %p32
      %p246 = scmp.lt.s32.totalorder %s19, 1
      %s247 = scalar_select %p246, %s19, 1
      %s248 = smul.addr %s247, 8
      %s249 = smul.addr %s248, 4
      %s250 = scalar_lea.vmem %s1, %s249
      %p251 = pneg %p61
      %p252 = pneg %p58
      %p253 = pneg %p82
      %p254 = pneg %p79
      %p255 = pneg %p103
      %p256 = pneg %p100
      %p257 = pneg %p124
      %p258 = pneg %p121
      %p259 = pneg %p145
      %p260 = pneg %p142
      %p261 = pneg %p166
      %p262 = pneg %p163
      %p263 = pneg %p192
      %p264 = pneg %p189
      %p265 = scmp.lt.s32.totalorder %s19, 1
      %s266 = scalar_select %p265, %s19, 1
      %s267 = smul.addr %s266, 7
      %s268 = smul.addr %s267, 4
      %s269 = scalar_lea.vmem %s7, %s268
      %p270 = scmp.lt.s32.totalorder %s19, 1
      %s271 = scalar_select %p270, %s19, 1
      %s272 = smul.addr %s271, 8
      %s273 = smul.addr %s272, 4
      %s274 = scalar_lea.vmem %s1, %s273
      %p275 = scmp.lt.s32.totalorder %s19, 1
      %s276 = scalar_select %p275, %s19, 1
      %s277 = smul.addr %s276, 7
      %s278 = smul.addr %s277, 4
      %s279 = scalar_lea.vmem %s7, %s278
      %s280 = sld [smem:[#allocation4]]
      %v281 = vld [vmem:[%s274] sm:$0xff]
      %v282 = vld [vmem:[%s274 + $0x8] sm:$0xff]
      %v283 = vld [vmem:[%s274 + $0x10] sm:$0xff]
      %v284 = vld [vmem:[%s274 + $0x18] sm:$0xf]
      %v288 = vcombine.high %v281, %v281
      %v289 = vcombine.high %v282, %v282
      %v290 = vcombine.high %v283, %v283
      %294 = vst [vmem:[#allocation2] sm:$0xf] %v281
      %295 = vst [vmem:[#allocation2 + $0x8] sm:$0xf] %v288
      %296 = vst [vmem:[#allocation2 + $0x10] sm:$0xf] %v282
      %297 = vst [vmem:[#allocation2 + $0x18] sm:$0xf] %v289
      %298 = vst [vmem:[#allocation2 + $0x20] sm:$0xf] %v283
      %299 = vst [vmem:[#allocation2 + $0x28] sm:$0xf] %v290
      %vm300 = vcmask 257024
      %301 = vst.msk [vmem:[#allocation2 + $0x30] sm:$0xf] %vm300, %v284
      %v302 = vld [vmem:[%s274] sm:$0xff]
      %v303 = vld [vmem:[%s274 + $0x8] sm:$0xff]
      %v304 = vld [vmem:[%s274 + $0x10] sm:$0xff]
      %v305 = vld [vmem:[%s274 + $0x18] sm:$0xf]
      %v310 = vcombine.low %v302, %v302
      %v311 = vcombine.low %v303, %v303
      %v312 = vcombine.low %v304, %v304
      %v313 = vcombine.low %v305, %v305
      %314 = vrot.lane.b32.xlu0 %v310, 127
      %v315 = vpop.permute.xlu0 %314
      %316 = vrot.lane.b32.xlu0 %v302, 127
      %v317 = vpop.permute.xlu0 %316
      %318 = vrot.lane.b32.xlu0 %v311, 127
      %v319 = vpop.permute.xlu0 %318
      %320 = vrot.lane.b32.xlu0 %v303, 127
      %v321 = vpop.permute.xlu0 %320
      %322 = vrot.lane.b32.xlu0 %v312, 127
      %v323 = vpop.permute.xlu0 %322
      %324 = vrot.lane.b32.xlu0 %v304, 127
      %v325 = vpop.permute.xlu0 %324
      %326 = vrot.lane.b32.xlu0 %v313, 127
      %v327 = vpop.permute.xlu0 %326
      %vm328 = vcmask 1039360
      %v329 = vsel %vm328, %v315, %v317
      %v330 = vsel %vm328, %v317, %v319
      %v331 = vsel %vm328, %v319, %v321
      %v332 = vsel %vm328, %v321, %v323
      %v333 = vsel %vm328, %v323, %v325
      %v334 = vsel %vm328, %v325, %v327
      %342 = vst [vmem:[#allocation2] sm:$0xf0] %v329
      %343 = vst [vmem:[#allocation2 + $0x8] sm:$0xf0] %v330
      %344 = vst [vmem:[#allocation2 + $0x10] sm:$0xf0] %v331
      %345 = vst [vmem:[#allocation2 + $0x18] sm:$0xf0] %v332
      %346 = vst [vmem:[#allocation2 + $0x20] sm:$0xf0] %v333
      %347 = vst [vmem:[#allocation2 + $0x28] sm:$0xf0] %v334
      %vm348 = vcmask 261124
      %349 = vst.msk [vmem:[#allocation2 + $0x30] sm:$0xf0] %vm348, %v327
      %v350 = vld [vmem:[%s274] sm:$0xff]
      %v351 = vld [vmem:[%s274 + $0x8] sm:$0xff]
      %v352 = vld [vmem:[%s274 + $0x10] sm:$0xff]
      %v353 = vld [vmem:[%s274 + $0x18] sm:$0xf]
      %v358 = vcombine.high %v350, %v350
      %v359 = vcombine.high %v351, %v351
      %v360 = vcombine.high %v352, %v352
      %361 = vrot.lane.b32.xlu0 %v350, 126
      %v362 = vpop.permute.xlu0 %361
      %363 = vrot.lane.b32.xlu0 %v358, 126
      %v364 = vpop.permute.xlu0 %363
      %365 = vrot.lane.b32.xlu0 %v351, 126
      %v366 = vpop.permute.xlu0 %365
      %367 = vrot.lane.b32.xlu0 %v359, 126
      %v368 = vpop.permute.xlu0 %367
      %369 = vrot.lane.b32.xlu0 %v352, 126
      %v370 = vpop.permute.xlu0 %369
      %371 = vrot.lane.b32.xlu0 %v360, 126
      %v372 = vpop.permute.xlu0 %371
      %373 = vrot.lane.b32.xlu0 %v353, 126
      %v374 = vpop.permute.xlu0 %373
      %vm375 = vcmask 1031168
      %v376 = vsel %vm375, %v362, %v364
      %v377 = vsel %vm375, %v364, %v366
      %v378 = vsel %vm375, %v366, %v368
      %v379 = vsel %vm375, %v368, %v370
      %v380 = vsel %vm375, %v370, %v372
      %v381 = vsel %vm375, %v372, %v374
      %389 = vst [vmem:[#allocation2 + $0x38] sm:$0xf] %v376
      %390 = vst [vmem:[#allocation2 + $0x40] sm:$0xf] %v377
      %391 = vst [vmem:[#allocation2 + $0x48] sm:$0xf] %v378
      %392 = vst [vmem:[#allocation2 + $0x50] sm:$0xf] %v379
      %393 = vst [vmem:[#allocation2 + $0x58] sm:$0xf] %v380
      %394 = vst [vmem:[#allocation2 + $0x60] sm:$0xf] %v381
      %395 = vst.msk [vmem:[#allocation2 + $0x68] sm:$0xf] %vm300, %v374
      %v396 = vld [vmem:[%s274] sm:$0xff]
      %v397 = vld [vmem:[%s274 + $0x8] sm:$0xff]
      %v398 = vld [vmem:[%s274 + $0x10] sm:$0xff]
      %v399 = vld [vmem:[%s274 + $0x18] sm:$0xf]
      %v404 = vcombine.low %v396, %v396
      %v405 = vcombine.low %v397, %v397
      %v406 = vcombine.low %v398, %v398
      %v407 = vcombine.low %v399, %v399
      %408 = vrot.lane.b32.xlu0 %v404, 118
      %v409 = vpop.permute.xlu0 %408
      %410 = vrot.lane.b32.xlu0 %v396, 118
      %v411 = vpop.permute.xlu0 %410
      %412 = vrot.lane.b32.xlu0 %v405, 118
      %v413 = vpop.permute.xlu0 %412
      %414 = vrot.lane.b32.xlu0 %v397, 118
      %v415 = vpop.permute.xlu0 %414
      %416 = vrot.lane.b32.xlu0 %v406, 118
      %v417 = vpop.permute.xlu0 %416
      %418 = vrot.lane.b32.xlu0 %v398, 118
      %v419 = vpop.permute.xlu0 %418
      %420 = vrot.lane.b32.xlu0 %v407, 118
      %v421 = vpop.permute.xlu0 %420
      %vm422 = vcmask 965632
      %v423 = vsel %vm422, %v409, %v411
      %v424 = vsel %vm422, %v411, %v413
      %v425 = vsel %vm422, %v413, %v415
      %v426 = vsel %vm422, %v415, %v417
      %v427 = vsel %vm422, %v417, %v419
      %v428 = vsel %vm422, %v419, %v421
      %436 = vst [vmem:[#allocation2 + $0x38] sm:$0xf0] %v423
      %437 = vst [vmem:[#allocation2 + $0x40] sm:$0xf0] %v424
      %438 = vst [vmem:[#allocation2 + $0x48] sm:$0xf0] %v425
      %439 = vst [vmem:[#allocation2 + $0x50] sm:$0xf0] %v426
      %440 = vst [vmem:[#allocation2 + $0x58] sm:$0xf0] %v427
      %441 = vst [vmem:[#allocation2 + $0x60] sm:$0xf0] %v428
      %442 = vst.msk [vmem:[#allocation2 + $0x68] sm:$0xf0] %vm348, %v421
      %v443 = vld [vmem:[%s274] sm:$0xff]
      %v444 = vld [vmem:[%s274 + $0x8] sm:$0xff]
      %v445 = vld [vmem:[%s274 + $0x10] sm:$0xff]
      %v446 = vld [vmem:[%s274 + $0x18] sm:$0xf]
      %v451 = vcombine.high %v443, %v443
      %v452 = vcombine.high %v444, %v444
      %v453 = vcombine.high %v445, %v445
      %454 = vrot.lane.b32.xlu0 %v443, 117
      %v455 = vpop.permute.xlu0 %454
      %456 = vrot.lane.b32.xlu0 %v451, 117
      %v457 = vpop.permute.xlu0 %456
      %458 = vrot.lane.b32.xlu0 %v444, 117
      %v459 = vpop.permute.xlu0 %458
      %460 = vrot.lane.b32.xlu0 %v452, 117
      %v461 = vpop.permute.xlu0 %460
      %462 = vrot.lane.b32.xlu0 %v445, 117
      %v463 = vpop.permute.xlu0 %462
      %464 = vrot.lane.b32.xlu0 %v453, 117
      %v465 = vpop.permute.xlu0 %464
      %466 = vrot.lane.b32.xlu0 %v446, 117
      %v467 = vpop.permute.xlu0 %466
      %vm468 = vcmask 957440
      %v469 = vsel %vm468, %v455, %v457
      %v470 = vsel %vm468, %v457, %v459
      %v471 = vsel %vm468, %v459, %v461
      %v472 = vsel %vm468, %v461, %v463
      %v473 = vsel %vm468, %v463, %v465
      %v474 = vsel %vm468, %v465, %v467
      %482 = vst [vmem:[#allocation2 + $0x70] sm:$0xf] %v469
      %483 = vst [vmem:[#allocation2 + $0x78] sm:$0xf] %v470
      %484 = vst [vmem:[#allocation2 + $0x80] sm:$0xf] %v471
      %485 = vst [vmem:[#allocation2 + $0x88] sm:$0xf] %v472
      %486 = vst [vmem:[#allocation2 + $0x90] sm:$0xf] %v473
      %487 = vst [vmem:[#allocation2 + $0x98] sm:$0xf] %v474
      %488 = vst.msk [vmem:[#allocation2 + $0xa0] sm:$0xf] %vm300, %v467
      %v489 = vld [vmem:[%s274] sm:$0xff]
      %v490 = vld [vmem:[%s274 + $0x8] sm:$0xff]
      %v491 = vld [vmem:[%s274 + $0x10] sm:$0xff]
      %v492 = vld [vmem:[%s274 + $0x18] sm:$0xf]
      %v497 = vcombine.low %v489, %v489
      %v498 = vcombine.low %v490, %v490
      %v499 = vcombine.low %v491, %v491
      %v500 = vcombine.low %v492, %v492
      %501 = vrot.lane.b32.xlu0 %v497, 116
      %v502 = vpop.permute.xlu0 %501
      %503 = vrot.lane.b32.xlu0 %v489, 116
      %v504 = vpop.permute.xlu0 %503
      %505 = vrot.lane.b32.xlu0 %v498, 116
      %v506 = vpop.permute.xlu0 %505
      %507 = vrot.lane.b32.xlu0 %v490, 116
      %v508 = vpop.permute.xlu0 %507
      %509 = vrot.lane.b32.xlu0 %v499, 116
      %v510 = vpop.permute.xlu0 %509
      %511 = vrot.lane.b32.xlu0 %v491, 116
      %v512 = vpop.permute.xlu0 %511
      %513 = vrot.lane.b32.xlu0 %v500, 116
      %v514 = vpop.permute.xlu0 %513
      %vm515 = vcmask 949248
      %v516 = vsel %vm515, %v502, %v504
      %v517 = vsel %vm515, %v504, %v506
      %v518 = vsel %vm515, %v506, %v508
      %v519 = vsel %vm515, %v508, %v510
      %v520 = vsel %vm515, %v510, %v512
      %v521 = vsel %vm515, %v512, %v514
      %529 = vst [vmem:[#allocation2 + $0x70] sm:$0xf0] %v516
      %530 = vst [vmem:[#allocation2 + $0x78] sm:$0xf0] %v517
      %531 = vst [vmem:[#allocation2 + $0x80] sm:$0xf0] %v518
      %532 = vst [vmem:[#allocation2 + $0x88] sm:$0xf0] %v519
      %533 = vst [vmem:[#allocation2 + $0x90] sm:$0xf0] %v520
      %534 = vst [vmem:[#allocation2 + $0x98] sm:$0xf0] %v521
      %535 = vst.msk [vmem:[#allocation2 + $0xa0] sm:$0xf0] %vm348, %v514
      %v536 = vld [vmem:[%s274] sm:$0xff]
      %v537 = vld [vmem:[%s274 + $0x8] sm:$0xff]
      %v538 = vld [vmem:[%s274 + $0x10] sm:$0xff]
      %v539 = vld [vmem:[%s274 + $0x18] sm:$0xf]
      %v544 = vcombine.high %v536, %v536
      %v545 = vcombine.high %v537, %v537
      %v546 = vcombine.high %v538, %v538
      %547 = vrot.lane.b32.xlu0 %v536, 108
      %v548 = vpop.permute.xlu0 %547
      %549 = vrot.lane.b32.xlu0 %v544, 108
      %v550 = vpop.permute.xlu0 %549
      %551 = vrot.lane.b32.xlu0 %v537, 108
      %v552 = vpop.permute.xlu0 %551
      %553 = vrot.lane.b32.xlu0 %v545, 108
      %v554 = vpop.permute.xlu0 %553
      %555 = vrot.lane.b32.xlu0 %v538, 108
      %v556 = vpop.permute.xlu0 %555
      %557 = vrot.lane.b32.xlu0 %v546, 108
      %v558 = vpop.permute.xlu0 %557
      %559 = vrot.lane.b32.xlu0 %v539, 108
      %v560 = vpop.permute.xlu0 %559
      %vm561 = vcmask 883712
      %v562 = vsel %vm561, %v548, %v550
      %v563 = vsel %vm561, %v550, %v552
      %v564 = vsel %vm561, %v552, %v554
      %v565 = vsel %vm561, %v554, %v556
      %v566 = vsel %vm561, %v556, %v558
      %v567 = vsel %vm561, %v558, %v560
      %575 = vst [vmem:[#allocation2 + $0xa8] sm:$0xf] %v562
      %576 = vst [vmem:[#allocation2 + $0xb0] sm:$0xf] %v563
      %577 = vst [vmem:[#allocation2 + $0xb8] sm:$0xf] %v564
      %578 = vst [vmem:[#allocation2 + $0xc0] sm:$0xf] %v565
      %579 = vst [vmem:[#allocation2 + $0xc8] sm:$0xf] %v566
      %580 = vst [vmem:[#allocation2 + $0xd0] sm:$0xf] %v567
      %581 = vst.msk [vmem:[#allocation2 + $0xd8] sm:$0xf] %vm300, %v560
      %v582 = vld [vmem:[%s274] sm:$0xff]
      %v583 = vld [vmem:[%s274 + $0x8] sm:$0xff]
      %v584 = vld [vmem:[%s274 + $0x10] sm:$0xff]
      %v585 = vld [vmem:[%s274 + $0x18] sm:$0xf]
      %v590 = vcombine.low %v582, %v582
      %v591 = vcombine.low %v583, %v583
      %v592 = vcombine.low %v584, %v584
      %v593 = vcombine.low %v585, %v585
      %594 = vrot.lane.b32.xlu0 %v590, 107
      %v595 = vpop.permute.xlu0 %594
      %596 = vrot.lane.b32.xlu0 %v582, 107
      %v597 = vpop.permute.xlu0 %596
      %598 = vrot.lane.b32.xlu0 %v591, 107
      %v599 = vpop.permute.xlu0 %598
      %600 = vrot.lane.b32.xlu0 %v583, 107
      %v601 = vpop.permute.xlu0 %600
      %602 = vrot.lane.b32.xlu0 %v592, 107
      %v603 = vpop.permute.xlu0 %602
      %604 = vrot.lane.b32.xlu0 %v584, 107
      %v605 = vpop.permute.xlu0 %604
      %606 = vrot.lane.b32.xlu0 %v593, 107
      %v607 = vpop.permute.xlu0 %606
      %vm608 = vcmask 875520
      %v609 = vsel %vm608, %v595, %v597
      %v610 = vsel %vm608, %v597, %v599
      %v611 = vsel %vm608, %v599, %v601
      %v612 = vsel %vm608, %v601, %v603
      %v613 = vsel %vm608, %v603, %v605
      %v614 = vsel %vm608, %v605, %v607
      %622 = vst [vmem:[#allocation2 + $0xa8] sm:$0xf0] %v609
      %623 = vst [vmem:[#allocation2 + $0xb0] sm:$0xf0] %v610
      %624 = vst [vmem:[#allocation2 + $0xb8] sm:$0xf0] %v611
      %625 = vst [vmem:[#allocation2 + $0xc0] sm:$0xf0] %v612
      %626 = vst [vmem:[#allocation2 + $0xc8] sm:$0xf0] %v613
      %627 = vst [vmem:[#allocation2 + $0xd0] sm:$0xf0] %v614
      %628 = vst.msk [vmem:[#allocation2 + $0xd8] sm:$0xf0] %vm348, %v607
      %v629 = vld [vmem:[%s274] sm:$0xff]
      %v630 = vld [vmem:[%s274 + $0x8] sm:$0xff]
      %v631 = vld [vmem:[%s274 + $0x10] sm:$0xff]
      %v632 = vld [vmem:[%s274 + $0x18] sm:$0xf]
      %v637 = vcombine.high %v629, %v629
      %v638 = vcombine.high %v630, %v630
      %v639 = vcombine.high %v631, %v631
      %640 = vrot.lane.b32.xlu0 %v629, 106
      %v641 = vpop.permute.xlu0 %640
      %642 = vrot.lane.b32.xlu0 %v637, 106
      %v643 = vpop.permute.xlu0 %642
      %644 = vrot.lane.b32.xlu0 %v630, 106
      %v645 = vpop.permute.xlu0 %644
      %646 = vrot.lane.b32.xlu0 %v638, 106
      %v647 = vpop.permute.xlu0 %646
      %648 = vrot.lane.b32.xlu0 %v631, 106
      %v649 = vpop.permute.xlu0 %648
      %650 = vrot.lane.b32.xlu0 %v639, 106
      %v651 = vpop.permute.xlu0 %650
      %652 = vrot.lane.b32.xlu0 %v632, 106
      %v653 = vpop.permute.xlu0 %652
      %vm654 = vcmask 867328
      %v655 = vsel %vm654, %v641, %v643
      %v656 = vsel %vm654, %v643, %v645
      %v657 = vsel %vm654, %v645, %v647
      %v658 = vsel %vm654, %v647, %v649
      %v659 = vsel %vm654, %v649, %v651
      %v660 = vsel %vm654, %v651, %v653
      %668 = vst [vmem:[#allocation2 + $0xe0] sm:$0xf] %v655
      %669 = vst [vmem:[#allocation2 + $0xe8] sm:$0xf] %v656
      %670 = vst [vmem:[#allocation2 + $0xf0] sm:$0xf] %v657
      %671 = vst [vmem:[#allocation2 + $0xf8] sm:$0xf] %v658
      %672 = vst [vmem:[#allocation2 + $0x100] sm:$0xf] %v659
      %673 = vst [vmem:[#allocation2 + $0x108] sm:$0xf] %v660
      %674 = vst.msk [vmem:[#allocation2 + $0x110] sm:$0xf] %vm300, %v653
      %v675 = vld [vmem:[%s274] sm:$0xff]
      %v676 = vld [vmem:[%s274 + $0x8] sm:$0xff]
      %v677 = vld [vmem:[%s274 + $0x10] sm:$0xff]
      %v678 = vld [vmem:[%s274 + $0x18] sm:$0xff]
      %v683 = vcombine.low %v675, %v675
      %v684 = vcombine.low %v676, %v676
      %v685 = vcombine.low %v677, %v677
      %v686 = vcombine.low %v678, %v678
      %687 = vrot.lane.b32.xlu0 %v683, 28
      %v688 = vpop.permute.xlu0 %687
      %689 = vrot.lane.b32.xlu0 %v675, 28
      %v690 = vpop.permute.xlu0 %689
      %691 = vrot.lane.b32.xlu0 %v684, 28
      %v692 = vpop.permute.xlu0 %691
      %693 = vrot.lane.b32.xlu0 %v676, 28
      %v694 = vpop.permute.xlu0 %693
      %695 = vrot.lane.b32.xlu0 %v685, 28
      %v696 = vpop.permute.xlu0 %695
      %697 = vrot.lane.b32.xlu0 %v677, 28
      %v698 = vpop.permute.xlu0 %697
      %699 = vrot.lane.b32.xlu0 %v686, 28
      %v700 = vpop.permute.xlu0 %699
      %701 = vrot.lane.b32.xlu0 %v678, 28
      %v702 = vpop.permute.xlu0 %701
      %vm703 = vcmask 228352
      %v704 = vsel %vm703, %v688, %v690
      %v705 = vsel %vm703, %v690, %v692
      %v706 = vsel %vm703, %v692, %v694
      %v707 = vsel %vm703, %v694, %v696
      %v708 = vsel %vm703, %v696, %v698
      %v709 = vsel %vm703, %v698, %v700
      %v710 = vsel %vm703, %v700, %v702
      %718 = vst [vmem:[#allocation2 + $0xe0] sm:$0xf0] %v704
      %719 = vst [vmem:[#allocation2 + $0xe8] sm:$0xf0] %v705
      %720 = vst [vmem:[#allocation2 + $0xf0] sm:$0xf0] %v706
      %721 = vst [vmem:[#allocation2 + $0xf8] sm:$0xf0] %v707
      %722 = vst [vmem:[#allocation2 + $0x100] sm:$0xf0] %v708
      %723 = vst [vmem:[#allocation2 + $0x108] sm:$0xf0] %v709
      %724 = vst.msk [vmem:[#allocation2 + $0x110] sm:$0xf0] %vm348, %v710
      %v725 = vld [vmem:[%s274] sm:$0xff]
      %v726 = vld [vmem:[%s274 + $0x8] sm:$0xff]
      %v727 = vld [vmem:[%s274 + $0x10] sm:$0xff]
      %v728 = vld [vmem:[%s274 + $0x18] sm:$0xff]
      %v733 = vcombine.high %v725, %v725
      %v734 = vcombine.high %v726, %v726
      %v735 = vcombine.high %v727, %v727
      %v736 = vcombine.high %v728, %v728
      %737 = vrot.lane.b32.xlu0 %v725, 27
      %v738 = vpop.permute.xlu0 %737
      %739 = vrot.lane.b32.xlu0 %v733, 27
      %v740 = vpop.permute.xlu0 %739
      %741 = vrot.lane.b32.xlu0 %v726, 27
      %v742 = vpop.permute.xlu0 %741
      %743 = vrot.lane.b32.xlu0 %v734, 27
      %v744 = vpop.permute.xlu0 %743
      %745 = vrot.lane.b32.xlu0 %v727, 27
      %v746 = vpop.permute.xlu0 %745
      %747 = vrot.lane.b32.xlu0 %v735, 27
      %v748 = vpop.permute.xlu0 %747
      %749 = vrot.lane.b32.xlu0 %v728, 27
      %v750 = vpop.permute.xlu0 %749
      %751 = vrot.lane.b32.xlu0 %v736, 27
      %v752 = vpop.permute.xlu0 %751
      %vm753 = vcmask 220160
      %v754 = vsel %vm753, %v738, %v740
      %v755 = vsel %vm753, %v740, %v742
      %v756 = vsel %vm753, %v742, %v744
      %v757 = vsel %vm753, %v744, %v746
      %v758 = vsel %vm753, %v746, %v748
      %v759 = vsel %vm753, %v748, %v750
      %v760 = vsel %vm753, %v750, %v752
      %768 = vst [vmem:[#allocation2 + $0x118] sm:$0xf] %v754
      %769 = vst [vmem:[#allocation2 + $0x120] sm:$0xf] %v755
      %770 = vst [vmem:[#allocation2 + $0x128] sm:$0xf] %v756
      %771 = vst [vmem:[#allocation2 + $0x130] sm:$0xf] %v757
      %772 = vst [vmem:[#allocation2 + $0x138] sm:$0xf] %v758
      %773 = vst [vmem:[#allocation2 + $0x140] sm:$0xf] %v759
      %774 = vst.msk [vmem:[#allocation2 + $0x148] sm:$0xf] %vm300, %v760
      %v775 = vld [vmem:[%s274] sm:$0xff]
      %v776 = vld [vmem:[%s274 + $0x8] sm:$0xff]
      %v777 = vld [vmem:[%s274 + $0x10] sm:$0xff]
      %v778 = vld [vmem:[%s274 + $0x18] sm:$0xff]
      %v783 = vcombine.low %v775, %v775
      %v784 = vcombine.low %v776, %v776
      %v785 = vcombine.low %v777, %v777
      %v786 = vcombine.low %v778, %v778
      %787 = vrot.lane.b32.xlu0 %v783, 26
      %v788 = vpop.permute.xlu0 %787
      %789 = vrot.lane.b32.xlu0 %v775, 26
      %v790 = vpop.permute.xlu0 %789
      %791 = vrot.lane.b32.xlu0 %v784, 26
      %v792 = vpop.permute.xlu0 %791
      %793 = vrot.lane.b32.xlu0 %v776, 26
      %v794 = vpop.permute.xlu0 %793
      %795 = vrot.lane.b32.xlu0 %v785, 26
      %v796 = vpop.permute.xlu0 %795
      %797 = vrot.lane.b32.xlu0 %v777, 26
      %v798 = vpop.permute.xlu0 %797
      %799 = vrot.lane.b32.xlu0 %v786, 26
      %v800 = vpop.permute.xlu0 %799
      %801 = vrot.lane.b32.xlu0 %v778, 26
      %v802 = vpop.permute.xlu0 %801
      %vm803 = vcmask 211968
      %v804 = vsel %vm803, %v788, %v790
      %v805 = vsel %vm803, %v790, %v792
      %v806 = vsel %vm803, %v792, %v794
      %v807 = vsel %vm803, %v794, %v796
      %v808 = vsel %vm803, %v796, %v798
      %v809 = vsel %vm803, %v798, %v800
      %v810 = vsel %vm803, %v800, %v802
      %818 = vst [vmem:[#allocation2 + $0x118] sm:$0xf0] %v804
      %819 = vst [vmem:[#allocation2 + $0x120] sm:$0xf0] %v805
      %820 = vst [vmem:[#allocation2 + $0x128] sm:$0xf0] %v806
      %821 = vst [vmem:[#allocation2 + $0x130] sm:$0xf0] %v807
      %822 = vst [vmem:[#allocation2 + $0x138] sm:$0xf0] %v808
      %823 = vst [vmem:[#allocation2 + $0x140] sm:$0xf0] %v809
      %824 = vst.msk [vmem:[#allocation2 + $0x148] sm:$0xf0] %vm348, %v810
      %v825 = vld [vmem:[%s274] sm:$0xff]
      %v826 = vld [vmem:[%s274 + $0x8] sm:$0xff]
      %v827 = vld [vmem:[%s274 + $0x10] sm:$0xff]
      %v828 = vld [vmem:[%s274 + $0x18] sm:$0xff]
      %v833 = vcombine.high %v825, %v825
      %v834 = vcombine.high %v826, %v826
      %v835 = vcombine.high %v827, %v827
      %v836 = vcombine.high %v828, %v828
      %837 = vrot.lane.b32.xlu0 %v825, 18
      %v838 = vpop.permute.xlu0 %837
      %839 = vrot.lane.b32.xlu0 %v833, 18
      %v840 = vpop.permute.xlu0 %839
      %841 = vrot.lane.b32.xlu0 %v826, 18
      %v842 = vpop.permute.xlu0 %841
      %843 = vrot.lane.b32.xlu0 %v834, 18
      %v844 = vpop.permute.xlu0 %843
      %845 = vrot.lane.b32.xlu0 %v827, 18
      %v846 = vpop.permute.xlu0 %845
      %847 = vrot.lane.b32.xlu0 %v835, 18
      %v848 = vpop.permute.xlu0 %847
      %849 = vrot.lane.b32.xlu0 %v828, 18
      %v850 = vpop.permute.xlu0 %849
      %851 = vrot.lane.b32.xlu0 %v836, 18
      %v852 = vpop.permute.xlu0 %851
      %vm853 = vcmask 146432
      %v854 = vsel %vm853, %v838, %v840
      %v855 = vsel %vm853, %v840, %v842
      %v856 = vsel %vm853, %v842, %v844
      %v857 = vsel %vm853, %v844, %v846
      %v858 = vsel %vm853, %v846, %v848
      %v859 = vsel %vm853, %v848, %v850
      %v860 = vsel %vm853, %v850, %v852
      %868 = vst [vmem:[#allocation2 + $0x150] sm:$0xf] %v854
      %869 = vst [vmem:[#allocation2 + $0x158] sm:$0xf] %v855
      %870 = vst [vmem:[#allocation2 + $0x160] sm:$0xf] %v856
      %871 = vst [vmem:[#allocation2 + $0x168] sm:$0xf] %v857
      %872 = vst [vmem:[#allocation2 + $0x170] sm:$0xf] %v858
      %873 = vst [vmem:[#allocation2 + $0x178] sm:$0xf] %v859
      %874 = vst.msk [vmem:[#allocation2 + $0x180] sm:$0xf] %vm300, %v860
      %v875 = vld [vmem:[%s274] sm:$0xff]
      %v876 = vld [vmem:[%s274 + $0x8] sm:$0xff]
      %v877 = vld [vmem:[%s274 + $0x10] sm:$0xff]
      %v878 = vld [vmem:[%s274 + $0x18] sm:$0xff]
      %v883 = vcombine.low %v875, %v875
      %v884 = vcombine.low %v876, %v876
      %v885 = vcombine.low %v877, %v877
      %v886 = vcombine.low %v878, %v878
      %887 = vrot.lane.b32.xlu0 %v883, 17
      %v888 = vpop.permute.xlu0 %887
      %889 = vrot.lane.b32.xlu0 %v875, 17
      %v890 = vpop.permute.xlu0 %889
      %891 = vrot.lane.b32.xlu0 %v884, 17
      %v892 = vpop.permute.xlu0 %891
      %893 = vrot.lane.b32.xlu0 %v876, 17
      %v894 = vpop.permute.xlu0 %893
      %895 = vrot.lane.b32.xlu0 %v885, 17
      %v896 = vpop.permute.xlu0 %895
      %897 = vrot.lane.b32.xlu0 %v877, 17
      %v898 = vpop.permute.xlu0 %897
      %899 = vrot.lane.b32.xlu0 %v886, 17
      %v900 = vpop.permute.xlu0 %899
      %901 = vrot.lane.b32.xlu0 %v878, 17
      %v902 = vpop.permute.xlu0 %901
      %vm903 = vcmask 138240
      %v904 = vsel %vm903, %v888, %v890
      %v905 = vsel %vm903, %v890, %v892
      %v906 = vsel %vm903, %v892, %v894
      %v907 = vsel %vm903, %v894, %v896
      %v908 = vsel %vm903, %v896, %v898
      %v909 = vsel %vm903, %v898, %v900
      %v910 = vsel %vm903, %v900, %v902
      %918 = vst [vmem:[#allocation2 + $0x150] sm:$0xf0] %v904
      %919 = vst [vmem:[#allocation2 + $0x158] sm:$0xf0] %v905
      %920 = vst [vmem:[#allocation2 + $0x160] sm:$0xf0] %v906
      %921 = vst [vmem:[#allocation2 + $0x168] sm:$0xf0] %v907
      %922 = vst [vmem:[#allocation2 + $0x170] sm:$0xf0] %v908
      %923 = vst [vmem:[#allocation2 + $0x178] sm:$0xf0] %v909
      %924 = vst.msk [vmem:[#allocation2 + $0x180] sm:$0xf0] %vm348, %v910
      %v925 = vld [vmem:[%s274] sm:$0xff]
      %v926 = vld [vmem:[%s274 + $0x8] sm:$0xff]
      %v927 = vld [vmem:[%s274 + $0x10] sm:$0xff]
      %v928 = vld [vmem:[%s274 + $0x18] sm:$0xff]
      %v933 = vcombine.high %v925, %v925
      %v934 = vcombine.high %v926, %v926
      %v935 = vcombine.high %v927, %v927
      %v936 = vcombine.high %v928, %v928
      %937 = vrot.lane.b32.xlu0 %v925, 16
      %v938 = vpop.permute.xlu0 %937
      %939 = vrot.lane.b32.xlu0 %v933, 16
      %v940 = vpop.permute.xlu0 %939
      %941 = vrot.lane.b32.xlu0 %v926, 16
      %v942 = vpop.permute.xlu0 %941
      %943 = vrot.lane.b32.xlu0 %v934, 16
      %v944 = vpop.permute.xlu0 %943
      %945 = vrot.lane.b32.xlu0 %v927, 16
      %v946 = vpop.permute.xlu0 %945
      %947 = vrot.lane.b32.xlu0 %v935, 16
      %v948 = vpop.permute.xlu0 %947
      %949 = vrot.lane.b32.xlu0 %v928, 16
      %v950 = vpop.permute.xlu0 %949
      %951 = vrot.lane.b32.xlu0 %v936, 16
      %v952 = vpop.permute.xlu0 %951
      %vm953 = vcmask 130048
      %v954 = vsel %vm953, %v938, %v940
      %v955 = vsel %vm953, %v940, %v942
      %v956 = vsel %vm953, %v942, %v944
      %v957 = vsel %vm953, %v944, %v946
      %v958 = vsel %vm953, %v946, %v948
      %v959 = vsel %vm953, %v948, %v950
      %v960 = vsel %vm953, %v950, %v952
      %968 = vst [vmem:[#allocation2 + $0x188] sm:$0xf] %v954
      %969 = vst [vmem:[#allocation2 + $0x190] sm:$0xf] %v955
      %970 = vst [vmem:[#allocation2 + $0x198] sm:$0xf] %v956
      %971 = vst [vmem:[#allocation2 + $0x1a0] sm:$0xf] %v957
      %972 = vst [vmem:[#allocation2 + $0x1a8] sm:$0xf] %v958
      %973 = vst [vmem:[#allocation2 + $0x1b0] sm:$0xf] %v959
      %974 = vst.msk [vmem:[#allocation2 + $0x1b8] sm:$0xf] %vm300, %v960
      %v975 = vld [vmem:[%s274] sm:$0xff]
      %v976 = vld [vmem:[%s274 + $0x8] sm:$0xff]
      %v977 = vld [vmem:[%s274 + $0x10] sm:$0xff]
      %v978 = vld [vmem:[%s274 + $0x18] sm:$0xff]
      %v983 = vcombine.low %v975, %v975
      %v984 = vcombine.low %v976, %v976
      %v985 = vcombine.low %v977, %v977
      %v986 = vcombine.low %v978, %v978
      %987 = vrot.lane.b32.xlu0 %v983, 8
      %v988 = vpop.permute.xlu0 %987
      %989 = vrot.lane.b32.xlu0 %v975, 8
      %v990 = vpop.permute.xlu0 %989
      %991 = vrot.lane.b32.xlu0 %v984, 8
      %v992 = vpop.permute.xlu0 %991
      %993 = vrot.lane.b32.xlu0 %v976, 8
      %v994 = vpop.permute.xlu0 %993
      %995 = vrot.lane.b32.xlu0 %v985, 8
      %v996 = vpop.permute.xlu0 %995
      %997 = vrot.lane.b32.xlu0 %v977, 8
      %v998 = vpop.permute.xlu0 %997
      %999 = vrot.lane.b32.xlu0 %v986, 8
      %v1000 = vpop.permute.xlu0 %999
      %1001 = vrot.lane.b32.xlu0 %v978, 8
      %v1002 = vpop.permute.xlu0 %1001
      %vm1003 = vcmask 64512
      %v1004 = vsel %vm1003, %v988, %v990
      %v1005 = vsel %vm1003, %v990, %v992
      %v1006 = vsel %vm1003, %v992, %v994
      %v1007 = vsel %vm1003, %v994, %v996
      %v1008 = vsel %vm1003, %v996, %v998
      %v1009 = vsel %vm1003, %v998, %v1000
      %v1010 = vsel %vm1003, %v1000, %v1002
      %1018 = vst [vmem:[#allocation2 + $0x188] sm:$0xf0] %v1004
      %1019 = vst [vmem:[#allocation2 + $0x190] sm:$0xf0] %v1005
      %1020 = vst [vmem:[#allocation2 + $0x198] sm:$0xf0] %v1006
      %1021 = vst [vmem:[#allocation2 + $0x1a0] sm:$0xf0] %v1007
      %1022 = vst [vmem:[#allocation2 + $0x1a8] sm:$0xf0] %v1008
      %1023 = vst [vmem:[#allocation2 + $0x1b0] sm:$0xf0] %v1009
      %1024 = vst.msk [vmem:[#allocation2 + $0x1b8] sm:$0xf0] %vm348, %v1010
      %v1025 = vld [vmem:[%s274] sm:$0xff]
      %v1026 = vld [vmem:[%s274 + $0x8] sm:$0xff]
      %v1027 = vld [vmem:[%s274 + $0x10] sm:$0xff]
      %v1028 = vld [vmem:[%s274 + $0x18] sm:$0xff]
      %v1033 = vcombine.high %v1025, %v1025
      %v1034 = vcombine.high %v1026, %v1026
      %v1035 = vcombine.high %v1027, %v1027
      %v1036 = vcombine.high %v1028, %v1028
      %1037 = vrot.lane.b32.xlu0 %v1025, 7
      %v1038 = vpop.permute.xlu0 %1037
      %1039 = vrot.lane.b32.xlu0 %v1033, 7
      %v1040 = vpop.permute.xlu0 %1039
      %1041 = vrot.lane.b32.xlu0 %v1026, 7
      %v1042 = vpop.permute.xlu0 %1041
      %1043 = vrot.lane.b32.xlu0 %v1034, 7
      %v1044 = vpop.permute.xlu0 %1043
      %1045 = vrot.lane.b32.xlu0 %v1027, 7
      %v1046 = vpop.permute.xlu0 %1045
      %1047 = vrot.lane.b32.xlu0 %v1035, 7
      %v1048 = vpop.permute.xlu0 %1047
      %1049 = vrot.lane.b32.xlu0 %v1028, 7
      %v1050 = vpop.permute.xlu0 %1049
      %1051 = vrot.lane.b32.xlu0 %v1036, 7
      %v1052 = vpop.permute.xlu0 %1051
      %vm1053 = vcmask 56320
      %v1054 = vsel %vm1053, %v1038, %v1040
      %v1055 = vsel %vm1053, %v1040, %v1042
      %v1056 = vsel %vm1053, %v1042, %v1044
      %v1057 = vsel %vm1053, %v1044, %v1046
      %v1058 = vsel %vm1053, %v1046, %v1048
      %v1059 = vsel %vm1053, %v1048, %v1050
      %v1060 = vsel %vm1053, %v1050, %v1052
      %1068 = vst [vmem:[#allocation2 + $0x1c0] sm:$0xf] %v1054
      %1069 = vst [vmem:[#allocation2 + $0x1c8] sm:$0xf] %v1055
      %1070 = vst [vmem:[#allocation2 + $0x1d0] sm:$0xf] %v1056
      %1071 = vst [vmem:[#allocation2 + $0x1d8] sm:$0xf] %v1057
      %1072 = vst [vmem:[#allocation2 + $0x1e0] sm:$0xf] %v1058
      %1073 = vst [vmem:[#allocation2 + $0x1e8] sm:$0xf] %v1059
      %1074 = vst.msk [vmem:[#allocation2 + $0x1f0] sm:$0xf] %vm300, %v1060
      %v1075 = vld [vmem:[%s274] sm:$0xff]
      %v1076 = vld [vmem:[%s274 + $0x8] sm:$0xff]
      %v1077 = vld [vmem:[%s274 + $0x10] sm:$0xff]
      %v1078 = vld [vmem:[%s274 + $0x18] sm:$0xff]
      %v1083 = vcombine.low %v1075, %v1075
      %v1084 = vcombine.low %v1076, %v1076
      %v1085 = vcombine.low %v1077, %v1077
      %v1086 = vcombine.low %v1078, %v1078
      %1087 = vrot.lane.b32.xlu0 %v1083, 6
      %v1088 = vpop.permute.xlu0 %1087
      %1089 = vrot.lane.b32.xlu0 %v1075, 6
      %v1090 = vpop.permute.xlu0 %1089
      %1091 = vrot.lane.b32.xlu0 %v1084, 6
      %v1092 = vpop.permute.xlu0 %1091
      %1093 = vrot.lane.b32.xlu0 %v1076, 6
      %v1094 = vpop.permute.xlu0 %1093
      %1095 = vrot.lane.b32.xlu0 %v1085, 6
      %v1096 = vpop.permute.xlu0 %1095
      %1097 = vrot.lane.b32.xlu0 %v1077, 6
      %v1098 = vpop.permute.xlu0 %1097
      %1099 = vrot.lane.b32.xlu0 %v1086, 6
      %v1100 = vpop.permute.xlu0 %1099
      %1101 = vrot.lane.b32.xlu0 %v1078, 6
      %v1102 = vpop.permute.xlu0 %1101
      %vm1103 = vcmask 48128
      %v1104 = vsel %vm1103, %v1088, %v1090
      %v1105 = vsel %vm1103, %v1090, %v1092
      %v1106 = vsel %vm1103, %v1092, %v1094
      %v1107 = vsel %vm1103, %v1094, %v1096
      %v1108 = vsel %vm1103, %v1096, %v1098
      %v1109 = vsel %vm1103, %v1098, %v1100
      %v1110 = vsel %vm1103, %v1100, %v1102
      %1118 = vst [vmem:[#allocation2 + $0x1c0] sm:$0xf0] %v1104
      %1119 = vst [vmem:[#allocation2 + $0x1c8] sm:$0xf0] %v1105
      %1120 = vst [vmem:[#allocation2 + $0x1d0] sm:$0xf0] %v1106
      %1121 = vst [vmem:[#allocation2 + $0x1d8] sm:$0xf0] %v1107
      %1122 = vst [vmem:[#allocation2 + $0x1e0] sm:$0xf0] %v1108
      %1123 = vst [vmem:[#allocation2 + $0x1e8] sm:$0xf0] %v1109
      %1124 = vst.msk [vmem:[#allocation2 + $0x1f0] sm:$0xf0] %vm348, %v1110
      %v1125 = vld [vmem:[%s274 + $0x4] sm:$0xff]
      %v1126 = vld [vmem:[%s274 + $0xc] sm:$0xff]
      %v1127 = vld [vmem:[%s274 + $0x14] sm:$0xff]
      %v1128 = vld [vmem:[%s274 + $0x1c] sm:$0xf]
      %v1133 = vcombine.high %v1125, %v1125
      %v1134 = vcombine.high %v1126, %v1126
      %v1135 = vcombine.high %v1127, %v1127
      %1136 = vrot.lane.b32.xlu0 %v1125, 56
      %v1137 = vpop.permute.xlu0 %1136
      %1138 = vrot.lane.b32.xlu0 %v1133, 56
      %v1139 = vpop.permute.xlu0 %1138
      %1140 = vrot.lane.b32.xlu0 %v1126, 56
      %v1141 = vpop.permute.xlu0 %1140
      %1142 = vrot.lane.b32.xlu0 %v1134, 56
      %v1143 = vpop.permute.xlu0 %1142
      %1144 = vrot.lane.b32.xlu0 %v1127, 56
      %v1145 = vpop.permute.xlu0 %1144
      %1146 = vrot.lane.b32.xlu0 %v1135, 56
      %v1147 = vpop.permute.xlu0 %1146
      %1148 = vrot.lane.b32.xlu0 %v1128, 56
      %v1149 = vpop.permute.xlu0 %1148
      %vm1150 = vcmask 457728
      %v1151 = vsel %vm1150, %v1137, %v1139
      %v1152 = vsel %vm1150, %v1139, %v1141
      %v1153 = vsel %vm1150, %v1141, %v1143
      %v1154 = vsel %vm1150, %v1143, %v1145
      %v1155 = vsel %vm1150, %v1145, %v1147
      %v1156 = vsel %vm1150, %v1147, %v1149
      %1164 = vst [vmem:[#allocation2 + $0x1f8] sm:$0xf] %v1151
      %1165 = vst [vmem:[#allocation2 + $0x200] sm:$0xf] %v1152
      %1166 = vst [vmem:[#allocation2 + $0x208] sm:$0xf] %v1153
      %1167 = vst [vmem:[#allocation2 + $0x210] sm:$0xf] %v1154
      %1168 = vst [vmem:[#allocation2 + $0x218] sm:$0xf] %v1155
      %1169 = vst [vmem:[#allocation2 + $0x220] sm:$0xf] %v1156
      %1170 = vst.msk [vmem:[#allocation2 + $0x228] sm:$0xf] %vm300, %v1149
      %v1171 = vld [vmem:[%s274 + $0x4] sm:$0xff]
      %v1172 = vld [vmem:[%s274 + $0xc] sm:$0xff]
      %v1173 = vld [vmem:[%s274 + $0x14] sm:$0xff]
      %v1174 = vld [vmem:[%s274 + $0x1c] sm:$0xf]
      %v1179 = vcombine.low %v1171, %v1171
      %v1180 = vcombine.low %v1172, %v1172
      %v1181 = vcombine.low %v1173, %v1173
      %v1182 = vcombine.low %v1174, %v1174
      %1183 = vrot.lane.b32.xlu0 %v1179, 55
      %v1184 = vpop.permute.xlu0 %1183
      %1185 = vrot.lane.b32.xlu0 %v1171, 55
      %v1186 = vpop.permute.xlu0 %1185
      %1187 = vrot.lane.b32.xlu0 %v1180, 55
      %v1188 = vpop.permute.xlu0 %1187
      %1189 = vrot.lane.b32.xlu0 %v1172, 55
      %v1190 = vpop.permute.xlu0 %1189
      %1191 = vrot.lane.b32.xlu0 %v1181, 55
      %v1192 = vpop.permute.xlu0 %1191
      %1193 = vrot.lane.b32.xlu0 %v1173, 55
      %v1194 = vpop.permute.xlu0 %1193
      %1195 = vrot.lane.b32.xlu0 %v1182, 55
      %v1196 = vpop.permute.xlu0 %1195
      %vm1197 = vcmask 449536
      %v1198 = vsel %vm1197, %v1184, %v1186
      %v1199 = vsel %vm1197, %v1186, %v1188
      %v1200 = vsel %vm1197, %v1188, %v1190
      %v1201 = vsel %vm1197, %v1190, %v1192
      %v1202 = vsel %vm1197, %v1192, %v1194
      %v1203 = vsel %vm1197, %v1194, %v1196
      %1211 = vst [vmem:[#allocation2 + $0x1f8] sm:$0xf0] %v1198
      %1212 = vst [vmem:[#allocation2 + $0x200] sm:$0xf0] %v1199
      %1213 = vst [vmem:[#allocation2 + $0x208] sm:$0xf0] %v1200
      %1214 = vst [vmem:[#allocation2 + $0x210] sm:$0xf0] %v1201
      %1215 = vst [vmem:[#allocation2 + $0x218] sm:$0xf0] %v1202
      %1216 = vst [vmem:[#allocation2 + $0x220] sm:$0xf0] %v1203
      %1217 = vst.msk [vmem:[#allocation2 + $0x228] sm:$0xf0] %vm348, %v1196
      %v1218 = vld [vmem:[%s274 + $0x4] sm:$0xff]
      %v1219 = vld [vmem:[%s274 + $0xc] sm:$0xff]
      %v1220 = vld [vmem:[%s274 + $0x14] sm:$0xff]
      %v1221 = vld [vmem:[%s274 + $0x1c] sm:$0xf]
      %v1226 = vcombine.high %v1218, %v1218
      %v1227 = vcombine.high %v1219, %v1219
      %v1228 = vcombine.high %v1220, %v1220
      %1229 = vrot.lane.b32.xlu0 %v1218, 54
      %v1230 = vpop.permute.xlu0 %1229
      %1231 = vrot.lane.b32.xlu0 %v1226, 54
      %v1232 = vpop.permute.xlu0 %1231
      %1233 = vrot.lane.b32.xlu0 %v1219, 54
      %v1234 = vpop.permute.xlu0 %1233
      %1235 = vrot.lane.b32.xlu0 %v1227, 54
      %v1236 = vpop.permute.xlu0 %1235
      %1237 = vrot.lane.b32.xlu0 %v1220, 54
      %v1238 = vpop.permute.xlu0 %1237
      %1239 = vrot.lane.b32.xlu0 %v1228, 54
      %v1240 = vpop.permute.xlu0 %1239
      %1241 = vrot.lane.b32.xlu0 %v1221, 54
      %v1242 = vpop.permute.xlu0 %1241
      %vm1243 = vcmask 441344
      %v1244 = vsel %vm1243, %v1230, %v1232
      %v1245 = vsel %vm1243, %v1232, %v1234
      %v1246 = vsel %vm1243, %v1234, %v1236
      %v1247 = vsel %vm1243, %v1236, %v1238
      %v1248 = vsel %vm1243, %v1238, %v1240
      %v1249 = vsel %vm1243, %v1240, %v1242
      %1257 = vst [vmem:[#allocation2 + $0x230] sm:$0xf] %v1244
      %1258 = vst [vmem:[#allocation2 + $0x238] sm:$0xf] %v1245
      %1259 = vst [vmem:[#allocation2 + $0x240] sm:$0xf] %v1246
      %1260 = vst [vmem:[#allocation2 + $0x248] sm:$0xf] %v1247
      %1261 = vst [vmem:[#allocation2 + $0x250] sm:$0xf] %v1248
      %1262 = vst [vmem:[#allocation2 + $0x258] sm:$0xf] %v1249
      %1263 = vst.msk [vmem:[#allocation2 + $0x260] sm:$0xf] %vm300, %v1242
      %v1264 = vld [vmem:[%s274 + $0x4] sm:$0xff]
      %v1265 = vld [vmem:[%s274 + $0xc] sm:$0xff]
      %v1266 = vld [vmem:[%s274 + $0x14] sm:$0xff]
      %v1267 = vld [vmem:[%s274 + $0x1c] sm:$0xf]
      %v1272 = vcombine.low %v1264, %v1264
      %v1273 = vcombine.low %v1265, %v1265
      %v1274 = vcombine.low %v1266, %v1266
      %v1275 = vcombine.low %v1267, %v1267
      %1276 = vrot.lane.b32.xlu0 %v1272, 46
      %v1277 = vpop.permute.xlu0 %1276
      %1278 = vrot.lane.b32.xlu0 %v1264, 46
      %v1279 = vpop.permute.xlu0 %1278
      %1280 = vrot.lane.b32.xlu0 %v1273, 46
      %v1281 = vpop.permute.xlu0 %1280
      %1282 = vrot.lane.b32.xlu0 %v1265, 46
      %v1283 = vpop.permute.xlu0 %1282
      %1284 = vrot.lane.b32.xlu0 %v1274, 46
      %v1285 = vpop.permute.xlu0 %1284
      %1286 = vrot.lane.b32.xlu0 %v1266, 46
      %v1287 = vpop.permute.xlu0 %1286
      %1288 = vrot.lane.b32.xlu0 %v1275, 46
      %v1289 = vpop.permute.xlu0 %1288
      %vm1290 = vcmask 375808
      %v1291 = vsel %vm1290, %v1277, %v1279
      %v1292 = vsel %vm1290, %v1279, %v1281
      %v1293 = vsel %vm1290, %v1281, %v1283
      %v1294 = vsel %vm1290, %v1283, %v1285
      %v1295 = vsel %vm1290, %v1285, %v1287
      %v1296 = vsel %vm1290, %v1287, %v1289
      %1304 = vst [vmem:[#allocation2 + $0x230] sm:$0xf0] %v1291
      %1305 = vst [vmem:[#allocation2 + $0x238] sm:$0xf0] %v1292
      %1306 = vst [vmem:[#allocation2 + $0x240] sm:$0xf0] %v1293
      %1307 = vst [vmem:[#allocation2 + $0x248] sm:$0xf0] %v1294
      %1308 = vst [vmem:[#allocation2 + $0x250] sm:$0xf0] %v1295
      %1309 = vst [vmem:[#allocation2 + $0x258] sm:$0xf0] %v1296
      %1310 = vst.msk [vmem:[#allocation2 + $0x260] sm:$0xf0] %vm348, %v1289
      %v1311 = vld [vmem:[%s274 + $0x4] sm:$0xff]
      %v1312 = vld [vmem:[%s274 + $0xc] sm:$0xff]
      %v1313 = vld [vmem:[%s274 + $0x14] sm:$0xff]
      %v1314 = vld [vmem:[%s274 + $0x1c] sm:$0xf]
      %v1319 = vcombine.high %v1311, %v1311
      %v1320 = vcombine.high %v1312, %v1312
      %v1321 = vcombine.high %v1313, %v1313
      %1322 = vrot.lane.b32.xlu0 %v1311, 45
      %v1323 = vpop.permute.xlu0 %1322
      %1324 = vrot.lane.b32.xlu0 %v1319, 45
      %v1325 = vpop.permute.xlu0 %1324
      %1326 = vrot.lane.b32.xlu0 %v1312, 45
      %v1327 = vpop.permute.xlu0 %1326
      %1328 = vrot.lane.b32.xlu0 %v1320, 45
      %v1329 = vpop.permute.xlu0 %1328
      %1330 = vrot.lane.b32.xlu0 %v1313, 45
      %v1331 = vpop.permute.xlu0 %1330
      %1332 = vrot.lane.b32.xlu0 %v1321, 45
      %v1333 = vpop.permute.xlu0 %1332
      %1334 = vrot.lane.b32.xlu0 %v1314, 45
      %v1335 = vpop.permute.xlu0 %1334
      %vm1336 = vcmask 367616
      %v1337 = vsel %vm1336, %v1323, %v1325
      %v1338 = vsel %vm1336, %v1325, %v1327
      %v1339 = vsel %vm1336, %v1327, %v1329
      %v1340 = vsel %vm1336, %v1329, %v1331
      %v1341 = vsel %vm1336, %v1331, %v1333
      %v1342 = vsel %vm1336, %v1333, %v1335
      %1350 = vst [vmem:[#allocation2 + $0x268] sm:$0xf] %v1337
      %1351 = vst [vmem:[#allocation2 + $0x270] sm:$0xf] %v1338
      %1352 = vst [vmem:[#allocation2 + $0x278] sm:$0xf] %v1339
      %1353 = vst [vmem:[#allocation2 + $0x280] sm:$0xf] %v1340
      %1354 = vst [vmem:[#allocation2 + $0x288] sm:$0xf] %v1341
      %1355 = vst [vmem:[#allocation2 + $0x290] sm:$0xf] %v1342
      %1356 = vst.msk [vmem:[#allocation2 + $0x298] sm:$0xf] %vm300, %v1335
      %v1357 = vld [vmem:[%s274 + $0x4] sm:$0xff]
      %v1358 = vld [vmem:[%s274 + $0xc] sm:$0xff]
      %v1359 = vld [vmem:[%s274 + $0x14] sm:$0xff]
      %v1360 = vld [vmem:[%s274 + $0x1c] sm:$0xf]
      %v1365 = vcombine.low %v1357, %v1357
      %v1366 = vcombine.low %v1358, %v1358
      %v1367 = vcombine.low %v1359, %v1359
      %v1368 = vcombine.low %v1360, %v1360
      %1369 = vrot.lane.b32.xlu0 %v1365, 44
      %v1370 = vpop.permute.xlu0 %1369
      %1371 = vrot.lane.b32.xlu0 %v1357, 44
      %v1372 = vpop.permute.xlu0 %1371
      %1373 = vrot.lane.b32.xlu0 %v1366, 44
      %v1374 = vpop.permute.xlu0 %1373
      %1375 = vrot.lane.b32.xlu0 %v1358, 44
      %v1376 = vpop.permute.xlu0 %1375
      %1377 = vrot.lane.b32.xlu0 %v1367, 44
      %v1378 = vpop.permute.xlu0 %1377
      %1379 = vrot.lane.b32.xlu0 %v1359, 44
      %v1380 = vpop.permute.xlu0 %1379
      %1381 = vrot.lane.b32.xlu0 %v1368, 44
      %v1382 = vpop.permute.xlu0 %1381
      %vm1383 = vcmask 359424
      %v1384 = vsel %vm1383, %v1370, %v1372
      %v1385 = vsel %vm1383, %v1372, %v1374
      %v1386 = vsel %vm1383, %v1374, %v1376
      %v1387 = vsel %vm1383, %v1376, %v1378
      %v1388 = vsel %vm1383, %v1378, %v1380
      %v1389 = vsel %vm1383, %v1380, %v1382
      %1397 = vst [vmem:[#allocation2 + $0x268] sm:$0xf0] %v1384
      %1398 = vst [vmem:[#allocation2 + $0x270] sm:$0xf0] %v1385
      %1399 = vst [vmem:[#allocation2 + $0x278] sm:$0xf0] %v1386
      %1400 = vst [vmem:[#allocation2 + $0x280] sm:$0xf0] %v1387
      %1401 = vst [vmem:[#allocation2 + $0x288] sm:$0xf0] %v1388
      %1402 = vst [vmem:[#allocation2 + $0x290] sm:$0xf0] %v1389
      %1403 = vst.msk [vmem:[#allocation2 + $0x298] sm:$0xf0] %vm348, %v1382
      %v1404 = vld [vmem:[%s274 + $0x4] sm:$0xff]
      %v1405 = vld [vmem:[%s274 + $0xc] sm:$0xff]
      %v1406 = vld [vmem:[%s274 + $0x14] sm:$0xff]
      %v1407 = vld [vmem:[%s274 + $0x1c] sm:$0xf]
      %v1412 = vcombine.high %v1404, %v1404
      %v1413 = vcombine.high %v1405, %v1405
      %v1414 = vcombine.high %v1406, %v1406
      %1415 = vrot.lane.b32.xlu0 %v1404, 36
      %v1416 = vpop.permute.xlu0 %1415
      %1417 = vrot.lane.b32.xlu0 %v1412, 36
      %v1418 = vpop.permute.xlu0 %1417
      %1419 = vrot.lane.b32.xlu0 %v1405, 36
      %v1420 = vpop.permute.xlu0 %1419
      %1421 = vrot.lane.b32.xlu0 %v1413, 36
      %v1422 = vpop.permute.xlu0 %1421
      %1423 = vrot.lane.b32.xlu0 %v1406, 36
      %v1424 = vpop.permute.xlu0 %1423
      %1425 = vrot.lane.b32.xlu0 %v1414, 36
      %v1426 = vpop.permute.xlu0 %1425
      %1427 = vrot.lane.b32.xlu0 %v1407, 36
      %v1428 = vpop.permute.xlu0 %1427
      %vm1429 = vcmask 293888
      %v1430 = vsel %vm1429, %v1416, %v1418
      %v1431 = vsel %vm1429, %v1418, %v1420
      %v1432 = vsel %vm1429, %v1420, %v1422
      %v1433 = vsel %vm1429, %v1422, %v1424
      %v1434 = vsel %vm1429, %v1424, %v1426
      %v1435 = vsel %vm1429, %v1426, %v1428
      %1443 = vst [vmem:[#allocation2 + $0x2a0] sm:$0xf] %v1430
      %1444 = vst [vmem:[#allocation2 + $0x2a8] sm:$0xf] %v1431
      %1445 = vst [vmem:[#allocation2 + $0x2b0] sm:$0xf] %v1432
      %1446 = vst [vmem:[#allocation2 + $0x2b8] sm:$0xf] %v1433
      %1447 = vst [vmem:[#allocation2 + $0x2c0] sm:$0xf] %v1434
      %1448 = vst [vmem:[#allocation2 + $0x2c8] sm:$0xf] %v1435
      %1449 = vst.msk [vmem:[#allocation2 + $0x2d0] sm:$0xf] %vm300, %v1428
      %v1450 = vld [vmem:[%s274 + $0x4] sm:$0xff]
      %v1451 = vld [vmem:[%s274 + $0xc] sm:$0xff]
      %v1452 = vld [vmem:[%s274 + $0x14] sm:$0xff]
      %v1453 = vld [vmem:[%s274 + $0x1c] sm:$0xf]
      %v1458 = vcombine.low %v1450, %v1450
      %v1459 = vcombine.low %v1451, %v1451
      %v1460 = vcombine.low %v1452, %v1452
      %v1461 = vcombine.low %v1453, %v1453
      %1462 = vrot.lane.b32.xlu0 %v1458, 35
      %v1463 = vpop.permute.xlu0 %1462
      %1464 = vrot.lane.b32.xlu0 %v1450, 35
      %v1465 = vpop.permute.xlu0 %1464
      %1466 = vrot.lane.b32.xlu0 %v1459, 35
      %v1467 = vpop.permute.xlu0 %1466
      %1468 = vrot.lane.b32.xlu0 %v1451, 35
      %v1469 = vpop.permute.xlu0 %1468
      %1470 = vrot.lane.b32.xlu0 %v1460, 35
      %v1471 = vpop.permute.xlu0 %1470
      %1472 = vrot.lane.b32.xlu0 %v1452, 35
      %v1473 = vpop.permute.xlu0 %1472
      %1474 = vrot.lane.b32.xlu0 %v1461, 35
      %v1475 = vpop.permute.xlu0 %1474
      %vm1476 = vcmask 285696
      %v1477 = vsel %vm1476, %v1463, %v1465
      %v1478 = vsel %vm1476, %v1465, %v1467
      %v1479 = vsel %vm1476, %v1467, %v1469
      %v1480 = vsel %vm1476, %v1469, %v1471
      %v1481 = vsel %vm1476, %v1471, %v1473
      %v1482 = vsel %vm1476, %v1473, %v1475
      %1490 = vst [vmem:[#allocation2 + $0x2a0] sm:$0xf0] %v1477
      %1491 = vst [vmem:[#allocation2 + $0x2a8] sm:$0xf0] %v1478
      %1492 = vst [vmem:[#allocation2 + $0x2b0] sm:$0xf0] %v1479
      %1493 = vst [vmem:[#allocation2 + $0x2b8] sm:$0xf0] %v1480
      %1494 = vst [vmem:[#allocation2 + $0x2c0] sm:$0xf0] %v1481
      %1495 = vst [vmem:[#allocation2 + $0x2c8] sm:$0xf0] %v1482
      %1496 = vst.msk [vmem:[#allocation2 + $0x2d0] sm:$0xf0] %vm348, %v1475
      %v1497 = vld [vmem:[%s274 + $0x4] sm:$0xff]
      %v1498 = vld [vmem:[%s274 + $0xc] sm:$0xff]
      %v1499 = vld [vmem:[%s274 + $0x14] sm:$0xff]
      %v1500 = vld [vmem:[%s274 + $0x1c] sm:$0xf]
      %v1505 = vcombine.high %v1497, %v1497
      %v1506 = vcombine.high %v1498, %v1498
      %v1507 = vcombine.high %v1499, %v1499
      %1508 = vrot.lane.b32.xlu0 %v1497, 34
      %v1509 = vpop.permute.xlu0 %1508
      %1510 = vrot.lane.b32.xlu0 %v1505, 34
      %v1511 = vpop.permute.xlu0 %1510
      %1512 = vrot.lane.b32.xlu0 %v1498, 34
      %v1513 = vpop.permute.xlu0 %1512
      %1514 = vrot.lane.b32.xlu0 %v1506, 34
      %v1515 = vpop.permute.xlu0 %1514
      %1516 = vrot.lane.b32.xlu0 %v1499, 34
      %v1517 = vpop.permute.xlu0 %1516
      %1518 = vrot.lane.b32.xlu0 %v1507, 34
      %v1519 = vpop.permute.xlu0 %1518
      %1520 = vrot.lane.b32.xlu0 %v1500, 34
      %v1521 = vpop.permute.xlu0 %1520
      %vm1522 = vcmask 277504
      %v1523 = vsel %vm1522, %v1509, %v1511
      %v1524 = vsel %vm1522, %v1511, %v1513
      %v1525 = vsel %vm1522, %v1513, %v1515
      %v1526 = vsel %vm1522, %v1515, %v1517
      %v1527 = vsel %vm1522, %v1517, %v1519
      %v1528 = vsel %vm1522, %v1519, %v1521
      %1536 = vst [vmem:[#allocation2 + $0x2d8] sm:$0xf] %v1523
      %1537 = vst [vmem:[#allocation2 + $0x2e0] sm:$0xf] %v1524
      %1538 = vst [vmem:[#allocation2 + $0x2e8] sm:$0xf] %v1525
      %1539 = vst [vmem:[#allocation2 + $0x2f0] sm:$0xf] %v1526
      %1540 = vst [vmem:[#allocation2 + $0x2f8] sm:$0xf] %v1527
      %1541 = vst [vmem:[#allocation2 + $0x300] sm:$0xf] %v1528
      %1542 = vst.msk [vmem:[#allocation2 + $0x308] sm:$0xf] %vm300, %v1521
      %v1543 = vld [vmem:[%s2] sm:$0xff]
      %v1544 = vld [vmem:[#allocation2] sm:$0xff]
      %v1545 = vld [vmem:[#allocation2 + $0x8] sm:$0xff]
      %v1546 = vld [vmem:[#allocation2 + $0x10] sm:$0xff]
      %v1547 = vld [vmem:[#allocation2 + $0x18] sm:$0xff]
      %v1548 = vld [vmem:[#allocation2 + $0x20] sm:$0xff]
      %v1549 = vld [vmem:[#allocation2 + $0x28] sm:$0xff]
      %v1550 = vld [vmem:[#allocation2 + $0x30] sm:$0xff]
      %v1551 = vld [vmem:[#allocation2 + $0x38] sm:$0xff]
      %v1552 = vld [vmem:[#allocation2 + $0x40] sm:$0xff]
      %v1553 = vld [vmem:[#allocation2 + $0x48] sm:$0xff]
      %v1554 = vld [vmem:[#allocation2 + $0x50] sm:$0xff]
      %v1555 = vld [vmem:[#allocation2 + $0x58] sm:$0xff]
      %v1556 = vld [vmem:[#allocation2 + $0x60] sm:$0xff]
      %v1557 = vld [vmem:[#allocation2 + $0x68] sm:$0xff]
      %v1558 = vld [vmem:[#allocation2 + $0x70] sm:$0xff]
      %v1559 = vld [vmem:[#allocation2 + $0x78] sm:$0xff]
      %v1560 = vld [vmem:[#allocation2 + $0x80] sm:$0xff]
      %v1561 = vld [vmem:[#allocation2 + $0x88] sm:$0xff]
      %v1562 = vld [vmem:[#allocation2 + $0x90] sm:$0xff]
      %v1563 = vld [vmem:[#allocation2 + $0x98] sm:$0xff]
      %v1564 = vld [vmem:[#allocation2 + $0xa0] sm:$0xff]
      %v1565 = vld [vmem:[#allocation2 + $0xa8] sm:$0xff]
      %v1566 = vld [vmem:[#allocation2 + $0xb0] sm:$0xff]
      %v1567 = vld [vmem:[#allocation2 + $0xb8] sm:$0xff]
      %v1568 = vld [vmem:[#allocation2 + $0xc0] sm:$0xff]
      %v1569 = vld [vmem:[#allocation2 + $0xc8] sm:$0xff]
      %v1570 = vld [vmem:[#allocation2 + $0xd0] sm:$0xff]
      %v1571 = vld [vmem:[#allocation2 + $0xd8] sm:$0xff]
      %v1572 = vld [vmem:[#allocation2 + $0xe0] sm:$0xff]
      %v1573 = vld [vmem:[#allocation2 + $0xe8] sm:$0xff]
      %v1574 = vld [vmem:[#allocation2 + $0xf0] sm:$0xff]
      %v1575 = vld [vmem:[#allocation2 + $0xf8] sm:$0xff]
      %v1576 = vld [vmem:[#allocation2 + $0x100] sm:$0xff]
      %v1577 = vld [vmem:[#allocation2 + $0x108] sm:$0xff]
      %v1578 = vld [vmem:[#allocation2 + $0x110] sm:$0xff]
      %v1579 = vld [vmem:[#allocation2 + $0x118] sm:$0xff]
      %v1580 = vld [vmem:[#allocation2 + $0x120] sm:$0xff]
      %v1581 = vld [vmem:[#allocation2 + $0x128] sm:$0xff]
      %v1582 = vld [vmem:[#allocation2 + $0x130] sm:$0xff]
      %v1583 = vld [vmem:[#allocation2 + $0x138] sm:$0xff]
      %v1584 = vld [vmem:[#allocation2 + $0x140] sm:$0xff]
      %v1585 = vld [vmem:[#allocation2 + $0x148] sm:$0xff]
      %v1586 = vld [vmem:[#allocation2 + $0x150] sm:$0xff]
      %v1587 = vld [vmem:[#allocation2 + $0x158] sm:$0xff]
      %v1588 = vld [vmem:[#allocation2 + $0x160] sm:$0xff]
      %v1589 = vld [vmem:[#allocation2 + $0x168] sm:$0xff]
      %v1590 = vld [vmem:[#allocation2 + $0x170] sm:$0xff]
      %v1591 = vld [vmem:[#allocation2 + $0x178] sm:$0xff]
      %v1592 = vld [vmem:[#allocation2 + $0x180] sm:$0xff]
      %v1593 = vld [vmem:[#allocation2 + $0x188] sm:$0xff]
      %v1594 = vld [vmem:[#allocation2 + $0x190] sm:$0xff]
      %v1595 = vld [vmem:[#allocation2 + $0x198] sm:$0xff]
      %v1596 = vld [vmem:[#allocation2 + $0x1a0] sm:$0xff]
      %v1597 = vld [vmem:[#allocation2 + $0x1a8] sm:$0xff]
      %v1598 = vld [vmem:[#allocation2 + $0x1b0] sm:$0xff]
      %v1599 = vld [vmem:[#allocation2 + $0x1b8] sm:$0xff]
      %v1600 = vld [vmem:[#allocation2 + $0x1c0] sm:$0xff]
      %v1601 = vld [vmem:[#allocation2 + $0x1c8] sm:$0xff]
      %v1602 = vld [vmem:[#allocation2 + $0x1d0] sm:$0xff]
      %v1603 = vld [vmem:[#allocation2 + $0x1d8] sm:$0xff]
      %v1604 = vld [vmem:[#allocation2 + $0x1e0] sm:$0xff]
      %v1605 = vld [vmem:[#allocation2 + $0x1e8] sm:$0xff]
      %v1606 = vld [vmem:[#allocation2 + $0x1f0] sm:$0xff]
      %v1607 = vld [vmem:[#allocation2 + $0x1f8] sm:$0xff]
      %v1608 = vld [vmem:[#allocation2 + $0x200] sm:$0xff]
      %v1609 = vld [vmem:[#allocation2 + $0x208] sm:$0xff]
      %v1610 = vld [vmem:[#allocation2 + $0x210] sm:$0xff]
      %v1611 = vld [vmem:[#allocation2 + $0x218] sm:$0xff]
      %v1612 = vld [vmem:[#allocation2 + $0x220] sm:$0xff]
      %v1613 = vld [vmem:[#allocation2 + $0x228] sm:$0xff]
      %v1614 = vld [vmem:[#allocation2 + $0x230] sm:$0xff]
      %v1615 = vld [vmem:[#allocation2 + $0x238] sm:$0xff]
      %v1616 = vld [vmem:[#allocation2 + $0x240] sm:$0xff]
      %v1617 = vld [vmem:[#allocation2 + $0x248] sm:$0xff]
      %v1618 = vld [vmem:[#allocation2 + $0x250] sm:$0xff]
      %v1619 = vld [vmem:[#allocation2 + $0x258] sm:$0xff]
      %v1620 = vld [vmem:[#allocation2 + $0x260] sm:$0xff]
      %v1621 = vld [vmem:[#allocation2 + $0x268] sm:$0xff]
      %v1622 = vld [vmem:[#allocation2 + $0x270] sm:$0xff]
      %v1623 = vld [vmem:[#allocation2 + $0x278] sm:$0xff]
      %v1624 = vld [vmem:[#allocation2 + $0x280] sm:$0xff]
      %v1625 = vld [vmem:[#allocation2 + $0x288] sm:$0xff]
      %v1626 = vld [vmem:[#allocation2 + $0x290] sm:$0xff]
      %v1627 = vld [vmem:[#allocation2 + $0x298] sm:$0xff]
      %v1628 = vld [vmem:[#allocation2 + $0x2a0] sm:$0xff]
      %v1629 = vld [vmem:[#allocation2 + $0x2a8] sm:$0xff]
      %v1630 = vld [vmem:[#allocation2 + $0x2b0] sm:$0xff]
      %v1631 = vld [vmem:[#allocation2 + $0x2b8] sm:$0xff]
      %v1632 = vld [vmem:[#allocation2 + $0x2c0] sm:$0xff]
      %v1633 = vld [vmem:[#allocation2 + $0x2c8] sm:$0xff]
      %v1634 = vld [vmem:[#allocation2 + $0x2d0] sm:$0xff]
      %v1635 = vld [vmem:[#allocation2 + $0x2d8] sm:$0xf]
      %v1636 = vld [vmem:[#allocation2 + $0x2e0] sm:$0xf]
      %v1637 = vld [vmem:[#allocation2 + $0x2e8] sm:$0xf]
      %v1638 = vld [vmem:[#allocation2 + $0x2f0] sm:$0xf]
      %v1639 = vld [vmem:[#allocation2 + $0x2f8] sm:$0xf]
      %v1640 = vld [vmem:[#allocation2 + $0x300] sm:$0xf]
      %v1641 = vld [vmem:[#allocation2 + $0x308] sm:$0xf]
      %v1642 = vld [vmem:[%s3] sm:$0xff]
      %1644 = vset.pattern.permute.xlu0 0
      %1645 = vperm.xlu0 %1644, %v1642
      %v1646 = vpop.permute.xlu0 %1645
      %v1649 = vsel %vm561, %v1543, 0
      %vm1651 = vcmask 1043456
      %v1653 = vsel %vm1651, %v1635, 0
      %v1656 = vsel %vm1651, %v1636, 0
      %v1659 = vsel %vm1651, %v1637, 0
      %v1662 = vsel %vm1651, %v1638, 0
      %v1665 = vsel %vm1651, %v1639, 0
      %v1668 = vsel %vm1651, %v1640, 0
      %v1671 = vsel %vm1651, %v1641, 0
      %1673 = vmatprep.subr.mxu0 %v1545
      %1674 = vmatpush1.msra.mxu0 %v1544
      %1675 = vmatprep.subr.mxu0 %v1552
      %1676 = vmatpush1.msra.mxu0 %v1551
      %1677 = vmatprep.subr.mxu0 %v1559
      %1678 = vmatpush1.msra.mxu0 %v1558
      %1679 = vmatprep.subr.mxu0 %v1566
      %1680 = vmatpush1.msra.mxu0 %v1565
      %1681 = vmatprep.subr.mxu0 %v1573
      %1682 = vmatpush1.msra.mxu0 %v1572
      %1683 = vmatprep.subr.mxu0 %v1580
      %1684 = vmatpush1.msra.mxu0 %v1579
      %1685 = vmatprep.subr.mxu0 %v1587
      %1686 = vmatpush1.msra.mxu0 %v1586
      %1687 = vmatprep.subr.mxu0 %v1594
      %1688 = vmatpush1.msra.mxu0 %v1593
      %1689 = vmatprep.subr.mxu0 %v1601
      %1690 = vmatpush1.msra.mxu0 %v1600
      %1691 = vmatprep.subr.mxu0 %v1608
      %1692 = vmatpush1.msra.mxu0 %v1607
      %1693 = vmatprep.subr.mxu0 %v1615
      %1694 = vmatpush1.msra.mxu0 %v1614
      %1695 = vmatprep.subr.mxu0 %v1622
      %1696 = vmatpush1.msra.mxu0 %v1621
      %1697 = vmatprep.subr.mxu0 %v1629
      %1698 = vmatpush1.msra.mxu0 %v1628
      %1699 = vmatprep.subr.mxu0 %v1656
      %1700 = vmatpush1.msra.mxu0 %v1653
      %1701 = vmatprep.subr.mxu0 0.0
      %1702 = vmatpush1.msra.mxu0 0.0
      %1703 = vmatprep.subr.mxu0 0.0
      %1704 = vmatpush1.msra.mxu0 0.0
      %1705 = vmatprep.subr.mxu0 0.0
      %1706 = vmatpush1.msra.mxu0 0.0
      %1707 = vmatprep.subr.mxu0 0.0
      %1708 = vmatpush1.msra.mxu0 0.0
      %1709 = vmatprep.subr.mxu0 0.0
      %1710 = vmatpush1.msra.mxu0 0.0
      %1711 = vmatprep.subr.mxu0 0.0
      %1712 = vmatpush1.msra.mxu0 0.0
      %1713 = vmatprep.subr.mxu0 0.0
      %1714 = vmatpush1.msra.mxu0 0.0
      %1715 = vmatprep.subr.mxu0 0.0
      %1716 = vmatpush1.msra.mxu0 0.0
      %1717 = vmatprep.subr.mxu0 0.0
      %1718 = vmatpush1.msra.mxu0 0.0
      %1719 = vmatprep.subr.mxu0 0.0
      %1720 = vmatpush1.msra.mxu0 0.0
      %1721 = vmatprep.subr.mxu0 0.0
      %1722 = vmatpush1.msra.mxu0 0.0
      %1723 = vmatprep.subr.mxu0 0.0
      %1724 = vmatpush1.msra.mxu0 0.0
      %1725 = vmatprep.subr.mxu0 0.0
      %1726 = vmatpush1.msra.mxu0 0.0
      %1727 = vmatprep.subr.mxu0 0.0
      %1728 = vmatpush1.msra.mxu0 0.0
      %1729 = vmatprep.subr.mxu0 0.0
      %1730 = vmatpush1.msra.mxu0 0.0
      %1731 = vmatprep.subr.mxu0 0.0
      %1732 = vmatpush1.msra.mxu0 0.0
      %1733 = vmatprep.subr.mxu0 0.0
      %1734 = vmatpush1.msra.mxu0 0.0
      %1735 = vmatprep.subr.mxu0 0.0
      %1736 = vmatpush1.msra.mxu0 0.0
      %1737 = vmatprep.mubr.f32.mxu0 0.0
      %1738 = vmatmul.mubr.f32.gmra.mrb[0].mxu0 %v1649
      %v1739 = vpop.f32.mrb[0].mxu0
      %v1740 = vadd.f32 %v1646, %v1739
      %v1741 = vpop.f32.mrb[0].mxu0
      %v1742 = vadd.f32 %v1646, %v1741
      %1743 = vdwg.mxu0
      %1744 = vmatprep.subr.mxu0 %v1547
      %1745 = vmatpush1.msra.mxu0 %v1546
      %1746 = vmatprep.subr.mxu0 %v1554
      %1747 = vmatpush1.msra.mxu0 %v1553
      %1748 = vmatprep.subr.mxu0 %v1561
      %1749 = vmatpush1.msra.mxu0 %v1560
      %1750 = vmatprep.subr.mxu0 %v1568
      %1751 = vmatpush1.msra.mxu0 %v1567
      %1752 = vmatprep.subr.mxu0 %v1575
      %1753 = vmatpush1.msra.mxu0 %v1574
      %1754 = vmatprep.subr.mxu0 %v1582
      %1755 = vmatpush1.msra.mxu0 %v1581
      %1756 = vmatprep.subr.mxu0 %v1589
      %1757 = vmatpush1.msra.mxu0 %v1588
      %1758 = vmatprep.subr.mxu0 %v1596
      %1759 = vmatpush1.msra.mxu0 %v1595
      %1760 = vmatprep.subr.mxu0 %v1603
      %1761 = vmatpush1.msra.mxu0 %v1602
      %1762 = vmatprep.subr.mxu0 %v1610
      %1763 = vmatpush1.msra.mxu0 %v1609
      %1764 = vmatprep.subr.mxu0 %v1617
      %1765 = vmatpush1.msra.mxu0 %v1616
      %1766 = vmatprep.subr.mxu0 %v1624
      %1767 = vmatpush1.msra.mxu0 %v1623
      %1768 = vmatprep.subr.mxu0 %v1631
      %1769 = vmatpush1.msra.mxu0 %v1630
      %1770 = vmatprep.subr.mxu0 %v1662
      %1771 = vmatpush1.msra.mxu0 %v1659
      %1772 = vmatprep.subr.mxu0 0.0
      %1773 = vmatpush1.msra.mxu0 0.0
      %1774 = vmatprep.subr.mxu0 0.0
      %1775 = vmatpush1.msra.mxu0 0.0
      %1776 = vmatprep.subr.mxu0 0.0
      %1777 = vmatpush1.msra.mxu0 0.0
      %1778 = vmatprep.subr.mxu0 0.0
      %1779 = vmatpush1.msra.mxu0 0.0
      %1780 = vmatprep.subr.mxu0 0.0
      %1781 = vmatpush1.msra.mxu0 0.0
      %1782 = vmatprep.subr.mxu0 0.0
      %1783 = vmatpush1.msra.mxu0 0.0
      %1784 = vmatprep.subr.mxu0 0.0
      %1785 = vmatpush1.msra.mxu0 0.0
      %1786 = vmatprep.subr.mxu0 0.0
      %1787 = vmatpush1.msra.mxu0 0.0
      %1788 = vmatprep.subr.mxu0 0.0
      %1789 = vmatpush1.msra.mxu0 0.0
      %1790 = vmatprep.subr.mxu0 0.0
      %1791 = vmatpush1.msra.mxu0 0.0
      %1792 = vmatprep.subr.mxu0 0.0
      %1793 = vmatpush1.msra.mxu0 0.0
      %1794 = vmatprep.subr.mxu0 0.0
      %1795 = vmatpush1.msra.mxu0 0.0
      %1796 = vmatprep.subr.mxu0 0.0
      %1797 = vmatpush1.msra.mxu0 0.0
      %1798 = vmatprep.subr.mxu0 0.0
      %1799 = vmatpush1.msra.mxu0 0.0
      %1800 = vmatprep.subr.mxu0 0.0
      %1801 = vmatpush1.msra.mxu0 0.0
      %1802 = vmatprep.subr.mxu0 0.0
      %1803 = vmatpush1.msra.mxu0 0.0
      %1804 = vmatprep.subr.mxu0 0.0
      %1805 = vmatpush1.msra.mxu0 0.0
      %1806 = vmatprep.subr.mxu0 0.0
      %1807 = vmatpush1.msra.mxu0 0.0
      %1808 = vmatprep.mubr.f32.mxu0 0.0
      %1809 = vmatmul.mubr.f32.gmra.mrb[0].mxu0 %v1649
      %v1810 = vpop.f32.mrb[0].mxu0
      %v1811 = vadd.f32 %v1646, %v1810
      %v1812 = vpop.f32.mrb[0].mxu0
      %v1813 = vadd.f32 %v1646, %v1812
      %1814 = vdwg.mxu0
      %1815 = vmatprep.subr.mxu0 %v1549
      %1816 = vmatpush1.msra.mxu0 %v1548
      %1817 = vmatprep.subr.mxu0 %v1556
      %1818 = vmatpush1.msra.mxu0 %v1555
      %1819 = vmatprep.subr.mxu0 %v1563
      %1820 = vmatpush1.msra.mxu0 %v1562
      %1821 = vmatprep.subr.mxu0 %v1570
      %1822 = vmatpush1.msra.mxu0 %v1569
      %1823 = vmatprep.subr.mxu0 %v1577
      %1824 = vmatpush1.msra.mxu0 %v1576
      %1825 = vmatprep.subr.mxu0 %v1584
      %1826 = vmatpush1.msra.mxu0 %v1583
      %1827 = vmatprep.subr.mxu0 %v1591
      %1828 = vmatpush1.msra.mxu0 %v1590
      %1829 = vmatprep.subr.mxu0 %v1598
      %1830 = vmatpush1.msra.mxu0 %v1597
      %1831 = vmatprep.subr.mxu0 %v1605
      %1832 = vmatpush1.msra.mxu0 %v1604
      %1833 = vmatprep.subr.mxu0 %v1612
      %1834 = vmatpush1.msra.mxu0 %v1611
      %1835 = vmatprep.subr.mxu0 %v1619
      %1836 = vmatpush1.msra.mxu0 %v1618
      %1837 = vmatprep.subr.mxu0 %v1626
      %1838 = vmatpush1.msra.mxu0 %v1625
      %1839 = vmatprep.subr.mxu0 %v1633
      %1840 = vmatpush1.msra.mxu0 %v1632
      %1841 = vmatprep.subr.mxu0 %v1668
      %1842 = vmatpush1.msra.mxu0 %v1665
      %1843 = vmatprep.subr.mxu0 0.0
      %1844 = vmatpush1.msra.mxu0 0.0
      %1845 = vmatprep.subr.mxu0 0.0
      %1846 = vmatpush1.msra.mxu0 0.0
      %1847 = vmatprep.subr.mxu0 0.0
      %1848 = vmatpush1.msra.mxu0 0.0
      %1849 = vmatprep.subr.mxu0 0.0
      %1850 = vmatpush1.msra.mxu0 0.0
      %1851 = vmatprep.subr.mxu0 0.0
      %1852 = vmatpush1.msra.mxu0 0.0
      %1853 = vmatprep.subr.mxu0 0.0
      %1854 = vmatpush1.msra.mxu0 0.0
      %1855 = vmatprep.subr.mxu0 0.0
      %1856 = vmatpush1.msra.mxu0 0.0
      %1857 = vmatprep.subr.mxu0 0.0
      %1858 = vmatpush1.msra.mxu0 0.0
      %1859 = vmatprep.subr.mxu0 0.0
      %1860 = vmatpush1.msra.mxu0 0.0
      %1861 = vmatprep.subr.mxu0 0.0
      %1862 = vmatpush1.msra.mxu0 0.0
      %1863 = vmatprep.subr.mxu0 0.0
      %1864 = vmatpush1.msra.mxu0 0.0
      %1865 = vmatprep.subr.mxu0 0.0
      %1866 = vmatpush1.msra.mxu0 0.0
      %1867 = vmatprep.subr.mxu0 0.0
      %1868 = vmatpush1.msra.mxu0 0.0
      %1869 = vmatprep.subr.mxu0 0.0
      %1870 = vmatpush1.msra.mxu0 0.0
      %1871 = vmatprep.subr.mxu0 0.0
      %1872 = vmatpush1.msra.mxu0 0.0
      %1873 = vmatprep.subr.mxu0 0.0
      %1874 = vmatpush1.msra.mxu0 0.0
      %1875 = vmatprep.subr.mxu0 0.0
      %1876 = vmatpush1.msra.mxu0 0.0
      %1877 = vmatprep.subr.mxu0 0.0
      %1878 = vmatpush1.msra.mxu0 0.0
      %1879 = vmatprep.mubr.f32.mxu0 0.0
      %1880 = vmatmul.mubr.f32.gmra.mrb[0].mxu0 %v1649
      %v1881 = vpop.f32.mrb[0].mxu0
      %v1882 = vadd.f32 %v1646, %v1881
      %v1883 = vpop.f32.mrb[0].mxu0
      %v1884 = vadd.f32 %v1646, %v1883
      %1885 = vdwg.mxu0
      %1886 = vmatprep.subr.mxu0 0.0
      %1887 = vmatpush1.msra.mxu0 %v1550
      %1888 = vmatprep.subr.mxu0 0.0
      %1889 = vmatpush1.msra.mxu0 %v1557
      %1890 = vmatprep.subr.mxu0 0.0
      %1891 = vmatpush1.msra.mxu0 %v1564
      %1892 = vmatprep.subr.mxu0 0.0
      %1893 = vmatpush1.msra.mxu0 %v1571
      %1894 = vmatprep.subr.mxu0 0.0
      %1895 = vmatpush1.msra.mxu0 %v1578
      %1896 = vmatprep.subr.mxu0 0.0
      %1897 = vmatpush1.msra.mxu0 %v1585
      %1898 = vmatprep.subr.mxu0 0.0
      %1899 = vmatpush1.msra.mxu0 %v1592
      %1900 = vmatprep.subr.mxu0 0.0
      %1901 = vmatpush1.msra.mxu0 %v1599
      %1902 = vmatprep.subr.mxu0 0.0
      %1903 = vmatpush1.msra.mxu0 %v1606
      %1904 = vmatprep.subr.mxu0 0.0
      %1905 = vmatpush1.msra.mxu0 %v1613
      %1906 = vmatprep.subr.mxu0 0.0
      %1907 = vmatpush1.msra.mxu0 %v1620
      %1908 = vmatprep.subr.mxu0 0.0
      %1909 = vmatpush1.msra.mxu0 %v1627
      %1910 = vmatprep.subr.mxu0 0.0
      %1911 = vmatpush1.msra.mxu0 %v1634
      %1912 = vmatprep.subr.mxu0 0.0
      %1913 = vmatpush1.msra.mxu0 %v1671
      %1914 = vmatprep.subr.mxu0 0.0
      %1915 = vmatpush1.msra.mxu0 0.0
      %1916 = vmatprep.subr.mxu0 0.0
      %1917 = vmatpush1.msra.mxu0 0.0
      %1918 = vmatprep.subr.mxu0 0.0
      %1919 = vmatpush1.msra.mxu0 0.0
      %1920 = vmatprep.subr.mxu0 0.0
      %1921 = vmatpush1.msra.mxu0 0.0
      %1922 = vmatprep.subr.mxu0 0.0
      %1923 = vmatpush1.msra.mxu0 0.0
      %1924 = vmatprep.subr.mxu0 0.0
      %1925 = vmatpush1.msra.mxu0 0.0
      %1926 = vmatprep.subr.mxu0 0.0
      %1927 = vmatpush1.msra.mxu0 0.0
      %1928 = vmatprep.subr.mxu0 0.0
      %1929 = vmatpush1.msra.mxu0 0.0
      %1930 = vmatprep.subr.mxu0 0.0
      %1931 = vmatpush1.msra.mxu0 0.0
      %1932 = vmatprep.subr.mxu0 0.0
      %1933 = vmatpush1.msra.mxu0 0.0
      %1934 = vmatprep.subr.mxu0 0.0
      %1935 = vmatpush1.msra.mxu0 0.0
      %1936 = vmatprep.subr.mxu0 0.0
      %1937 = vmatpush1.msra.mxu0 0.0
      %1938 = vmatprep.subr.mxu0 0.0
      %1939 = vmatpush1.msra.mxu0 0.0
      %1940 = vmatprep.subr.mxu0 0.0
      %1941 = vmatpush1.msra.mxu0 0.0
      %1942 = vmatprep.subr.mxu0 0.0
      %1943 = vmatpush1.msra.mxu0 0.0
      %1944 = vmatprep.subr.mxu0 0.0
      %1945 = vmatpush1.msra.mxu0 0.0
      %1946 = vmatprep.subr.mxu0 0.0
      %1947 = vmatpush1.msra.mxu0 0.0
      %1948 = vmatprep.subr.mxu0 0.0
      %1949 = vmatpush1.msra.mxu0 0.0
      %1950 = vmatprep.mubr.f32.mxu0 0.0
      %1951 = vmatmul.mubr.f32.gmra.mrb[0].mxu0 %v1649
      %v1952 = vpop.f32.mrb[0].mxu0
      %v1953 = vadd.f32 %v1646, %v1952
      %v1954 = vpop.f32.mrb[0].mxu0
      %1955 = vdwg.mxu0
      %vm1956 = vcmp.ge.f32.partialorder %v1740, 0.0
      %vm1957 = vcmp.ge.f32.partialorder %v1742, 0.0
      %vm1958 = vcmp.ge.f32.partialorder %v1811, 0.0
      %vm1959 = vcmp.ge.f32.partialorder %v1813, 0.0
      %vm1960 = vcmp.ge.f32.partialorder %v1882, 0.0
      %vm1961 = vcmp.ge.f32.partialorder %v1884, 0.0
      %vm1962 = vcmp.ge.f32.partialorder %v1953, 0.0
      %v1963 = vmul.f32 %v1740, 0.01
      %v1964 = vmul.f32 %v1742, 0.01
      %v1965 = vmul.f32 %v1811, 0.01
      %v1966 = vmul.f32 %v1813, 0.01
      %v1967 = vmul.f32 %v1882, 0.01
      %v1968 = vmul.f32 %v1884, 0.01
      %v1969 = vmul.f32 %v1953, 0.01
      %v1970 = vsel %vm1956, %v1740, %v1963
      %v1971 = vsel %vm1957, %v1742, %v1964
      %v1972 = vsel %vm1958, %v1811, %v1965
      %v1973 = vsel %vm1959, %v1813, %v1966
      %v1974 = vsel %vm1960, %v1882, %v1967
      %v1975 = vsel %vm1961, %v1884, %v1968
      %v1976 = vsel %vm1962, %v1953, %v1969
      %v1977 = vld [vmem:[%s6] sm:$0x7f]
      %v1979 = vlaneseq
      %v1980 = vshrl.u32 %v1979, 7
      %v1981 = vsub.s32 0, %v1980
      %v1982 = vrot.slane %v1977, %v1981
      %v1983 = vlaneseq
      %v1984 = vshrl.u32 %v1983, 7
      %v1985 = vsub.s32 1, %v1984
      %v1986 = vrot.slane %v1977, %v1985
      %v1987 = vlaneseq
      %v1988 = vshrl.u32 %v1987, 7
      %v1989 = vsub.s32 2, %v1988
      %v1990 = vrot.slane %v1977, %v1989
      %v1991 = vlaneseq
      %v1992 = vshrl.u32 %v1991, 7
      %v1993 = vsub.s32 3, %v1992
      %v1994 = vrot.slane %v1977, %v1993
      %v1995 = vlaneseq
      %v1996 = vshrl.u32 %v1995, 7
      %v1997 = vsub.s32 4, %v1996
      %v1998 = vrot.slane %v1977, %v1997
      %v1999 = vlaneseq
      %v2000 = vshrl.u32 %v1999, 7
      %v2001 = vsub.s32 5, %v2000
      %v2002 = vrot.slane %v1977, %v2001
      %v2003 = vlaneseq
      %v2004 = vshrl.u32 %v2003, 7
      %v2005 = vsub.s32 6, %v2004
      %v2006 = vrot.slane %v1977, %v2005
      %v2014 = vmul.f32 %v1970, %v1982
      %v2015 = vmul.f32 %v1971, %v1986
      %v2016 = vmul.f32 %v1972, %v1990
      %v2017 = vmul.f32 %v1973, %v1994
      %v2018 = vmul.f32 %v1974, %v1998
      %v2019 = vmul.f32 %v1975, %v2002
      %v2020 = vmul.f32 %v1976, %v2006
      %vm2021 = vcmask 904192
      %2022 = vst.msk [vmem:[#allocation3] sm:$0xf] %vm2021, 0.0
      %v2030 = vcombine.high %v2014, %v2015
      %v2031 = vcombine.high %v2016, %v2017
      %v2032 = vcombine.high %v2018, %v2019
      %v2033 = vcombine.high %v2020, %v2020
      %2034 = vrot.lane.b32.xlu0 %v2030, 111
      %v2035 = vpop.permute.xlu0 %2034
      %2036 = vrot.lane.b32.xlu0 %v2031, 111
      %v2037 = vpop.permute.xlu0 %2036
      %2038 = vrot.lane.b32.xlu0 %v2032, 111
      %v2039 = vpop.permute.xlu0 %2038
      %2040 = vrot.lane.b32.xlu0 %v2033, 111
      %v2041 = vpop.permute.xlu0 %2040
      %v2042 = vrot.slane %v2035, 4
      %v2043 = vrot.slane %v2037, 4
      %v2044 = vrot.slane %v2039, 4
      %v2045 = vrot.slane %v2041, 4
      %vm2046 = vcmask 908288
      %v2047 = vsel %vm2046, %v2042, %v2035
      %v2048 = vsel %vm1651, %v2042, %v2043
      %v2049 = vsel %vm2046, %v2048, %v2037
      %v2050 = vsel %vm1651, %v2043, %v2044
      %v2051 = vsel %vm2046, %v2050, %v2039
      %v2052 = vsel %vm1651, %v2044, %v2045
      %v2053 = vsel %vm2046, %v2052, %v2041
      %vm2058 = vcmask 1044344
      %vm2059 = vcmask 1047556
      %vm2060 = vmor %vm2059, %vm2058
      %2061 = vst.msk [vmem:[#allocation3] sm:$0xff] %vm2060, %v2047
      %2062 = vst [vmem:[#allocation3 + $0x8] sm:$0xff] %v2049
      %2063 = vst [vmem:[#allocation3 + $0x10] sm:$0xff] %v2051
      %vm2064 = vcmask 121860
      %vm2065 = vmor %vm2064, %vm1651
      %2066 = vst.msk [vmem:[#allocation3 + $0x18] sm:$0xff] %vm2065, %v2053
      %vm2067 = vcmask 1027192
      %2068 = vst.msk [vmem:[#allocation3 + $0x1c] sm:$0xf] %vm2067, 0.0
      %v2069 = vld [vmem:[#allocation3] sm:$0xff]
      %v2070 = vld [vmem:[#allocation3 + $0x8] sm:$0xff]
      %v2071 = vld [vmem:[#allocation3 + $0x10] sm:$0xff]
      %v2072 = vld [vmem:[#allocation3 + $0x18] sm:$0xf]
      %v2076 = vcombine.high %v2069, %v2069
      %v2077 = vcombine.high %v2070, %v2070
      %v2078 = vcombine.high %v2071, %v2071
      %2082 = vst [vmem:[#allocation2] sm:$0xf] %v2069
      %2083 = vst [vmem:[#allocation2 + $0x8] sm:$0xf] %v2076
      %2084 = vst [vmem:[#allocation2 + $0x10] sm:$0xf] %v2070
      %2085 = vst [vmem:[#allocation2 + $0x18] sm:$0xf] %v2077
      %2086 = vst [vmem:[#allocation2 + $0x20] sm:$0xf] %v2071
      %2087 = vst [vmem:[#allocation2 + $0x28] sm:$0xf] %v2078
      %2088 = vst.msk [vmem:[#allocation2 + $0x30] sm:$0xf] %vm300, %v2072
      %v2089 = vld [vmem:[#allocation3] sm:$0xff]
      %v2090 = vld [vmem:[#allocation3 + $0x8] sm:$0xff]
      %v2091 = vld [vmem:[#allocation3 + $0x10] sm:$0xff]
      %v2092 = vld [vmem:[#allocation3 + $0x18] sm:$0xf]
      %v2097 = vcombine.low %v2089, %v2089
      %v2098 = vcombine.low %v2090, %v2090
      %v2099 = vcombine.low %v2091, %v2091
      %v2100 = vcombine.low %v2092, %v2092
      %2101 = vrot.lane.b32.xlu0 %v2097, 127
      %v2102 = vpop.permute.xlu0 %2101
      %2103 = vrot.lane.b32.xlu0 %v2089, 127
      %v2104 = vpop.permute.xlu0 %2103
      %2105 = vrot.lane.b32.xlu0 %v2098, 127
      %v2106 = vpop.permute.xlu0 %2105
      %2107 = vrot.lane.b32.xlu0 %v2090, 127
      %v2108 = vpop.permute.xlu0 %2107
      %2109 = vrot.lane.b32.xlu0 %v2099, 127
      %v2110 = vpop.permute.xlu0 %2109
      %2111 = vrot.lane.b32.xlu0 %v2091, 127
      %v2112 = vpop.permute.xlu0 %2111
      %2113 = vrot.lane.b32.xlu0 %v2100, 127
      %v2114 = vpop.permute.xlu0 %2113
      %v2115 = vsel %vm328, %v2102, %v2104
      %v2116 = vsel %vm328, %v2104, %v2106
      %v2117 = vsel %vm328, %v2106, %v2108
      %v2118 = vsel %vm328, %v2108, %v2110
      %v2119 = vsel %vm328, %v2110, %v2112
      %v2120 = vsel %vm328, %v2112, %v2114
      %2128 = vst [vmem:[#allocation2] sm:$0xf0] %v2115
      %2129 = vst [vmem:[#allocation2 + $0x8] sm:$0xf0] %v2116
      %2130 = vst [vmem:[#allocation2 + $0x10] sm:$0xf0] %v2117
      %2131 = vst [vmem:[#allocation2 + $0x18] sm:$0xf0] %v2118
      %2132 = vst [vmem:[#allocation2 + $0x20] sm:$0xf0] %v2119
      %2133 = vst [vmem:[#allocation2 + $0x28] sm:$0xf0] %v2120
      %2134 = vst.msk [vmem:[#allocation2 + $0x30] sm:$0xf0] %vm348, %v2114
      %v2135 = vld [vmem:[#allocation3] sm:$0xff]
      %v2136 = vld [vmem:[#allocation3 + $0x8] sm:$0xff]
      %v2137 = vld [vmem:[#allocation3 + $0x10] sm:$0xff]
      %v2138 = vld [vmem:[#allocation3 + $0x18] sm:$0xf]
      %v2143 = vcombine.high %v2135, %v2135
      %v2144 = vcombine.high %v2136, %v2136
      %v2145 = vcombine.high %v2137, %v2137
      %2146 = vrot.lane.b32.xlu0 %v2135, 126
      %v2147 = vpop.permute.xlu0 %2146
      %2148 = vrot.lane.b32.xlu0 %v2143, 126
      %v2149 = vpop.permute.xlu0 %2148
      %2150 = vrot.lane.b32.xlu0 %v2136, 126
      %v2151 = vpop.permute.xlu0 %2150
      %2152 = vrot.lane.b32.xlu0 %v2144, 126
      %v2153 = vpop.permute.xlu0 %2152
      %2154 = vrot.lane.b32.xlu0 %v2137, 126
      %v2155 = vpop.permute.xlu0 %2154
      %2156 = vrot.lane.b32.xlu0 %v2145, 126
      %v2157 = vpop.permute.xlu0 %2156
      %2158 = vrot.lane.b32.xlu0 %v2138, 126
      %v2159 = vpop.permute.xlu0 %2158
      %v2160 = vsel %vm375, %v2147, %v2149
      %v2161 = vsel %vm375, %v2149, %v2151
      %v2162 = vsel %vm375, %v2151, %v2153
      %v2163 = vsel %vm375, %v2153, %v2155
      %v2164 = vsel %vm375, %v2155, %v2157
      %v2165 = vsel %vm375, %v2157, %v2159
      %2173 = vst [vmem:[#allocation2 + $0x38] sm:$0xf] %v2160
      %2174 = vst [vmem:[#allocation2 + $0x40] sm:$0xf] %v2161
      %2175 = vst [vmem:[#allocation2 + $0x48] sm:$0xf] %v2162
      %2176 = vst [vmem:[#allocation2 + $0x50] sm:$0xf] %v2163
      %2177 = vst [vmem:[#allocation2 + $0x58] sm:$0xf] %v2164
      %2178 = vst [vmem:[#allocation2 + $0x60] sm:$0xf] %v2165
      %2179 = vst.msk [vmem:[#allocation2 + $0x68] sm:$0xf] %vm300, %v2159
      %v2180 = vld [vmem:[#allocation3] sm:$0xff]
      %v2181 = vld [vmem:[#allocation3 + $0x8] sm:$0xff]
      %v2182 = vld [vmem:[#allocation3 + $0x10] sm:$0xff]
      %v2183 = vld [vmem:[#allocation3 + $0x18] sm:$0xf]
      %v2188 = vcombine.low %v2180, %v2180
      %v2189 = vcombine.low %v2181, %v2181
      %v2190 = vcombine.low %v2182, %v2182
      %v2191 = vcombine.low %v2183, %v2183
      %2192 = vrot.lane.b32.xlu0 %v2188, 118
      %v2193 = vpop.permute.xlu0 %2192
      %2194 = vrot.lane.b32.xlu0 %v2180, 118
      %v2195 = vpop.permute.xlu0 %2194
      %2196 = vrot.lane.b32.xlu0 %v2189, 118
      %v2197 = vpop.permute.xlu0 %2196
      %2198 = vrot.lane.b32.xlu0 %v2181, 118
      %v2199 = vpop.permute.xlu0 %2198
      %2200 = vrot.lane.b32.xlu0 %v2190, 118
      %v2201 = vpop.permute.xlu0 %2200
      %2202 = vrot.lane.b32.xlu0 %v2182, 118
      %v2203 = vpop.permute.xlu0 %2202
      %2204 = vrot.lane.b32.xlu0 %v2191, 118
      %v2205 = vpop.permute.xlu0 %2204
      %v2206 = vsel %vm422, %v2193, %v2195
      %v2207 = vsel %vm422, %v2195, %v2197
      %v2208 = vsel %vm422, %v2197, %v2199
      %v2209 = vsel %vm422, %v2199, %v2201
      %v2210 = vsel %vm422, %v2201, %v2203
      %v2211 = vsel %vm422, %v2203, %v2205
      %2219 = vst [vmem:[#allocation2 + $0x38] sm:$0xf0] %v2206
      %2220 = vst [vmem:[#allocation2 + $0x40] sm:$0xf0] %v2207
      %2221 = vst [vmem:[#allocation2 + $0x48] sm:$0xf0] %v2208
      %2222 = vst [vmem:[#allocation2 + $0x50] sm:$0xf0] %v2209
      %2223 = vst [vmem:[#allocation2 + $0x58] sm:$0xf0] %v2210
      %2224 = vst [vmem:[#allocation2 + $0x60] sm:$0xf0] %v2211
      %2225 = vst.msk [vmem:[#allocation2 + $0x68] sm:$0xf0] %vm348, %v2205
      %v2226 = vld [vmem:[#allocation3] sm:$0xff]
      %v2227 = vld [vmem:[#allocation3 + $0x8] sm:$0xff]
      %v2228 = vld [vmem:[#allocation3 + $0x10] sm:$0xff]
      %v2229 = vld [vmem:[#allocation3 + $0x18] sm:$0xf]
      %v2234 = vcombine.high %v2226, %v2226
      %v2235 = vcombine.high %v2227, %v2227
      %v2236 = vcombine.high %v2228, %v2228
      %2237 = vrot.lane.b32.xlu0 %v2226, 117
      %v2238 = vpop.permute.xlu0 %2237
      %2239 = vrot.lane.b32.xlu0 %v2234, 117
      %v2240 = vpop.permute.xlu0 %2239
      %2241 = vrot.lane.b32.xlu0 %v2227, 117
      %v2242 = vpop.permute.xlu0 %2241
      %2243 = vrot.lane.b32.xlu0 %v2235, 117
      %v2244 = vpop.permute.xlu0 %2243
      %2245 = vrot.lane.b32.xlu0 %v2228, 117
      %v2246 = vpop.permute.xlu0 %2245
      %2247 = vrot.lane.b32.xlu0 %v2236, 117
      %v2248 = vpop.permute.xlu0 %2247
      %2249 = vrot.lane.b32.xlu0 %v2229, 117
      %v2250 = vpop.permute.xlu0 %2249
      %v2251 = vsel %vm468, %v2238, %v2240
      %v2252 = vsel %vm468, %v2240, %v2242
      %v2253 = vsel %vm468, %v2242, %v2244
      %v2254 = vsel %vm468, %v2244, %v2246
      %v2255 = vsel %vm468, %v2246, %v2248
      %v2256 = vsel %vm468, %v2248, %v2250
      %2264 = vst [vmem:[#allocation2 + $0x70] sm:$0xf] %v2251
      %2265 = vst [vmem:[#allocation2 + $0x78] sm:$0xf] %v2252
      %2266 = vst [vmem:[#allocation2 + $0x80] sm:$0xf] %v2253
      %2267 = vst [vmem:[#allocation2 + $0x88] sm:$0xf] %v2254
      %2268 = vst [vmem:[#allocation2 + $0x90] sm:$0xf] %v2255
      %2269 = vst [vmem:[#allocation2 + $0x98] sm:$0xf] %v2256
      %2270 = vst.msk [vmem:[#allocation2 + $0xa0] sm:$0xf] %vm300, %v2250
      %v2271 = vld [vmem:[#allocation3] sm:$0xff]
      %v2272 = vld [vmem:[#allocation3 + $0x8] sm:$0xff]
      %v2273 = vld [vmem:[#allocation3 + $0x10] sm:$0xff]
      %v2274 = vld [vmem:[#allocation3 + $0x18] sm:$0xf]
      %v2279 = vcombine.low %v2271, %v2271
      %v2280 = vcombine.low %v2272, %v2272
      %v2281 = vcombine.low %v2273, %v2273
      %v2282 = vcombine.low %v2274, %v2274
      %2283 = vrot.lane.b32.xlu0 %v2279, 116
      %v2284 = vpop.permute.xlu0 %2283
      %2285 = vrot.lane.b32.xlu0 %v2271, 116
      %v2286 = vpop.permute.xlu0 %2285
      %2287 = vrot.lane.b32.xlu0 %v2280, 116
      %v2288 = vpop.permute.xlu0 %2287
      %2289 = vrot.lane.b32.xlu0 %v2272, 116
      %v2290 = vpop.permute.xlu0 %2289
      %2291 = vrot.lane.b32.xlu0 %v2281, 116
      %v2292 = vpop.permute.xlu0 %2291
      %2293 = vrot.lane.b32.xlu0 %v2273, 116
      %v2294 = vpop.permute.xlu0 %2293
      %2295 = vrot.lane.b32.xlu0 %v2282, 116
      %v2296 = vpop.permute.xlu0 %2295
      %v2297 = vsel %vm515, %v2284, %v2286
      %v2298 = vsel %vm515, %v2286, %v2288
      %v2299 = vsel %vm515, %v2288, %v2290
      %v2300 = vsel %vm515, %v2290, %v2292
      %v2301 = vsel %vm515, %v2292, %v2294
      %v2302 = vsel %vm515, %v2294, %v2296
      %2310 = vst [vmem:[#allocation2 + $0x70] sm:$0xf0] %v2297
      %2311 = vst [vmem:[#allocation2 + $0x78] sm:$0xf0] %v2298
      %2312 = vst [vmem:[#allocation2 + $0x80] sm:$0xf0] %v2299
      %2313 = vst [vmem:[#allocation2 + $0x88] sm:$0xf0] %v2300
      %2314 = vst [vmem:[#allocation2 + $0x90] sm:$0xf0] %v2301
      %2315 = vst [vmem:[#allocation2 + $0x98] sm:$0xf0] %v2302
      %2316 = vst.msk [vmem:[#allocation2 + $0xa0] sm:$0xf0] %vm348, %v2296
      %v2317 = vld [vmem:[#allocation3] sm:$0xff]
      %v2318 = vld [vmem:[#allocation3 + $0x8] sm:$0xff]
      %v2319 = vld [vmem:[#allocation3 + $0x10] sm:$0xff]
      %v2320 = vld [vmem:[#allocation3 + $0x18] sm:$0xf]
      %v2325 = vcombine.high %v2317, %v2317
      %v2326 = vcombine.high %v2318, %v2318
      %v2327 = vcombine.high %v2319, %v2319
      %2328 = vrot.lane.b32.xlu0 %v2317, 108
      %v2329 = vpop.permute.xlu0 %2328
      %2330 = vrot.lane.b32.xlu0 %v2325, 108
      %v2331 = vpop.permute.xlu0 %2330
      %2332 = vrot.lane.b32.xlu0 %v2318, 108
      %v2333 = vpop.permute.xlu0 %2332
      %2334 = vrot.lane.b32.xlu0 %v2326, 108
      %v2335 = vpop.permute.xlu0 %2334
      %2336 = vrot.lane.b32.xlu0 %v2319, 108
      %v2337 = vpop.permute.xlu0 %2336
      %2338 = vrot.lane.b32.xlu0 %v2327, 108
      %v2339 = vpop.permute.xlu0 %2338
      %2340 = vrot.lane.b32.xlu0 %v2320, 108
      %v2341 = vpop.permute.xlu0 %2340
      %v2342 = vsel %vm561, %v2329, %v2331
      %v2343 = vsel %vm561, %v2331, %v2333
      %v2344 = vsel %vm561, %v2333, %v2335
      %v2345 = vsel %vm561, %v2335, %v2337
      %v2346 = vsel %vm561, %v2337, %v2339
      %v2347 = vsel %vm561, %v2339, %v2341
      %2355 = vst [vmem:[#allocation2 + $0xa8] sm:$0xf] %v2342
      %2356 = vst [vmem:[#allocation2 + $0xb0] sm:$0xf] %v2343
      %2357 = vst [vmem:[#allocation2 + $0xb8] sm:$0xf] %v2344
      %2358 = vst [vmem:[#allocation2 + $0xc0] sm:$0xf] %v2345
      %2359 = vst [vmem:[#allocation2 + $0xc8] sm:$0xf] %v2346
      %2360 = vst [vmem:[#allocation2 + $0xd0] sm:$0xf] %v2347
      %2361 = vst.msk [vmem:[#allocation2 + $0xd8] sm:$0xf] %vm300, %v2341
      %v2362 = vld [vmem:[#allocation3] sm:$0xff]
      %v2363 = vld [vmem:[#allocation3 + $0x8] sm:$0xff]
      %v2364 = vld [vmem:[#allocation3 + $0x10] sm:$0xff]
      %v2365 = vld [vmem:[#allocation3 + $0x18] sm:$0xf]
      %v2370 = vcombine.low %v2362, %v2362
      %v2371 = vcombine.low %v2363, %v2363
      %v2372 = vcombine.low %v2364, %v2364
      %v2373 = vcombine.low %v2365, %v2365
      %2374 = vrot.lane.b32.xlu0 %v2370, 107
      %v2375 = vpop.permute.xlu0 %2374
      %2376 = vrot.lane.b32.xlu0 %v2362, 107
      %v2377 = vpop.permute.xlu0 %2376
      %2378 = vrot.lane.b32.xlu0 %v2371, 107
      %v2379 = vpop.permute.xlu0 %2378
      %2380 = vrot.lane.b32.xlu0 %v2363, 107
      %v2381 = vpop.permute.xlu0 %2380
      %2382 = vrot.lane.b32.xlu0 %v2372, 107
      %v2383 = vpop.permute.xlu0 %2382
      %2384 = vrot.lane.b32.xlu0 %v2364, 107
      %v2385 = vpop.permute.xlu0 %2384
      %2386 = vrot.lane.b32.xlu0 %v2373, 107
      %v2387 = vpop.permute.xlu0 %2386
      %v2388 = vsel %vm608, %v2375, %v2377
      %v2389 = vsel %vm608, %v2377, %v2379
      %v2390 = vsel %vm608, %v2379, %v2381
      %v2391 = vsel %vm608, %v2381, %v2383
      %v2392 = vsel %vm608, %v2383, %v2385
      %v2393 = vsel %vm608, %v2385, %v2387
      %2401 = vst [vmem:[#allocation2 + $0xa8] sm:$0xf0] %v2388
      %2402 = vst [vmem:[#allocation2 + $0xb0] sm:$0xf0] %v2389
      %2403 = vst [vmem:[#allocation2 + $0xb8] sm:$0xf0] %v2390
      %2404 = vst [vmem:[#allocation2 + $0xc0] sm:$0xf0] %v2391
      %2405 = vst [vmem:[#allocation2 + $0xc8] sm:$0xf0] %v2392
      %2406 = vst [vmem:[#allocation2 + $0xd0] sm:$0xf0] %v2393
      %2407 = vst.msk [vmem:[#allocation2 + $0xd8] sm:$0xf0] %vm348, %v2387
      %v2408 = vld [vmem:[#allocation3] sm:$0xff]
      %v2409 = vld [vmem:[#allocation3 + $0x8] sm:$0xff]
      %v2410 = vld [vmem:[#allocation3 + $0x10] sm:$0xff]
      %v2411 = vld [vmem:[#allocation3 + $0x18] sm:$0xf]
      %v2416 = vcombine.high %v2408, %v2408
      %v2417 = vcombine.high %v2409, %v2409
      %v2418 = vcombine.high %v2410, %v2410
      %2419 = vrot.lane.b32.xlu0 %v2408, 106
      %v2420 = vpop.permute.xlu0 %2419
      %2421 = vrot.lane.b32.xlu0 %v2416, 106
      %v2422 = vpop.permute.xlu0 %2421
      %2423 = vrot.lane.b32.xlu0 %v2409, 106
      %v2424 = vpop.permute.xlu0 %2423
      %2425 = vrot.lane.b32.xlu0 %v2417, 106
      %v2426 = vpop.permute.xlu0 %2425
      %2427 = vrot.lane.b32.xlu0 %v2410, 106
      %v2428 = vpop.permute.xlu0 %2427
      %2429 = vrot.lane.b32.xlu0 %v2418, 106
      %v2430 = vpop.permute.xlu0 %2429
      %2431 = vrot.lane.b32.xlu0 %v2411, 106
      %v2432 = vpop.permute.xlu0 %2431
      %v2433 = vsel %vm654, %v2420, %v2422
      %v2434 = vsel %vm654, %v2422, %v2424
      %v2435 = vsel %vm654, %v2424, %v2426
      %v2436 = vsel %vm654, %v2426, %v2428
      %v2437 = vsel %vm654, %v2428, %v2430
      %v2438 = vsel %vm654, %v2430, %v2432
      %2446 = vst [vmem:[#allocation2 + $0xe0] sm:$0xf] %v2433
      %2447 = vst [vmem:[#allocation2 + $0xe8] sm:$0xf] %v2434
      %2448 = vst [vmem:[#allocation2 + $0xf0] sm:$0xf] %v2435
      %2449 = vst [vmem:[#allocation2 + $0xf8] sm:$0xf] %v2436
      %2450 = vst [vmem:[#allocation2 + $0x100] sm:$0xf] %v2437
      %2451 = vst [vmem:[#allocation2 + $0x108] sm:$0xf] %v2438
      %2452 = vst.msk [vmem:[#allocation2 + $0x110] sm:$0xf] %vm300, %v2432
      %v2453 = vld [vmem:[#allocation3] sm:$0xff]
      %v2454 = vld [vmem:[#allocation3 + $0x8] sm:$0xff]
      %v2455 = vld [vmem:[#allocation3 + $0x10] sm:$0xff]
      %v2456 = vld [vmem:[#allocation3 + $0x18] sm:$0xff]
      %v2461 = vcombine.low %v2453, %v2453
      %v2462 = vcombine.low %v2454, %v2454
      %v2463 = vcombine.low %v2455, %v2455
      %v2464 = vcombine.low %v2456, %v2456
      %2465 = vrot.lane.b32.xlu0 %v2461, 28
      %v2466 = vpop.permute.xlu0 %2465
      %2467 = vrot.lane.b32.xlu0 %v2453, 28
      %v2468 = vpop.permute.xlu0 %2467
      %2469 = vrot.lane.b32.xlu0 %v2462, 28
      %v2470 = vpop.permute.xlu0 %2469
      %2471 = vrot.lane.b32.xlu0 %v2454, 28
      %v2472 = vpop.permute.xlu0 %2471
      %2473 = vrot.lane.b32.xlu0 %v2463, 28
      %v2474 = vpop.permute.xlu0 %2473
      %2475 = vrot.lane.b32.xlu0 %v2455, 28
      %v2476 = vpop.permute.xlu0 %2475
      %2477 = vrot.lane.b32.xlu0 %v2464, 28
      %v2478 = vpop.permute.xlu0 %2477
      %2479 = vrot.lane.b32.xlu0 %v2456, 28
      %v2480 = vpop.permute.xlu0 %2479
      %v2481 = vsel %vm703, %v2466, %v2468
      %v2482 = vsel %vm703, %v2468, %v2470
      %v2483 = vsel %vm703, %v2470, %v2472
      %v2484 = vsel %vm703, %v2472, %v2474
      %v2485 = vsel %vm703, %v2474, %v2476
      %v2486 = vsel %vm703, %v2476, %v2478
      %v2487 = vsel %vm703, %v2478, %v2480
      %2495 = vst [vmem:[#allocation2 + $0xe0] sm:$0xf0] %v2481
      %2496 = vst [vmem:[#allocation2 + $0xe8] sm:$0xf0] %v2482
      %2497 = vst [vmem:[#allocation2 + $0xf0] sm:$0xf0] %v2483
      %2498 = vst [vmem:[#allocation2 + $0xf8] sm:$0xf0] %v2484
      %2499 = vst [vmem:[#allocation2 + $0x100] sm:$0xf0] %v2485
      %2500 = vst [vmem:[#allocation2 + $0x108] sm:$0xf0] %v2486
      %2501 = vst.msk [vmem:[#allocation2 + $0x110] sm:$0xf0] %vm348, %v2487
      %v2502 = vld [vmem:[#allocation3] sm:$0xff]
      %v2503 = vld [vmem:[#allocation3 + $0x8] sm:$0xff]
      %v2504 = vld [vmem:[#allocation3 + $0x10] sm:$0xff]
      %v2505 = vld [vmem:[#allocation3 + $0x18] sm:$0xff]
      %v2510 = vcombine.high %v2502, %v2502
      %v2511 = vcombine.high %v2503, %v2503
      %v2512 = vcombine.high %v2504, %v2504
      %v2513 = vcombine.high %v2505, %v2505
      %2514 = vrot.lane.b32.xlu0 %v2502, 27
      %v2515 = vpop.permute.xlu0 %2514
      %2516 = vrot.lane.b32.xlu0 %v2510, 27
      %v2517 = vpop.permute.xlu0 %2516
      %2518 = vrot.lane.b32.xlu0 %v2503, 27
      %v2519 = vpop.permute.xlu0 %2518
      %2520 = vrot.lane.b32.xlu0 %v2511, 27
      %v2521 = vpop.permute.xlu0 %2520
      %2522 = vrot.lane.b32.xlu0 %v2504, 27
      %v2523 = vpop.permute.xlu0 %2522
      %2524 = vrot.lane.b32.xlu0 %v2512, 27
      %v2525 = vpop.permute.xlu0 %2524
      %2526 = vrot.lane.b32.xlu0 %v2505, 27
      %v2527 = vpop.permute.xlu0 %2526
      %2528 = vrot.lane.b32.xlu0 %v2513, 27
      %v2529 = vpop.permute.xlu0 %2528
      %v2530 = vsel %vm753, %v2515, %v2517
      %v2531 = vsel %vm753, %v2517, %v2519
      %v2532 = vsel %vm753, %v2519, %v2521
      %v2533 = vsel %vm753, %v2521, %v2523
      %v2534 = vsel %vm753, %v2523, %v2525
      %v2535 = vsel %vm753, %v2525, %v2527
      %v2536 = vsel %vm753, %v2527, %v2529
      %2544 = vst [vmem:[#allocation2 + $0x118] sm:$0xf] %v2530
      %2545 = vst [vmem:[#allocation2 + $0x120] sm:$0xf] %v2531
      %2546 = vst [vmem:[#allocation2 + $0x128] sm:$0xf] %v2532
      %2547 = vst [vmem:[#allocation2 + $0x130] sm:$0xf] %v2533
      %2548 = vst [vmem:[#allocation2 + $0x138] sm:$0xf] %v2534
      %2549 = vst [vmem:[#allocation2 + $0x140] sm:$0xf] %v2535
      %2550 = vst.msk [vmem:[#allocation2 + $0x148] sm:$0xf] %vm300, %v2536
      %v2551 = vld [vmem:[#allocation3] sm:$0xff]
      %v2552 = vld [vmem:[#allocation3 + $0x8] sm:$0xff]
      %v2553 = vld [vmem:[#allocation3 + $0x10] sm:$0xff]
      %v2554 = vld [vmem:[#allocation3 + $0x18] sm:$0xff]
      %v2559 = vcombine.low %v2551, %v2551
      %v2560 = vcombine.low %v2552, %v2552
      %v2561 = vcombine.low %v2553, %v2553
      %v2562 = vcombine.low %v2554, %v2554
      %2563 = vrot.lane.b32.xlu0 %v2559, 26
      %v2564 = vpop.permute.xlu0 %2563
      %2565 = vrot.lane.b32.xlu0 %v2551, 26
      %v2566 = vpop.permute.xlu0 %2565
      %2567 = vrot.lane.b32.xlu0 %v2560, 26
      %v2568 = vpop.permute.xlu0 %2567
      %2569 = vrot.lane.b32.xlu0 %v2552, 26
      %v2570 = vpop.permute.xlu0 %2569
      %2571 = vrot.lane.b32.xlu0 %v2561, 26
      %v2572 = vpop.permute.xlu0 %2571
      %2573 = vrot.lane.b32.xlu0 %v2553, 26
      %v2574 = vpop.permute.xlu0 %2573
      %2575 = vrot.lane.b32.xlu0 %v2562, 26
      %v2576 = vpop.permute.xlu0 %2575
      %2577 = vrot.lane.b32.xlu0 %v2554, 26
      %v2578 = vpop.permute.xlu0 %2577
      %v2579 = vsel %vm803, %v2564, %v2566
      %v2580 = vsel %vm803, %v2566, %v2568
      %v2581 = vsel %vm803, %v2568, %v2570
      %v2582 = vsel %vm803, %v2570, %v2572
      %v2583 = vsel %vm803, %v2572, %v2574
      %v2584 = vsel %vm803, %v2574, %v2576
      %v2585 = vsel %vm803, %v2576, %v2578
      %2593 = vst [vmem:[#allocation2 + $0x118] sm:$0xf0] %v2579
      %2594 = vst [vmem:[#allocation2 + $0x120] sm:$0xf0] %v2580
      %2595 = vst [vmem:[#allocation2 + $0x128] sm:$0xf0] %v2581
      %2596 = vst [vmem:[#allocation2 + $0x130] sm:$0xf0] %v2582
      %2597 = vst [vmem:[#allocation2 + $0x138] sm:$0xf0] %v2583
      %2598 = vst [vmem:[#allocation2 + $0x140] sm:$0xf0] %v2584
      %2599 = vst.msk [vmem:[#allocation2 + $0x148] sm:$0xf0] %vm348, %v2585
      %v2600 = vld [vmem:[#allocation3] sm:$0xff]
      %v2601 = vld [vmem:[#allocation3 + $0x8] sm:$0xff]
      %v2602 = vld [vmem:[#allocation3 + $0x10] sm:$0xff]
      %v2603 = vld [vmem:[#allocation3 + $0x18] sm:$0xff]
      %v2608 = vcombine.high %v2600, %v2600
      %v2609 = vcombine.high %v2601, %v2601
      %v2610 = vcombine.high %v2602, %v2602
      %v2611 = vcombine.high %v2603, %v2603
      %2612 = vrot.lane.b32.xlu0 %v2600, 18
      %v2613 = vpop.permute.xlu0 %2612
      %2614 = vrot.lane.b32.xlu0 %v2608, 18
      %v2615 = vpop.permute.xlu0 %2614
      %2616 = vrot.lane.b32.xlu0 %v2601, 18
      %v2617 = vpop.permute.xlu0 %2616
      %2618 = vrot.lane.b32.xlu0 %v2609, 18
      %v2619 = vpop.permute.xlu0 %2618
      %2620 = vrot.lane.b32.xlu0 %v2602, 18
      %v2621 = vpop.permute.xlu0 %2620
      %2622 = vrot.lane.b32.xlu0 %v2610, 18
      %v2623 = vpop.permute.xlu0 %2622
      %2624 = vrot.lane.b32.xlu0 %v2603, 18
      %v2625 = vpop.permute.xlu0 %2624
      %2626 = vrot.lane.b32.xlu0 %v2611, 18
      %v2627 = vpop.permute.xlu0 %2626
      %v2628 = vsel %vm853, %v2613, %v2615
      %v2629 = vsel %vm853, %v2615, %v2617
      %v2630 = vsel %vm853, %v2617, %v2619
      %v2631 = vsel %vm853, %v2619, %v2621
      %v2632 = vsel %vm853, %v2621, %v2623
      %v2633 = vsel %vm853, %v2623, %v2625
      %v2634 = vsel %vm853, %v2625, %v2627
      %2642 = vst [vmem:[#allocation2 + $0x150] sm:$0xf] %v2628
      %2643 = vst [vmem:[#allocation2 + $0x158] sm:$0xf] %v2629
      %2644 = vst [vmem:[#allocation2 + $0x160] sm:$0xf] %v2630
      %2645 = vst [vmem:[#allocation2 + $0x168] sm:$0xf] %v2631
      %2646 = vst [vmem:[#allocation2 + $0x170] sm:$0xf] %v2632
      %2647 = vst [vmem:[#allocation2 + $0x178] sm:$0xf] %v2633
      %2648 = vst.msk [vmem:[#allocation2 + $0x180] sm:$0xf] %vm300, %v2634
      %v2649 = vld [vmem:[#allocation3] sm:$0xff]
      %v2650 = vld [vmem:[#allocation3 + $0x8] sm:$0xff]
      %v2651 = vld [vmem:[#allocation3 + $0x10] sm:$0xff]
      %v2652 = vld [vmem:[#allocation3 + $0x18] sm:$0xff]
      %v2657 = vcombine.low %v2649, %v2649
      %v2658 = vcombine.low %v2650, %v2650
      %v2659 = vcombine.low %v2651, %v2651
      %v2660 = vcombine.low %v2652, %v2652
      %2661 = vrot.lane.b32.xlu0 %v2657, 17
      %v2662 = vpop.permute.xlu0 %2661
      %2663 = vrot.lane.b32.xlu0 %v2649, 17
      %v2664 = vpop.permute.xlu0 %2663
      %2665 = vrot.lane.b32.xlu0 %v2658, 17
      %v2666 = vpop.permute.xlu0 %2665
      %2667 = vrot.lane.b32.xlu0 %v2650, 17
      %v2668 = vpop.permute.xlu0 %2667
      %2669 = vrot.lane.b32.xlu0 %v2659, 17
      %v2670 = vpop.permute.xlu0 %2669
      %2671 = vrot.lane.b32.xlu0 %v2651, 17
      %v2672 = vpop.permute.xlu0 %2671
      %2673 = vrot.lane.b32.xlu0 %v2660, 17
      %v2674 = vpop.permute.xlu0 %2673
      %2675 = vrot.lane.b32.xlu0 %v2652, 17
      %v2676 = vpop.permute.xlu0 %2675
      %v2677 = vsel %vm903, %v2662, %v2664
      %v2678 = vsel %vm903, %v2664, %v2666
      %v2679 = vsel %vm903, %v2666, %v2668
      %v2680 = vsel %vm903, %v2668, %v2670
      %v2681 = vsel %vm903, %v2670, %v2672
      %v2682 = vsel %vm903, %v2672, %v2674
      %v2683 = vsel %vm903, %v2674, %v2676
      %2691 = vst [vmem:[#allocation2 + $0x150] sm:$0xf0] %v2677
      %2692 = vst [vmem:[#allocation2 + $0x158] sm:$0xf0] %v2678
      %2693 = vst [vmem:[#allocation2 + $0x160] sm:$0xf0] %v2679
      %2694 = vst [vmem:[#allocation2 + $0x168] sm:$0xf0] %v2680
      %2695 = vst [vmem:[#allocation2 + $0x170] sm:$0xf0] %v2681
      %2696 = vst [vmem:[#allocation2 + $0x178] sm:$0xf0] %v2682
      %2697 = vst.msk [vmem:[#allocation2 + $0x180] sm:$0xf0] %vm348, %v2683
      %v2698 = vld [vmem:[#allocation3] sm:$0xff]
      %v2699 = vld [vmem:[#allocation3 + $0x8] sm:$0xff]
      %v2700 = vld [vmem:[#allocation3 + $0x10] sm:$0xff]
      %v2701 = vld [vmem:[#allocation3 + $0x18] sm:$0xff]
      %v2706 = vcombine.high %v2698, %v2698
      %v2707 = vcombine.high %v2699, %v2699
      %v2708 = vcombine.high %v2700, %v2700
      %v2709 = vcombine.high %v2701, %v2701
      %2710 = vrot.lane.b32.xlu0 %v2698, 16
      %v2711 = vpop.permute.xlu0 %2710
      %2712 = vrot.lane.b32.xlu0 %v2706, 16
      %v2713 = vpop.permute.xlu0 %2712
      %2714 = vrot.lane.b32.xlu0 %v2699, 16
      %v2715 = vpop.permute.xlu0 %2714
      %2716 = vrot.lane.b32.xlu0 %v2707, 16
      %v2717 = vpop.permute.xlu0 %2716
      %2718 = vrot.lane.b32.xlu0 %v2700, 16
      %v2719 = vpop.permute.xlu0 %2718
      %2720 = vrot.lane.b32.xlu0 %v2708, 16
      %v2721 = vpop.permute.xlu0 %2720
      %2722 = vrot.lane.b32.xlu0 %v2701, 16
      %v2723 = vpop.permute.xlu0 %2722
      %2724 = vrot.lane.b32.xlu0 %v2709, 16
      %v2725 = vpop.permute.xlu0 %2724
      %v2726 = vsel %vm953, %v2711, %v2713
      %v2727 = vsel %vm953, %v2713, %v2715
      %v2728 = vsel %vm953, %v2715, %v2717
      %v2729 = vsel %vm953, %v2717, %v2719
      %v2730 = vsel %vm953, %v2719, %v2721
      %v2731 = vsel %vm953, %v2721, %v2723
      %v2732 = vsel %vm953, %v2723, %v2725
      %2740 = vst [vmem:[#allocation2 + $0x188] sm:$0xf] %v2726
      %2741 = vst [vmem:[#allocation2 + $0x190] sm:$0xf] %v2727
      %2742 = vst [vmem:[#allocation2 + $0x198] sm:$0xf] %v2728
      %2743 = vst [vmem:[#allocation2 + $0x1a0] sm:$0xf] %v2729
      %2744 = vst [vmem:[#allocation2 + $0x1a8] sm:$0xf] %v2730
      %2745 = vst [vmem:[#allocation2 + $0x1b0] sm:$0xf] %v2731
      %2746 = vst.msk [vmem:[#allocation2 + $0x1b8] sm:$0xf] %vm300, %v2732
      %v2747 = vld [vmem:[#allocation3] sm:$0xff]
      %v2748 = vld [vmem:[#allocation3 + $0x8] sm:$0xff]
      %v2749 = vld [vmem:[#allocation3 + $0x10] sm:$0xff]
      %v2750 = vld [vmem:[#allocation3 + $0x18] sm:$0xff]
      %v2755 = vcombine.low %v2747, %v2747
      %v2756 = vcombine.low %v2748, %v2748
      %v2757 = vcombine.low %v2749, %v2749
      %v2758 = vcombine.low %v2750, %v2750
      %2759 = vrot.lane.b32.xlu0 %v2755, 8
      %v2760 = vpop.permute.xlu0 %2759
      %2761 = vrot.lane.b32.xlu0 %v2747, 8
      %v2762 = vpop.permute.xlu0 %2761
      %2763 = vrot.lane.b32.xlu0 %v2756, 8
      %v2764 = vpop.permute.xlu0 %2763
      %2765 = vrot.lane.b32.xlu0 %v2748, 8
      %v2766 = vpop.permute.xlu0 %2765
      %2767 = vrot.lane.b32.xlu0 %v2757, 8
      %v2768 = vpop.permute.xlu0 %2767
      %2769 = vrot.lane.b32.xlu0 %v2749, 8
      %v2770 = vpop.permute.xlu0 %2769
      %2771 = vrot.lane.b32.xlu0 %v2758, 8
      %v2772 = vpop.permute.xlu0 %2771
      %2773 = vrot.lane.b32.xlu0 %v2750, 8
      %v2774 = vpop.permute.xlu0 %2773
      %v2775 = vsel %vm1003, %v2760, %v2762
      %v2776 = vsel %vm1003, %v2762, %v2764
      %v2777 = vsel %vm1003, %v2764, %v2766
      %v2778 = vsel %vm1003, %v2766, %v2768
      %v2779 = vsel %vm1003, %v2768, %v2770
      %v2780 = vsel %vm1003, %v2770, %v2772
      %v2781 = vsel %vm1003, %v2772, %v2774
      %2789 = vst [vmem:[#allocation2 + $0x188] sm:$0xf0] %v2775
      %2790 = vst [vmem:[#allocation2 + $0x190] sm:$0xf0] %v2776
      %2791 = vst [vmem:[#allocation2 + $0x198] sm:$0xf0] %v2777
      %2792 = vst [vmem:[#allocation2 + $0x1a0] sm:$0xf0] %v2778
      %2793 = vst [vmem:[#allocation2 + $0x1a8] sm:$0xf0] %v2779
      %2794 = vst [vmem:[#allocation2 + $0x1b0] sm:$0xf0] %v2780
      %2795 = vst.msk [vmem:[#allocation2 + $0x1b8] sm:$0xf0] %vm348, %v2781
      %v2796 = vld [vmem:[#allocation3] sm:$0xff]
      %v2797 = vld [vmem:[#allocation3 + $0x8] sm:$0xff]
      %v2798 = vld [vmem:[#allocation3 + $0x10] sm:$0xff]
      %v2799 = vld [vmem:[#allocation3 + $0x18] sm:$0xff]
      %v2804 = vcombine.high %v2796, %v2796
      %v2805 = vcombine.high %v2797, %v2797
      %v2806 = vcombine.high %v2798, %v2798
      %v2807 = vcombine.high %v2799, %v2799
      %2808 = vrot.lane.b32.xlu0 %v2796, 7
      %v2809 = vpop.permute.xlu0 %2808
      %2810 = vrot.lane.b32.xlu0 %v2804, 7
      %v2811 = vpop.permute.xlu0 %2810
      %2812 = vrot.lane.b32.xlu0 %v2797, 7
      %v2813 = vpop.permute.xlu0 %2812
      %2814 = vrot.lane.b32.xlu0 %v2805, 7
      %v2815 = vpop.permute.xlu0 %2814
      %2816 = vrot.lane.b32.xlu0 %v2798, 7
      %v2817 = vpop.permute.xlu0 %2816
      %2818 = vrot.lane.b32.xlu0 %v2806, 7
      %v2819 = vpop.permute.xlu0 %2818
      %2820 = vrot.lane.b32.xlu0 %v2799, 7
      %v2821 = vpop.permute.xlu0 %2820
      %2822 = vrot.lane.b32.xlu0 %v2807, 7
      %v2823 = vpop.permute.xlu0 %2822
      %v2824 = vsel %vm1053, %v2809, %v2811
      %v2825 = vsel %vm1053, %v2811, %v2813
      %v2826 = vsel %vm1053, %v2813, %v2815
      %v2827 = vsel %vm1053, %v2815, %v2817
      %v2828 = vsel %vm1053, %v2817, %v2819
      %v2829 = vsel %vm1053, %v2819, %v2821
      %v2830 = vsel %vm1053, %v2821, %v2823
      %2838 = vst [vmem:[#allocation2 + $0x1c0] sm:$0xf] %v2824
      %2839 = vst [vmem:[#allocation2 + $0x1c8] sm:$0xf] %v2825
      %2840 = vst [vmem:[#allocation2 + $0x1d0] sm:$0xf] %v2826
      %2841 = vst [vmem:[#allocation2 + $0x1d8] sm:$0xf] %v2827
      %2842 = vst [vmem:[#allocation2 + $0x1e0] sm:$0xf] %v2828
      %2843 = vst [vmem:[#allocation2 + $0x1e8] sm:$0xf] %v2829
      %2844 = vst.msk [vmem:[#allocation2 + $0x1f0] sm:$0xf] %vm300, %v2830
      %v2845 = vld [vmem:[#allocation3] sm:$0xff]
      %v2846 = vld [vmem:[#allocation3 + $0x8] sm:$0xff]
      %v2847 = vld [vmem:[#allocation3 + $0x10] sm:$0xff]
      %v2848 = vld [vmem:[#allocation3 + $0x18] sm:$0xff]
      %v2853 = vcombine.low %v2845, %v2845
      %v2854 = vcombine.low %v2846, %v2846
      %v2855 = vcombine.low %v2847, %v2847
      %v2856 = vcombine.low %v2848, %v2848
      %2857 = vrot.lane.b32.xlu0 %v2853, 6
      %v2858 = vpop.permute.xlu0 %2857
      %2859 = vrot.lane.b32.xlu0 %v2845, 6
      %v2860 = vpop.permute.xlu0 %2859
      %2861 = vrot.lane.b32.xlu0 %v2854, 6
      %v2862 = vpop.permute.xlu0 %2861
      %2863 = vrot.lane.b32.xlu0 %v2846, 6
      %v2864 = vpop.permute.xlu0 %2863
      %2865 = vrot.lane.b32.xlu0 %v2855, 6
      %v2866 = vpop.permute.xlu0 %2865
      %2867 = vrot.lane.b32.xlu0 %v2847, 6
      %v2868 = vpop.permute.xlu0 %2867
      %2869 = vrot.lane.b32.xlu0 %v2856, 6
      %v2870 = vpop.permute.xlu0 %2869
      %2871 = vrot.lane.b32.xlu0 %v2848, 6
      %v2872 = vpop.permute.xlu0 %2871
      %v2873 = vsel %vm1103, %v2858, %v2860
      %v2874 = vsel %vm1103, %v2860, %v2862
      %v2875 = vsel %vm1103, %v2862, %v2864
      %v2876 = vsel %vm1103, %v2864, %v2866
      %v2877 = vsel %vm1103, %v2866, %v2868
      %v2878 = vsel %vm1103, %v2868, %v2870
      %v2879 = vsel %vm1103, %v2870, %v2872
      %2887 = vst [vmem:[#allocation2 + $0x1c0] sm:$0xf0] %v2873
      %2888 = vst [vmem:[#allocation2 + $0x1c8] sm:$0xf0] %v2874
      %2889 = vst [vmem:[#allocation2 + $0x1d0] sm:$0xf0] %v2875
      %2890 = vst [vmem:[#allocation2 + $0x1d8] sm:$0xf0] %v2876
      %2891 = vst [vmem:[#allocation2 + $0x1e0] sm:$0xf0] %v2877
      %2892 = vst [vmem:[#allocation2 + $0x1e8] sm:$0xf0] %v2878
      %2893 = vst.msk [vmem:[#allocation2 + $0x1f0] sm:$0xf0] %vm348, %v2879
      %v2894 = vld [vmem:[#allocation3 + $0x4] sm:$0xff]
      %v2895 = vld [vmem:[#allocation3 + $0xc] sm:$0xff]
      %v2896 = vld [vmem:[#allocation3 + $0x14] sm:$0xff]
      %v2897 = vld [vmem:[#allocation3 + $0x1c] sm:$0xf]
      %v2902 = vcombine.high %v2894, %v2894
      %v2903 = vcombine.high %v2895, %v2895
      %v2904 = vcombine.high %v2896, %v2896
      %2905 = vrot.lane.b32.xlu0 %v2894, 56
      %v2906 = vpop.permute.xlu0 %2905
      %2907 = vrot.lane.b32.xlu0 %v2902, 56
      %v2908 = vpop.permute.xlu0 %2907
      %2909 = vrot.lane.b32.xlu0 %v2895, 56
      %v2910 = vpop.permute.xlu0 %2909
      %2911 = vrot.lane.b32.xlu0 %v2903, 56
      %v2912 = vpop.permute.xlu0 %2911
      %2913 = vrot.lane.b32.xlu0 %v2896, 56
      %v2914 = vpop.permute.xlu0 %2913
      %2915 = vrot.lane.b32.xlu0 %v2904, 56
      %v2916 = vpop.permute.xlu0 %2915
      %2917 = vrot.lane.b32.xlu0 %v2897, 56
      %v2918 = vpop.permute.xlu0 %2917
      %v2919 = vsel %vm1150, %v2906, %v2908
      %v2920 = vsel %vm1150, %v2908, %v2910
      %v2921 = vsel %vm1150, %v2910, %v2912
      %v2922 = vsel %vm1150, %v2912, %v2914
      %v2923 = vsel %vm1150, %v2914, %v2916
      %v2924 = vsel %vm1150, %v2916, %v2918
      %2932 = vst [vmem:[#allocation2 + $0x1f8] sm:$0xf] %v2919
      %2933 = vst [vmem:[#allocation2 + $0x200] sm:$0xf] %v2920
      %2934 = vst [vmem:[#allocation2 + $0x208] sm:$0xf] %v2921
      %2935 = vst [vmem:[#allocation2 + $0x210] sm:$0xf] %v2922
      %2936 = vst [vmem:[#allocation2 + $0x218] sm:$0xf] %v2923
      %2937 = vst [vmem:[#allocation2 + $0x220] sm:$0xf] %v2924
      %2938 = vst.msk [vmem:[#allocation2 + $0x228] sm:$0xf] %vm300, %v2918
      %v2939 = vld [vmem:[#allocation3 + $0x4] sm:$0xff]
      %v2940 = vld [vmem:[#allocation3 + $0xc] sm:$0xff]
      %v2941 = vld [vmem:[#allocation3 + $0x14] sm:$0xff]
      %v2942 = vld [vmem:[#allocation3 + $0x1c] sm:$0xf]
      %v2947 = vcombine.low %v2939, %v2939
      %v2948 = vcombine.low %v2940, %v2940
      %v2949 = vcombine.low %v2941, %v2941
      %v2950 = vcombine.low %v2942, %v2942
      %2951 = vrot.lane.b32.xlu0 %v2947, 55
      %v2952 = vpop.permute.xlu0 %2951
      %2953 = vrot.lane.b32.xlu0 %v2939, 55
      %v2954 = vpop.permute.xlu0 %2953
      %2955 = vrot.lane.b32.xlu0 %v2948, 55
      %v2956 = vpop.permute.xlu0 %2955
      %2957 = vrot.lane.b32.xlu0 %v2940, 55
      %v2958 = vpop.permute.xlu0 %2957
      %2959 = vrot.lane.b32.xlu0 %v2949, 55
      %v2960 = vpop.permute.xlu0 %2959
      %2961 = vrot.lane.b32.xlu0 %v2941, 55
      %v2962 = vpop.permute.xlu0 %2961
      %2963 = vrot.lane.b32.xlu0 %v2950, 55
      %v2964 = vpop.permute.xlu0 %2963
      %v2965 = vsel %vm1197, %v2952, %v2954
      %v2966 = vsel %vm1197, %v2954, %v2956
      %v2967 = vsel %vm1197, %v2956, %v2958
      %v2968 = vsel %vm1197, %v2958, %v2960
      %v2969 = vsel %vm1197, %v2960, %v2962
      %v2970 = vsel %vm1197, %v2962, %v2964
      %2978 = vst [vmem:[#allocation2 + $0x1f8] sm:$0xf0] %v2965
      %2979 = vst [vmem:[#allocation2 + $0x200] sm:$0xf0] %v2966
      %2980 = vst [vmem:[#allocation2 + $0x208] sm:$0xf0] %v2967
      %2981 = vst [vmem:[#allocation2 + $0x210] sm:$0xf0] %v2968
      %2982 = vst [vmem:[#allocation2 + $0x218] sm:$0xf0] %v2969
      %2983 = vst [vmem:[#allocation2 + $0x220] sm:$0xf0] %v2970
      %2984 = vst.msk [vmem:[#allocation2 + $0x228] sm:$0xf0] %vm348, %v2964
      %v2985 = vld [vmem:[#allocation3 + $0x4] sm:$0xff]
      %v2986 = vld [vmem:[#allocation3 + $0xc] sm:$0xff]
      %v2987 = vld [vmem:[#allocation3 + $0x14] sm:$0xff]
      %v2988 = vld [vmem:[#allocation3 + $0x1c] sm:$0xf]
      %v2993 = vcombine.high %v2985, %v2985
      %v2994 = vcombine.high %v2986, %v2986
      %v2995 = vcombine.high %v2987, %v2987
      %2996 = vrot.lane.b32.xlu0 %v2985, 54
      %v2997 = vpop.permute.xlu0 %2996
      %2998 = vrot.lane.b32.xlu0 %v2993, 54
      %v2999 = vpop.permute.xlu0 %2998
      %3000 = vrot.lane.b32.xlu0 %v2986, 54
      %v3001 = vpop.permute.xlu0 %3000
      %3002 = vrot.lane.b32.xlu0 %v2994, 54
      %v3003 = vpop.permute.xlu0 %3002
      %3004 = vrot.lane.b32.xlu0 %v2987, 54
      %v3005 = vpop.permute.xlu0 %3004
      %3006 = vrot.lane.b32.xlu0 %v2995, 54
      %v3007 = vpop.permute.xlu0 %3006
      %3008 = vrot.lane.b32.xlu0 %v2988, 54
      %v3009 = vpop.permute.xlu0 %3008
      %v3010 = vsel %vm1243, %v2997, %v2999
      %v3011 = vsel %vm1243, %v2999, %v3001
      %v3012 = vsel %vm1243, %v3001, %v3003
      %v3013 = vsel %vm1243, %v3003, %v3005
      %v3014 = vsel %vm1243, %v3005, %v3007
      %v3015 = vsel %vm1243, %v3007, %v3009
      %3023 = vst [vmem:[#allocation2 + $0x230] sm:$0xf] %v3010
      %3024 = vst [vmem:[#allocation2 + $0x238] sm:$0xf] %v3011
      %3025 = vst [vmem:[#allocation2 + $0x240] sm:$0xf] %v3012
      %3026 = vst [vmem:[#allocation2 + $0x248] sm:$0xf] %v3013
      %3027 = vst [vmem:[#allocation2 + $0x250] sm:$0xf] %v3014
      %3028 = vst [vmem:[#allocation2 + $0x258] sm:$0xf] %v3015
      %3029 = vst.msk [vmem:[#allocation2 + $0x260] sm:$0xf] %vm300, %v3009
      %v3030 = vld [vmem:[#allocation3 + $0x4] sm:$0xff]
      %v3031 = vld [vmem:[#allocation3 + $0xc] sm:$0xff]
      %v3032 = vld [vmem:[#allocation3 + $0x14] sm:$0xff]
      %v3033 = vld [vmem:[#allocation3 + $0x1c] sm:$0xf]
      %v3038 = vcombine.low %v3030, %v3030
      %v3039 = vcombine.low %v3031, %v3031
      %v3040 = vcombine.low %v3032, %v3032
      %v3041 = vcombine.low %v3033, %v3033
      %3042 = vrot.lane.b32.xlu0 %v3038, 46
      %v3043 = vpop.permute.xlu0 %3042
      %3044 = vrot.lane.b32.xlu0 %v3030, 46
      %v3045 = vpop.permute.xlu0 %3044
      %3046 = vrot.lane.b32.xlu0 %v3039, 46
      %v3047 = vpop.permute.xlu0 %3046
      %3048 = vrot.lane.b32.xlu0 %v3031, 46
      %v3049 = vpop.permute.xlu0 %3048
      %3050 = vrot.lane.b32.xlu0 %v3040, 46
      %v3051 = vpop.permute.xlu0 %3050
      %3052 = vrot.lane.b32.xlu0 %v3032, 46
      %v3053 = vpop.permute.xlu0 %3052
      %3054 = vrot.lane.b32.xlu0 %v3041, 46
      %v3055 = vpop.permute.xlu0 %3054
      %v3056 = vsel %vm1290, %v3043, %v3045
      %v3057 = vsel %vm1290, %v3045, %v3047
      %v3058 = vsel %vm1290, %v3047, %v3049
      %v3059 = vsel %vm1290, %v3049, %v3051
      %v3060 = vsel %vm1290, %v3051, %v3053
      %v3061 = vsel %vm1290, %v3053, %v3055
      %3069 = vst [vmem:[#allocation2 + $0x230] sm:$0xf0] %v3056
      %3070 = vst [vmem:[#allocation2 + $0x238] sm:$0xf0] %v3057
      %3071 = vst [vmem:[#allocation2 + $0x240] sm:$0xf0] %v3058
      %3072 = vst [vmem:[#allocation2 + $0x248] sm:$0xf0] %v3059
      %3073 = vst [vmem:[#allocation2 + $0x250] sm:$0xf0] %v3060
      %3074 = vst [vmem:[#allocation2 + $0x258] sm:$0xf0] %v3061
      %3075 = vst.msk [vmem:[#allocation2 + $0x260] sm:$0xf0] %vm348, %v3055
      %v3076 = vld [vmem:[#allocation3 + $0x4] sm:$0xff]
      %v3077 = vld [vmem:[#allocation3 + $0xc] sm:$0xff]
      %v3078 = vld [vmem:[#allocation3 + $0x14] sm:$0xff]
      %v3079 = vld [vmem:[#allocation3 + $0x1c] sm:$0xf]
      %v3084 = vcombine.high %v3076, %v3076
      %v3085 = vcombine.high %v3077, %v3077
      %v3086 = vcombine.high %v3078, %v3078
      %3087 = vrot.lane.b32.xlu0 %v3076, 45
      %v3088 = vpop.permute.xlu0 %3087
      %3089 = vrot.lane.b32.xlu0 %v3084, 45
      %v3090 = vpop.permute.xlu0 %3089
      %3091 = vrot.lane.b32.xlu0 %v3077, 45
      %v3092 = vpop.permute.xlu0 %3091
      %3093 = vrot.lane.b32.xlu0 %v3085, 45
      %v3094 = vpop.permute.xlu0 %3093
      %3095 = vrot.lane.b32.xlu0 %v3078, 45
      %v3096 = vpop.permute.xlu0 %3095
      %3097 = vrot.lane.b32.xlu0 %v3086, 45
      %v3098 = vpop.permute.xlu0 %3097
      %3099 = vrot.lane.b32.xlu0 %v3079, 45
      %v3100 = vpop.permute.xlu0 %3099
      %v3101 = vsel %vm1336, %v3088, %v3090
      %v3102 = vsel %vm1336, %v3090, %v3092
      %v3103 = vsel %vm1336, %v3092, %v3094
      %v3104 = vsel %vm1336, %v3094, %v3096
      %v3105 = vsel %vm1336, %v3096, %v3098
      %v3106 = vsel %vm1336, %v3098, %v3100
      %3114 = vst [vmem:[#allocation2 + $0x268] sm:$0xf] %v3101
      %3115 = vst [vmem:[#allocation2 + $0x270] sm:$0xf] %v3102
      %3116 = vst [vmem:[#allocation2 + $0x278] sm:$0xf] %v3103
      %3117 = vst [vmem:[#allocation2 + $0x280] sm:$0xf] %v3104
      %3118 = vst [vmem:[#allocation2 + $0x288] sm:$0xf] %v3105
      %3119 = vst [vmem:[#allocation2 + $0x290] sm:$0xf] %v3106
      %3120 = vst.msk [vmem:[#allocation2 + $0x298] sm:$0xf] %vm300, %v3100
      %v3121 = vld [vmem:[#allocation3 + $0x4] sm:$0xff]
      %v3122 = vld [vmem:[#allocation3 + $0xc] sm:$0xff]
      %v3123 = vld [vmem:[#allocation3 + $0x14] sm:$0xff]
      %v3124 = vld [vmem:[#allocation3 + $0x1c] sm:$0xf]
      %v3129 = vcombine.low %v3121, %v3121
      %v3130 = vcombine.low %v3122, %v3122
      %v3131 = vcombine.low %v3123, %v3123
      %v3132 = vcombine.low %v3124, %v3124
      %3133 = vrot.lane.b32.xlu0 %v3129, 44
      %v3134 = vpop.permute.xlu0 %3133
      %3135 = vrot.lane.b32.xlu0 %v3121, 44
      %v3136 = vpop.permute.xlu0 %3135
      %3137 = vrot.lane.b32.xlu0 %v3130, 44
      %v3138 = vpop.permute.xlu0 %3137
      %3139 = vrot.lane.b32.xlu0 %v3122, 44
      %v3140 = vpop.permute.xlu0 %3139
      %3141 = vrot.lane.b32.xlu0 %v3131, 44
      %v3142 = vpop.permute.xlu0 %3141
      %3143 = vrot.lane.b32.xlu0 %v3123, 44
      %v3144 = vpop.permute.xlu0 %3143
      %3145 = vrot.lane.b32.xlu0 %v3132, 44
      %v3146 = vpop.permute.xlu0 %3145
      %v3147 = vsel %vm1383, %v3134, %v3136
      %v3148 = vsel %vm1383, %v3136, %v3138
      %v3149 = vsel %vm1383, %v3138, %v3140
      %v3150 = vsel %vm1383, %v3140, %v3142
      %v3151 = vsel %vm1383, %v3142, %v3144
      %v3152 = vsel %vm1383, %v3144, %v3146
      %3160 = vst [vmem:[#allocation2 + $0x268] sm:$0xf0] %v3147
      %3161 = vst [vmem:[#allocation2 + $0x270] sm:$0xf0] %v3148
      %3162 = vst [vmem:[#allocation2 + $0x278] sm:$0xf0] %v3149
      %3163 = vst [vmem:[#allocation2 + $0x280] sm:$0xf0] %v3150
      %3164 = vst [vmem:[#allocation2 + $0x288] sm:$0xf0] %v3151
      %3165 = vst [vmem:[#allocation2 + $0x290] sm:$0xf0] %v3152
      %3166 = vst.msk [vmem:[#allocation2 + $0x298] sm:$0xf0] %vm348, %v3146
      %v3167 = vld [vmem:[#allocation3 + $0x4] sm:$0xff]
      %v3168 = vld [vmem:[#allocation3 + $0xc] sm:$0xff]
      %v3169 = vld [vmem:[#allocation3 + $0x14] sm:$0xff]
      %v3170 = vld [vmem:[#allocation3 + $0x1c] sm:$0xf]
      %v3175 = vcombine.high %v3167, %v3167
      %v3176 = vcombine.high %v3168, %v3168
      %v3177 = vcombine.high %v3169, %v3169
      %3178 = vrot.lane.b32.xlu0 %v3167, 36
      %v3179 = vpop.permute.xlu0 %3178
      %3180 = vrot.lane.b32.xlu0 %v3175, 36
      %v3181 = vpop.permute.xlu0 %3180
      %3182 = vrot.lane.b32.xlu0 %v3168, 36
      %v3183 = vpop.permute.xlu0 %3182
      %3184 = vrot.lane.b32.xlu0 %v3176, 36
      %v3185 = vpop.permute.xlu0 %3184
      %3186 = vrot.lane.b32.xlu0 %v3169, 36
      %v3187 = vpop.permute.xlu0 %3186
      %3188 = vrot.lane.b32.xlu0 %v3177, 36
      %v3189 = vpop.permute.xlu0 %3188
      %3190 = vrot.lane.b32.xlu0 %v3170, 36
      %v3191 = vpop.permute.xlu0 %3190
      %v3192 = vsel %vm1429, %v3179, %v3181
      %v3193 = vsel %vm1429, %v3181, %v3183
      %v3194 = vsel %vm1429, %v3183, %v3185
      %v3195 = vsel %vm1429, %v3185, %v3187
      %v3196 = vsel %vm1429, %v3187, %v3189
      %v3197 = vsel %vm1429, %v3189, %v3191
      %3205 = vst [vmem:[#allocation2 + $0x2a0] sm:$0xf] %v3192
      %3206 = vst [vmem:[#allocation2 + $0x2a8] sm:$0xf] %v3193
      %3207 = vst [vmem:[#allocation2 + $0x2b0] sm:$0xf] %v3194
      %3208 = vst [vmem:[#allocation2 + $0x2b8] sm:$0xf] %v3195
      %3209 = vst [vmem:[#allocation2 + $0x2c0] sm:$0xf] %v3196
      %3210 = vst [vmem:[#allocation2 + $0x2c8] sm:$0xf] %v3197
      %3211 = vst.msk [vmem:[#allocation2 + $0x2d0] sm:$0xf] %vm300, %v3191
      %v3212 = vld [vmem:[#allocation3 + $0x4] sm:$0xff]
      %v3213 = vld [vmem:[#allocation3 + $0xc] sm:$0xff]
      %v3214 = vld [vmem:[#allocation3 + $0x14] sm:$0xff]
      %v3215 = vld [vmem:[#allocation3 + $0x1c] sm:$0xf]
      %v3220 = vcombine.low %v3212, %v3212
      %v3221 = vcombine.low %v3213, %v3213
      %v3222 = vcombine.low %v3214, %v3214
      %v3223 = vcombine.low %v3215, %v3215
      %3224 = vrot.lane.b32.xlu0 %v3220, 35
      %v3225 = vpop.permute.xlu0 %3224
      %3226 = vrot.lane.b32.xlu0 %v3212, 35
      %v3227 = vpop.permute.xlu0 %3226
      %3228 = vrot.lane.b32.xlu0 %v3221, 35
      %v3229 = vpop.permute.xlu0 %3228
      %3230 = vrot.lane.b32.xlu0 %v3213, 35
      %v3231 = vpop.permute.xlu0 %3230
      %3232 = vrot.lane.b32.xlu0 %v3222, 35
      %v3233 = vpop.permute.xlu0 %3232
      %3234 = vrot.lane.b32.xlu0 %v3214, 35
      %v3235 = vpop.permute.xlu0 %3234
      %3236 = vrot.lane.b32.xlu0 %v3223, 35
      %v3237 = vpop.permute.xlu0 %3236
      %v3238 = vsel %vm1476, %v3225, %v3227
      %v3239 = vsel %vm1476, %v3227, %v3229
      %v3240 = vsel %vm1476, %v3229, %v3231
      %v3241 = vsel %vm1476, %v3231, %v3233
      %v3242 = vsel %vm1476, %v3233, %v3235
      %v3243 = vsel %vm1476, %v3235, %v3237
      %3251 = vst [vmem:[#allocation2 + $0x2a0] sm:$0xf0] %v3238
      %3252 = vst [vmem:[#allocation2 + $0x2a8] sm:$0xf0] %v3239
      %3253 = vst [vmem:[#allocation2 + $0x2b0] sm:$0xf0] %v3240
      %3254 = vst [vmem:[#allocation2 + $0x2b8] sm:$0xf0] %v3241
      %3255 = vst [vmem:[#allocation2 + $0x2c0] sm:$0xf0] %v3242
      %3256 = vst [vmem:[#allocation2 + $0x2c8] sm:$0xf0] %v3243
      %3257 = vst.msk [vmem:[#allocation2 + $0x2d0] sm:$0xf0] %vm348, %v3237
      %v3258 = vld [vmem:[#allocation3 + $0x4] sm:$0xff]
      %v3259 = vld [vmem:[#allocation3 + $0xc] sm:$0xff]
      %v3260 = vld [vmem:[#allocation3 + $0x14] sm:$0xff]
      %v3261 = vld [vmem:[#allocation3 + $0x1c] sm:$0xf]
      %v3266 = vcombine.high %v3258, %v3258
      %v3267 = vcombine.high %v3259, %v3259
      %v3268 = vcombine.high %v3260, %v3260
      %3269 = vrot.lane.b32.xlu0 %v3258, 34
      %v3270 = vpop.permute.xlu0 %3269
      %3271 = vrot.lane.b32.xlu0 %v3266, 34
      %v3272 = vpop.permute.xlu0 %3271
      %3273 = vrot.lane.b32.xlu0 %v3259, 34
      %v3274 = vpop.permute.xlu0 %3273
      %3275 = vrot.lane.b32.xlu0 %v3267, 34
      %v3276 = vpop.permute.xlu0 %3275
      %3277 = vrot.lane.b32.xlu0 %v3260, 34
      %v3278 = vpop.permute.xlu0 %3277
      %3279 = vrot.lane.b32.xlu0 %v3268, 34
      %v3280 = vpop.permute.xlu0 %3279
      %3281 = vrot.lane.b32.xlu0 %v3261, 34
      %v3282 = vpop.permute.xlu0 %3281
      %v3283 = vsel %vm1522, %v3270, %v3272
      %v3284 = vsel %vm1522, %v3272, %v3274
      %v3285 = vsel %vm1522, %v3274, %v3276
      %v3286 = vsel %vm1522, %v3276, %v3278
      %v3287 = vsel %vm1522, %v3278, %v3280
      %v3288 = vsel %vm1522, %v3280, %v3282
      %3296 = vst [vmem:[#allocation2 + $0x2d8] sm:$0xf] %v3283
      %3297 = vst [vmem:[#allocation2 + $0x2e0] sm:$0xf] %v3284
      %3298 = vst [vmem:[#allocation2 + $0x2e8] sm:$0xf] %v3285
      %3299 = vst [vmem:[#allocation2 + $0x2f0] sm:$0xf] %v3286
      %3300 = vst [vmem:[#allocation2 + $0x2f8] sm:$0xf] %v3287
      %3301 = vst [vmem:[#allocation2 + $0x300] sm:$0xf] %v3288
      %3302 = vst.msk [vmem:[#allocation2 + $0x308] sm:$0xf] %vm300, %v3282
      %v3303 = vld [vmem:[%s4] sm:$0xf]
      %v3304 = vld [vmem:[#allocation2] sm:$0xff]
      %v3305 = vld [vmem:[#allocation2 + $0x8] sm:$0xff]
      %v3306 = vld [vmem:[#allocation2 + $0x10] sm:$0xff]
      %v3307 = vld [vmem:[#allocation2 + $0x18] sm:$0xff]
      %v3308 = vld [vmem:[#allocation2 + $0x20] sm:$0xff]
      %v3309 = vld [vmem:[#allocation2 + $0x28] sm:$0xff]
      %v3310 = vld [vmem:[#allocation2 + $0x30] sm:$0xff]
      %v3311 = vld [vmem:[#allocation2 + $0x38] sm:$0xff]
      %v3312 = vld [vmem:[#allocation2 + $0x40] sm:$0xff]
      %v3313 = vld [vmem:[#allocation2 + $0x48] sm:$0xff]
      %v3314 = vld [vmem:[#allocation2 + $0x50] sm:$0xff]
      %v3315 = vld [vmem:[#allocation2 + $0x58] sm:$0xff]
      %v3316 = vld [vmem:[#allocation2 + $0x60] sm:$0xff]
      %v3317 = vld [vmem:[#allocation2 + $0x68] sm:$0xff]
      %v3318 = vld [vmem:[#allocation2 + $0x70] sm:$0xff]
      %v3319 = vld [vmem:[#allocation2 + $0x78] sm:$0xff]
      %v3320 = vld [vmem:[#allocation2 + $0x80] sm:$0xff]
      %v3321 = vld [vmem:[#allocation2 + $0x88] sm:$0xff]
      %v3322 = vld [vmem:[#allocation2 + $0x90] sm:$0xff]
      %v3323 = vld [vmem:[#allocation2 + $0x98] sm:$0xff]
      %v3324 = vld [vmem:[#allocation2 + $0xa0] sm:$0xff]
      %v3325 = vld [vmem:[#allocation2 + $0xa8] sm:$0xff]
      %v3326 = vld [vmem:[#allocation2 + $0xb0] sm:$0xff]
      %v3327 = vld [vmem:[#allocation2 + $0xb8] sm:$0xff]
      %v3328 = vld [vmem:[#allocation2 + $0xc0] sm:$0xff]
      %v3329 = vld [vmem:[#allocation2 + $0xc8] sm:$0xff]
      %v3330 = vld [vmem:[#allocation2 + $0xd0] sm:$0xff]
      %v3331 = vld [vmem:[#allocation2 + $0xd8] sm:$0xff]
      %v3332 = vld [vmem:[#allocation2 + $0xe0] sm:$0xff]
      %v3333 = vld [vmem:[#allocation2 + $0xe8] sm:$0xff]
      %v3334 = vld [vmem:[#allocation2 + $0xf0] sm:$0xff]
      %v3335 = vld [vmem:[#allocation2 + $0xf8] sm:$0xff]
      %v3336 = vld [vmem:[#allocation2 + $0x100] sm:$0xff]
      %v3337 = vld [vmem:[#allocation2 + $0x108] sm:$0xff]
      %v3338 = vld [vmem:[#allocation2 + $0x110] sm:$0xff]
      %v3339 = vld [vmem:[#allocation2 + $0x118] sm:$0xff]
      %v3340 = vld [vmem:[#allocation2 + $0x120] sm:$0xff]
      %v3341 = vld [vmem:[#allocation2 + $0x128] sm:$0xff]
      %v3342 = vld [vmem:[#allocation2 + $0x130] sm:$0xff]
      %v3343 = vld [vmem:[#allocation2 + $0x138] sm:$0xff]
      %v3344 = vld [vmem:[#allocation2 + $0x140] sm:$0xff]
      %v3345 = vld [vmem:[#allocation2 + $0x148] sm:$0xff]
      %v3346 = vld [vmem:[#allocation2 + $0x150] sm:$0xff]
      %v3347 = vld [vmem:[#allocation2 + $0x158] sm:$0xff]
      %v3348 = vld [vmem:[#allocation2 + $0x160] sm:$0xff]
      %v3349 = vld [vmem:[#allocation2 + $0x168] sm:$0xff]
      %v3350 = vld [vmem:[#allocation2 + $0x170] sm:$0xff]
      %v3351 = vld [vmem:[#allocation2 + $0x178] sm:$0xff]
      %v3352 = vld [vmem:[#allocation2 + $0x180] sm:$0xff]
      %v3353 = vld [vmem:[#allocation2 + $0x188] sm:$0xff]
      %v3354 = vld [vmem:[#allocation2 + $0x190] sm:$0xff]
      %v3355 = vld [vmem:[#allocation2 + $0x198] sm:$0xff]
      %v3356 = vld [vmem:[#allocation2 + $0x1a0] sm:$0xff]
      %v3357 = vld [vmem:[#allocation2 + $0x1a8] sm:$0xff]
      %v3358 = vld [vmem:[#allocation2 + $0x1b0] sm:$0xff]
      %v3359 = vld [vmem:[#allocation2 + $0x1b8] sm:$0xff]
      %v3360 = vld [vmem:[#allocation2 + $0x1c0] sm:$0xff]
      %v3361 = vld [vmem:[#allocation2 + $0x1c8] sm:$0xff]
      %v3362 = vld [vmem:[#allocation2 + $0x1d0] sm:$0xff]
      %v3363 = vld [vmem:[#allocation2 + $0x1d8] sm:$0xff]
      %v3364 = vld [vmem:[#allocation2 + $0x1e0] sm:$0xff]
      %v3365 = vld [vmem:[#allocation2 + $0x1e8] sm:$0xff]
      %v3366 = vld [vmem:[#allocation2 + $0x1f0] sm:$0xff]
      %v3367 = vld [vmem:[#allocation2 + $0x1f8] sm:$0xff]
      %v3368 = vld [vmem:[#allocation2 + $0x200] sm:$0xff]
      %v3369 = vld [vmem:[#allocation2 + $0x208] sm:$0xff]
      %v3370 = vld [vmem:[#allocation2 + $0x210] sm:$0xff]
      %v3371 = vld [vmem:[#allocation2 + $0x218] sm:$0xff]
      %v3372 = vld [vmem:[#allocation2 + $0x220] sm:$0xff]
      %v3373 = vld [vmem:[#allocation2 + $0x228] sm:$0xff]
      %v3374 = vld [vmem:[#allocation2 + $0x230] sm:$0xff]
      %v3375 = vld [vmem:[#allocation2 + $0x238] sm:$0xff]
      %v3376 = vld [vmem:[#allocation2 + $0x240] sm:$0xff]
      %v3377 = vld [vmem:[#allocation2 + $0x248] sm:$0xff]
      %v3378 = vld [vmem:[#allocation2 + $0x250] sm:$0xff]
      %v3379 = vld [vmem:[#allocation2 + $0x258] sm:$0xff]
      %v3380 = vld [vmem:[#allocation2 + $0x260] sm:$0xff]
      %v3381 = vld [vmem:[#allocation2 + $0x268] sm:$0xff]
      %v3382 = vld [vmem:[#allocation2 + $0x270] sm:$0xff]
      %v3383 = vld [vmem:[#allocation2 + $0x278] sm:$0xff]
      %v3384 = vld [vmem:[#allocation2 + $0x280] sm:$0xff]
      %v3385 = vld [vmem:[#allocation2 + $0x288] sm:$0xff]
      %v3386 = vld [vmem:[#allocation2 + $0x290] sm:$0xff]
      %v3387 = vld [vmem:[#allocation2 + $0x298] sm:$0xff]
      %v3388 = vld [vmem:[#allocation2 + $0x2a0] sm:$0xff]
      %v3389 = vld [vmem:[#allocation2 + $0x2a8] sm:$0xff]
      %v3390 = vld [vmem:[#allocation2 + $0x2b0] sm:$0xff]
      %v3391 = vld [vmem:[#allocation2 + $0x2b8] sm:$0xff]
      %v3392 = vld [vmem:[#allocation2 + $0x2c0] sm:$0xff]
      %v3393 = vld [vmem:[#allocation2 + $0x2c8] sm:$0xff]
      %v3394 = vld [vmem:[#allocation2 + $0x2d0] sm:$0xff]
      %v3395 = vld [vmem:[#allocation2 + $0x2d8] sm:$0xf]
      %v3396 = vld [vmem:[#allocation2 + $0x2e0] sm:$0xf]
      %v3397 = vld [vmem:[#allocation2 + $0x2e8] sm:$0xf]
      %v3398 = vld [vmem:[#allocation2 + $0x2f0] sm:$0xf]
      %v3399 = vld [vmem:[#allocation2 + $0x2f8] sm:$0xf]
      %v3400 = vld [vmem:[#allocation2 + $0x300] sm:$0xf]
      %v3401 = vld [vmem:[#allocation2 + $0x308] sm:$0xf]
      %v3402 = vld [vmem:[%s5] sm:$0xf]
      %3404 = vset.pattern.permute.xlu0 0
      %3405 = vperm.xlu0 %3404, %v3402
      %v3406 = vpop.permute.xlu0 %3405
      %v3409 = vsel %vm561, %v3303, 0
      %v3412 = vsel %vm1651, %v3395, 0
      %v3415 = vsel %vm1651, %v3396, 0
      %v3418 = vsel %vm1651, %v3397, 0
      %v3421 = vsel %vm1651, %v3398, 0
      %v3424 = vsel %vm1651, %v3399, 0
      %v3427 = vsel %vm1651, %v3400, 0
      %v3430 = vsel %vm1651, %v3401, 0
      %3432 = vmatprep.subr.mxu0 %v3305
      %3433 = vmatpush1.msra.mxu0 %v3304
      %3434 = vmatprep.subr.mxu0 %v3312
      %3435 = vmatpush1.msra.mxu0 %v3311
      %3436 = vmatprep.subr.mxu0 %v3319
      %3437 = vmatpush1.msra.mxu0 %v3318
      %3438 = vmatprep.subr.mxu0 %v3326
      %3439 = vmatpush1.msra.mxu0 %v3325
      %3440 = vmatprep.subr.mxu0 %v3333
      %3441 = vmatpush1.msra.mxu0 %v3332
      %3442 = vmatprep.subr.mxu0 %v3340
      %3443 = vmatpush1.msra.mxu0 %v3339
      %3444 = vmatprep.subr.mxu0 %v3347
      %3445 = vmatpush1.msra.mxu0 %v3346
      %3446 = vmatprep.subr.mxu0 %v3354
      %3447 = vmatpush1.msra.mxu0 %v3353
      %3448 = vmatprep.subr.mxu0 %v3361
      %3449 = vmatpush1.msra.mxu0 %v3360
      %3450 = vmatprep.subr.mxu0 %v3368
      %3451 = vmatpush1.msra.mxu0 %v3367
      %3452 = vmatprep.subr.mxu0 %v3375
      %3453 = vmatpush1.msra.mxu0 %v3374
      %3454 = vmatprep.subr.mxu0 %v3382
      %3455 = vmatpush1.msra.mxu0 %v3381
      %3456 = vmatprep.subr.mxu0 %v3389
      %3457 = vmatpush1.msra.mxu0 %v3388
      %3458 = vmatprep.subr.mxu0 %v3415
      %3459 = vmatpush1.msra.mxu0 %v3412
      %3460 = vmatprep.subr.mxu0 0.0
      %3461 = vmatpush1.msra.mxu0 0.0
      %3462 = vmatprep.subr.mxu0 0.0
      %3463 = vmatpush1.msra.mxu0 0.0
      %3464 = vmatprep.subr.mxu0 0.0
      %3465 = vmatpush1.msra.mxu0 0.0
      %3466 = vmatprep.subr.mxu0 0.0
      %3467 = vmatpush1.msra.mxu0 0.0
      %3468 = vmatprep.subr.mxu0 0.0
      %3469 = vmatpush1.msra.mxu0 0.0
      %3470 = vmatprep.subr.mxu0 0.0
      %3471 = vmatpush1.msra.mxu0 0.0
      %3472 = vmatprep.subr.mxu0 0.0
      %3473 = vmatpush1.msra.mxu0 0.0
      %3474 = vmatprep.subr.mxu0 0.0
      %3475 = vmatpush1.msra.mxu0 0.0
      %3476 = vmatprep.subr.mxu0 0.0
      %3477 = vmatpush1.msra.mxu0 0.0
      %3478 = vmatprep.subr.mxu0 0.0
      %3479 = vmatpush1.msra.mxu0 0.0
      %3480 = vmatprep.subr.mxu0 0.0
      %3481 = vmatpush1.msra.mxu0 0.0
      %3482 = vmatprep.subr.mxu0 0.0
      %3483 = vmatpush1.msra.mxu0 0.0
      %3484 = vmatprep.subr.mxu0 0.0
      %3485 = vmatpush1.msra.mxu0 0.0
      %3486 = vmatprep.subr.mxu0 0.0
      %3487 = vmatpush1.msra.mxu0 0.0
      %3488 = vmatprep.subr.mxu0 0.0
      %3489 = vmatpush1.msra.mxu0 0.0
      %3490 = vmatprep.subr.mxu0 0.0
      %3491 = vmatpush1.msra.mxu0 0.0
      %3492 = vmatprep.subr.mxu0 0.0
      %3493 = vmatpush1.msra.mxu0 0.0
      %3494 = vmatprep.subr.mxu0 0.0
      %3495 = vmatpush1.msra.mxu0 0.0
      %3496 = vmatprep.mubr.f32.mxu0 0.0
      %3497 = vmatmul.mubr.f32.gmra.mrb[0].mxu0 %v3409
      %v3498 = vpop.f32.mrb[0].mxu0
      %v3499 = vadd.f32 %v3406, %v3498
      %v3500 = vpop.f32.mrb[0].mxu0
      %v3501 = vadd.f32 %v3406, %v3500
      %3502 = vdwg.mxu0
      %3503 = vmatprep.subr.mxu0 %v3307
      %3504 = vmatpush1.msra.mxu0 %v3306
      %3505 = vmatprep.subr.mxu0 %v3314
      %3506 = vmatpush1.msra.mxu0 %v3313
      %3507 = vmatprep.subr.mxu0 %v3321
      %3508 = vmatpush1.msra.mxu0 %v3320
      %3509 = vmatprep.subr.mxu0 %v3328
      %3510 = vmatpush1.msra.mxu0 %v3327
      %3511 = vmatprep.subr.mxu0 %v3335
      %3512 = vmatpush1.msra.mxu0 %v3334
      %3513 = vmatprep.subr.mxu0 %v3342
      %3514 = vmatpush1.msra.mxu0 %v3341
      %3515 = vmatprep.subr.mxu0 %v3349
      %3516 = vmatpush1.msra.mxu0 %v3348
      %3517 = vmatprep.subr.mxu0 %v3356
      %3518 = vmatpush1.msra.mxu0 %v3355
      %3519 = vmatprep.subr.mxu0 %v3363
      %3520 = vmatpush1.msra.mxu0 %v3362
      %3521 = vmatprep.subr.mxu0 %v3370
      %3522 = vmatpush1.msra.mxu0 %v3369
      %3523 = vmatprep.subr.mxu0 %v3377
      %3524 = vmatpush1.msra.mxu0 %v3376
      %3525 = vmatprep.subr.mxu0 %v3384
      %3526 = vmatpush1.msra.mxu0 %v3383
      %3527 = vmatprep.subr.mxu0 %v3391
      %3528 = vmatpush1.msra.mxu0 %v3390
      %3529 = vmatprep.subr.mxu0 %v3421
      %3530 = vmatpush1.msra.mxu0 %v3418
      %3531 = vmatprep.subr.mxu0 0.0
      %3532 = vmatpush1.msra.mxu0 0.0
      %3533 = vmatprep.subr.mxu0 0.0
      %3534 = vmatpush1.msra.mxu0 0.0
      %3535 = vmatprep.subr.mxu0 0.0
      %3536 = vmatpush1.msra.mxu0 0.0
      %3537 = vmatprep.subr.mxu0 0.0
      %3538 = vmatpush1.msra.mxu0 0.0
      %3539 = vmatprep.subr.mxu0 0.0
      %3540 = vmatpush1.msra.mxu0 0.0
      %3541 = vmatprep.subr.mxu0 0.0
      %3542 = vmatpush1.msra.mxu0 0.0
      %3543 = vmatprep.subr.mxu0 0.0
      %3544 = vmatpush1.msra.mxu0 0.0
      %3545 = vmatprep.subr.mxu0 0.0
      %3546 = vmatpush1.msra.mxu0 0.0
      %3547 = vmatprep.subr.mxu0 0.0
      %3548 = vmatpush1.msra.mxu0 0.0
      %3549 = vmatprep.subr.mxu0 0.0
      %3550 = vmatpush1.msra.mxu0 0.0
      %3551 = vmatprep.subr.mxu0 0.0
      %3552 = vmatpush1.msra.mxu0 0.0
      %3553 = vmatprep.subr.mxu0 0.0
      %3554 = vmatpush1.msra.mxu0 0.0
      %3555 = vmatprep.subr.mxu0 0.0
      %3556 = vmatpush1.msra.mxu0 0.0
      %3557 = vmatprep.subr.mxu0 0.0
      %3558 = vmatpush1.msra.mxu0 0.0
      %3559 = vmatprep.subr.mxu0 0.0
      %3560 = vmatpush1.msra.mxu0 0.0
      %3561 = vmatprep.subr.mxu0 0.0
      %3562 = vmatpush1.msra.mxu0 0.0
      %3563 = vmatprep.subr.mxu0 0.0
      %3564 = vmatpush1.msra.mxu0 0.0
      %3565 = vmatprep.subr.mxu0 0.0
      %3566 = vmatpush1.msra.mxu0 0.0
      %3567 = vmatprep.mubr.f32.mxu0 0.0
      %3568 = vmatmul.mubr.f32.gmra.mrb[0].mxu0 %v3409
      %v3569 = vpop.f32.mrb[0].mxu0
      %v3570 = vadd.f32 %v3406, %v3569
      %v3571 = vpop.f32.mrb[0].mxu0
      %v3572 = vadd.f32 %v3406, %v3571
      %3573 = vdwg.mxu0
      %3574 = vmatprep.subr.mxu0 %v3309
      %3575 = vmatpush1.msra.mxu0 %v3308
      %3576 = vmatprep.subr.mxu0 %v3316
      %3577 = vmatpush1.msra.mxu0 %v3315
      %3578 = vmatprep.subr.mxu0 %v3323
      %3579 = vmatpush1.msra.mxu0 %v3322
      %3580 = vmatprep.subr.mxu0 %v3330
      %3581 = vmatpush1.msra.mxu0 %v3329
      %3582 = vmatprep.subr.mxu0 %v3337
      %3583 = vmatpush1.msra.mxu0 %v3336
      %3584 = vmatprep.subr.mxu0 %v3344
      %3585 = vmatpush1.msra.mxu0 %v3343
      %3586 = vmatprep.subr.mxu0 %v3351
      %3587 = vmatpush1.msra.mxu0 %v3350
      %3588 = vmatprep.subr.mxu0 %v3358
      %3589 = vmatpush1.msra.mxu0 %v3357
      %3590 = vmatprep.subr.mxu0 %v3365
      %3591 = vmatpush1.msra.mxu0 %v3364
      %3592 = vmatprep.subr.mxu0 %v3372
      %3593 = vmatpush1.msra.mxu0 %v3371
      %3594 = vmatprep.subr.mxu0 %v3379
      %3595 = vmatpush1.msra.mxu0 %v3378
      %3596 = vmatprep.subr.mxu0 %v3386
      %3597 = vmatpush1.msra.mxu0 %v3385
      %3598 = vmatprep.subr.mxu0 %v3393
      %3599 = vmatpush1.msra.mxu0 %v3392
      %3600 = vmatprep.subr.mxu0 %v3427
      %3601 = vmatpush1.msra.mxu0 %v3424
      %3602 = vmatprep.subr.mxu0 0.0
      %3603 = vmatpush1.msra.mxu0 0.0
      %3604 = vmatprep.subr.mxu0 0.0
      %3605 = vmatpush1.msra.mxu0 0.0
      %3606 = vmatprep.subr.mxu0 0.0
      %3607 = vmatpush1.msra.mxu0 0.0
      %3608 = vmatprep.subr.mxu0 0.0
      %3609 = vmatpush1.msra.mxu0 0.0
      %3610 = vmatprep.subr.mxu0 0.0
      %3611 = vmatpush1.msra.mxu0 0.0
      %3612 = vmatprep.subr.mxu0 0.0
      %3613 = vmatpush1.msra.mxu0 0.0
      %3614 = vmatprep.subr.mxu0 0.0
      %3615 = vmatpush1.msra.mxu0 0.0
      %3616 = vmatprep.subr.mxu0 0.0
      %3617 = vmatpush1.msra.mxu0 0.0
      %3618 = vmatprep.subr.mxu0 0.0
      %3619 = vmatpush1.msra.mxu0 0.0
      %3620 = vmatprep.subr.mxu0 0.0
      %3621 = vmatpush1.msra.mxu0 0.0
      %3622 = vmatprep.subr.mxu0 0.0
      %3623 = vmatpush1.msra.mxu0 0.0
      %3624 = vmatprep.subr.mxu0 0.0
      %3625 = vmatpush1.msra.mxu0 0.0
      %3626 = vmatprep.subr.mxu0 0.0
      %3627 = vmatpush1.msra.mxu0 0.0
      %3628 = vmatprep.subr.mxu0 0.0
      %3629 = vmatpush1.msra.mxu0 0.0
      %3630 = vmatprep.subr.mxu0 0.0
      %3631 = vmatpush1.msra.mxu0 0.0
      %3632 = vmatprep.subr.mxu0 0.0
      %3633 = vmatpush1.msra.mxu0 0.0
      %3634 = vmatprep.subr.mxu0 0.0
      %3635 = vmatpush1.msra.mxu0 0.0
      %3636 = vmatprep.subr.mxu0 0.0
      %3637 = vmatpush1.msra.mxu0 0.0
      %3638 = vmatprep.mubr.f32.mxu0 0.0
      %3639 = vmatmul.mubr.f32.gmra.mrb[0].mxu0 %v3409
      %v3640 = vpop.f32.mrb[0].mxu0
      %v3641 = vadd.f32 %v3406, %v3640
      %v3642 = vpop.f32.mrb[0].mxu0
      %v3643 = vadd.f32 %v3406, %v3642
      %3644 = vdwg.mxu0
      %3645 = vmatprep.subr.mxu0 0.0
      %3646 = vmatpush1.msra.mxu0 %v3310
      %3647 = vmatprep.subr.mxu0 0.0
      %3648 = vmatpush1.msra.mxu0 %v3317
      %3649 = vmatprep.subr.mxu0 0.0
      %3650 = vmatpush1.msra.mxu0 %v3324
      %3651 = vmatprep.subr.mxu0 0.0
      %3652 = vmatpush1.msra.mxu0 %v3331
      %3653 = vmatprep.subr.mxu0 0.0
      %3654 = vmatpush1.msra.mxu0 %v3338
      %3655 = vmatprep.subr.mxu0 0.0
      %3656 = vmatpush1.msra.mxu0 %v3345
      %3657 = vmatprep.subr.mxu0 0.0
      %3658 = vmatpush1.msra.mxu0 %v3352
      %3659 = vmatprep.subr.mxu0 0.0
      %3660 = vmatpush1.msra.mxu0 %v3359
      %3661 = vmatprep.subr.mxu0 0.0
      %3662 = vmatpush1.msra.mxu0 %v3366
      %3663 = vmatprep.subr.mxu0 0.0
      %3664 = vmatpush1.msra.mxu0 %v3373
      %3665 = vmatprep.subr.mxu0 0.0
      %3666 = vmatpush1.msra.mxu0 %v3380
      %3667 = vmatprep.subr.mxu0 0.0
      %3668 = vmatpush1.msra.mxu0 %v3387
      %3669 = vmatprep.subr.mxu0 0.0
      %3670 = vmatpush1.msra.mxu0 %v3394
      %3671 = vmatprep.subr.mxu0 0.0
      %3672 = vmatpush1.msra.mxu0 %v3430
      %3673 = vmatprep.subr.mxu0 0.0
      %3674 = vmatpush1.msra.mxu0 0.0
      %3675 = vmatprep.subr.mxu0 0.0
      %3676 = vmatpush1.msra.mxu0 0.0
      %3677 = vmatprep.subr.mxu0 0.0
      %3678 = vmatpush1.msra.mxu0 0.0
      %3679 = vmatprep.subr.mxu0 0.0
      %3680 = vmatpush1.msra.mxu0 0.0
      %3681 = vmatprep.subr.mxu0 0.0
      %3682 = vmatpush1.msra.mxu0 0.0
      %3683 = vmatprep.subr.mxu0 0.0
      %3684 = vmatpush1.msra.mxu0 0.0
      %3685 = vmatprep.subr.mxu0 0.0
      %3686 = vmatpush1.msra.mxu0 0.0
      %3687 = vmatprep.subr.mxu0 0.0
      %3688 = vmatpush1.msra.mxu0 0.0
      %3689 = vmatprep.subr.mxu0 0.0
      %3690 = vmatpush1.msra.mxu0 0.0
      %3691 = vmatprep.subr.mxu0 0.0
      %3692 = vmatpush1.msra.mxu0 0.0
      %3693 = vmatprep.subr.mxu0 0.0
      %3694 = vmatpush1.msra.mxu0 0.0
      %3695 = vmatprep.subr.mxu0 0.0
      %3696 = vmatpush1.msra.mxu0 0.0
      %3697 = vmatprep.subr.mxu0 0.0
      %3698 = vmatpush1.msra.mxu0 0.0
      %3699 = vmatprep.subr.mxu0 0.0
      %3700 = vmatpush1.msra.mxu0 0.0
      %3701 = vmatprep.subr.mxu0 0.0
      %3702 = vmatpush1.msra.mxu0 0.0
      %3703 = vmatprep.subr.mxu0 0.0
      %3704 = vmatpush1.msra.mxu0 0.0
      %3705 = vmatprep.subr.mxu0 0.0
      %3706 = vmatpush1.msra.mxu0 0.0
      %3707 = vmatprep.subr.mxu0 0.0
      %3708 = vmatpush1.msra.mxu0 0.0
      %3709 = vmatprep.mubr.f32.mxu0 0.0
      %3710 = vmatmul.mubr.f32.gmra.mrb[0].mxu0 %v3409
      %v3711 = vpop.f32.mrb[0].mxu0
      %v3712 = vadd.f32 %v3406, %v3711
      %v3713 = vpop.f32.mrb[0].mxu0
      %3714 = vdwg.mxu0
      %v3715 = vstv %s280
      %v3716 = vmul.f32 %v3715, %v3499
      %v3717 = vmul.f32 %v3715, %v3501
      %v3718 = vmul.f32 %v3715, %v3570
      %v3719 = vmul.f32 %v3715, %v3572
      %v3720 = vmul.f32 %v3715, %v3641
      %v3721 = vmul.f32 %v3715, %v3643
      %v3722 = vmul.f32 %v3715, %v3712
      %v3723 = vadd.f32 %v3716, %v1740
      %v3724 = vadd.f32 %v3717, %v1742
      %v3725 = vadd.f32 %v3718, %v1811
      %v3726 = vadd.f32 %v3719, %v1813
      %v3727 = vadd.f32 %v3720, %v1882
      %v3728 = vadd.f32 %v3721, %v1884
      %v3729 = vadd.f32 %v3722, %v1953
      %vm3730 = vcmp.ge.f32.partialorder %v3723, 0.0
      %vm3731 = vcmp.ge.f32.partialorder %v3724, 0.0
      %vm3732 = vcmp.ge.f32.partialorder %v3725, 0.0
      %vm3733 = vcmp.ge.f32.partialorder %v3726, 0.0
      %vm3734 = vcmp.ge.f32.partialorder %v3727, 0.0
      %vm3735 = vcmp.ge.f32.partialorder %v3728, 0.0
      %vm3736 = vcmp.ge.f32.partialorder %v3729, 0.0
      %v3737 = vmul.f32 %v3723, 0.01
      %v3738 = vmul.f32 %v3724, 0.01
      %v3739 = vmul.f32 %v3725, 0.01
      %v3740 = vmul.f32 %v3726, 0.01
      %v3741 = vmul.f32 %v3727, 0.01
      %v3742 = vmul.f32 %v3728, 0.01
      %v3743 = vmul.f32 %v3729, 0.01
      %v3744 = vsel %vm3730, %v3723, %v3737
      %v3745 = vsel %vm3731, %v3724, %v3738
      %v3746 = vsel %vm3732, %v3725, %v3739
      %v3747 = vsel %vm3733, %v3726, %v3740
      %v3748 = vsel %vm3734, %v3727, %v3741
      %v3749 = vsel %vm3735, %v3728, %v3742
      %v3750 = vsel %vm3736, %v3729, %v3743
      %v3757 = vcombine.low %v3744, %v3745
      %v3758 = vcombine.low %v3746, %v3747
      %v3759 = vcombine.low %v3748, %v3749
      %3763 = vst [vmem:[%s279] sm:$0xff] %v3757
      %3764 = vst [vmem:[%s279 + $0x8] sm:$0xff] %v3758
      %3765 = vst [vmem:[%s279 + $0x10] sm:$0xff] %v3759
      %3766 = vst.msk [vmem:[%s279 + $0x18] sm:$0xf] %vm300, %v3750
      %p3767 = scmp.lt.s32.totalorder %s19, 1
      %s3768 = scalar_select %p3767, %s19, 1
      %s3769 = smul.addr %s3768, 7
      %s3770 = smul.addr %s3769, 4
      %s3771 = scalar_lea.vmem %s7, %s3770
      // Predicated region
      $region49: #{tpc_residual_block.1} parent=47 // pred_check
        %p3772 = pneg %p189
      $region50: #{tpc_residual_block.1} parent=47 // pred_check_branch
        %3774 = sbr.rel (%p3772) target = $region52
      $region51: #{tpc_residual_block.1} parent=47 // pred_region
        _
      $region52: #{tpc_residual_block.1} parent=47 // pred_fallthru
        _
    $region48: #{tpc_residual_block.1} parent=5 // pred_fallthru
      _
    %p3775 = scmp.le.s32.totalorder 2, %s14
    // Predicated region
    $region53: #{tpc_residual_block.1} parent=5 // pred_check
      %p3776 = pneg %p3775
    $region54: #{tpc_residual_block.1} parent=5 // pred_check_branch
      %3778 = sbr.rel (%p3776) target = $region56
    $region55: #{tpc_residual_block.1} parent=5 // pred_region
      %s3779 = ssub.s32 %s14, 2
      // Predicated region
      $region57: #{tpc_residual_block.1} parent=55 // pred_check
        %p3780 = pneg %p195
      $region58: #{tpc_residual_block.1} parent=55 // pred_check_branch
        %3782 = sbr.rel (%p3780) target = $region60
      $region59: #{tpc_residual_block.1} parent=55 // pred_region
        %p3783 = scmp.lt.s32.totalorder %s20, 1
        %s3784 = scalar_select %p3783, %s20, 1
        %s3785 = smul.addr %s3784, 7
        %s3786 = smul.addr %s3785, 4
        %s3787 = scalar_lea.vmem %s7, %s3786
      $region60: #{tpc_residual_block.1} parent=55 // pred_fallthru
        _
    $region56: #{tpc_residual_block.1} parent=5 // pred_fallthru
      _
  $region6: #{tpc_residual_block.1} parent=0 // loop_footer
    %s18 = sadd.s32 1, %s14
  $region7: #{tpc_residual_block.1} parent=0 // loop_footer_branch
    %13 = sbr.rel target = $region3
  $region8: #{tpc_residual_block.1} parent=0 // loop_exit
    _

</llo_original>
